<compile_context>
chip_gen: v6e
topology: v6e:2x2x1
jax: 0.10.0
libtpu: 0.0.40
codegen_flags: <defaults>
</compile_context>

<pallas_src>
import jax
import jax.numpy as jnp
from jax.experimental import pallas as pl
from jax.experimental.pallas import tpu as pltpu


def eva_cross_attention_kernel(
    q_in_ref,   # (1, N, C)    query block for this batch element
    kv_ref,     # (1, Mt, C)   one KV-length tile for this batch element
    wq_ref,     # (C, AH)      softmax scale folded in, compute dtype
    bq_ref,     # (1, AH)      softmax scale folded in, f32
    wkv_ref,    # (C, 2*AH)    [wk | wv], compute dtype
    bv_ref,     # (1, AH)      f32
    wp_ref,     # (AH, C)      compute dtype
    bp_ref,     # (1, C)       f32
    out_ref,    # (1, N, C)
    q_sc,       # (H, N, D)    compute dtype -- q, head-split, lives across KV tiles
    m_sc,       # (H, N, 1)    f32           -- running max
    l_sc,       # (H, N, 1)    f32           -- running softmax denominator
    acc_sc,     # (H, N, D)    f32           -- running (unnormalized) output
):
    H, N, D = q_sc.shape
    AH = H * D
    cdt = wq_ref.dtype           # compute dtype for MXU operands (bf16 or f32)
    kv_i = pl.program_id(1)

    # ---- once per batch element: flat lane-dense Q projection + head split ----
    @pl.when(kv_i == 0)
    def _init():
        q_in = q_in_ref[0].astype(cdt)                                  # (N, C)
        q_flat = jnp.dot(q_in, wq_ref[...],
                         preferred_element_type=jnp.float32) + bq_ref[...]
        q_sc[...] = (q_flat.reshape(N, H, D)
                     .transpose(1, 0, 2)).astype(cdt)                   # (H, N, D)
        m_sc[...] = jnp.full_like(m_sc, -jnp.inf)
        l_sc[...] = jnp.zeros_like(l_sc)
        acc_sc[...] = jnp.zeros_like(acc_sc)

    # ---- per KV tile: fused lane-dense K|V projection + head split ----
    kv = kv_ref[0].astype(cdt)                                          # (Mt, C)
    Mt = kv.shape[0]
    kv_flat = jnp.dot(kv, wkv_ref[...],
                      preferred_element_type=jnp.float32)               # (Mt, 2AH)
    k = (kv_flat[:, :AH].reshape(Mt, H, D)
         .transpose(1, 0, 2)).astype(cdt)                               # (H, Mt, D)
    v = ((kv_flat[:, AH:] + bv_ref[...]).reshape(Mt, H, D)
         .transpose(1, 0, 2)).astype(cdt)                               # (H, Mt, D)

    # ---- flash-style online softmax (scale already folded into q) ----
    s = jnp.einsum('hnd,hmd->hnm', q_sc[...], k,
                   preferred_element_type=jnp.float32)                  # (H, N, Mt)
    m_prev = m_sc[...]
    m_new = jnp.maximum(m_prev, jnp.max(s, axis=-1, keepdims=True))
    alpha = jnp.exp(m_prev - m_new)
    p = jnp.exp(s - m_new)
    l_sc[...] = alpha * l_sc[...] + jnp.sum(p, axis=-1, keepdims=True)
    acc_sc[...] = alpha * acc_sc[...] + jnp.einsum(
        'hnm,hmd->hnd', p.astype(cdt), v, preferred_element_type=jnp.float32)
    m_sc[...] = m_new

    # ---- once per batch element: normalize, merge heads, flat out-projection ----
    @pl.when(kv_i == pl.num_programs(1) - 1)
    def _finalize():
        x = acc_sc[...] * pl.reciprocal(l_sc[...], approx=True)         # (H, N, D)
        x_flat = (x.transpose(1, 0, 2).reshape(N, AH)).astype(cdt)      # (N, AH)
        out = jnp.dot(x_flat, wp_ref[...],
                      preferred_element_type=jnp.float32) + bp_ref[...]
        out_ref[0] = out.astype(out_ref.dtype)


def _prepare_params(params, num_heads, compute_dtype):
    """Fold the softmax scale into the Q projection (BEFORE any dtype cast),
    fuse wk|wv into one (C, 2AH) matrix, cast MXU weights to the compute dtype.
    Biases stay f32 (they are added after the f32 MXU accumulation)."""
    wq, bq = params["wq"], params["bq"]          # (C, AH), (1, AH)
    wk, wv, bv = params["wk"], params["wv"], params["bv"]
    wp, bp = params["wp"], params["bp"]          # (AH, C), (1, C)
    AH = wq.shape[1]
    D = AH // num_heads
    scale = D ** -0.5
    wq_s = (wq * scale).astype(compute_dtype)
    bq_s = (bq * scale).astype(jnp.float32)
    wkv = jnp.concatenate([wk, wv], axis=1).astype(compute_dtype)       # (C, 2AH)
    return (wq_s, bq_s, wkv, bv.astype(jnp.float32),
            wp.astype(compute_dtype), bp.astype(jnp.float32))


def eva_cross_attention(query, key_value, params, *, num_heads,
                        kv_block=512, compute_dtype=jnp.bfloat16):
    B, N, C = query.shape
    _, M, _ = key_value.shape
    AH = params["wq"].shape[1]
    H = num_heads
    D = AH // H

    weights = _prepare_params(params, num_heads, compute_dtype)

    # KV-length tile for the flash-style loop; fall back to a single tile when
    # M is not divisible (keeps the kernel mask-free).
    tkv = min(kv_block, M)
    if M % tkv != 0:
        tkv = M
    n_kv = M // tkv

    flops = 2 * B * (N * C * AH            # q projection
                     + M * C * 2 * AH      # fused k|v projection
                     + 2 * H * N * M * D   # q@k^T and p@v
                     + N * AH * C)         # output projection
    bytes_accessed = int(
        query.size * query.dtype.itemsize
        + key_value.size * key_value.dtype.itemsize
        + sum(int(w.size) * w.dtype.itemsize for w in weights)
        + B * N * C * query.dtype.itemsize)
    cost = pl.CostEstimate(flops=flops, transcendentals=B * H * N * M,
                           bytes_accessed=bytes_accessed)

    def build(single_buffer_weights):
        def const_spec(shape):
            index_map = lambda b, kv: (0,) * len(shape)
            if single_buffer_weights:
                # Grid-invariant weights: double-buffering buys nothing but
                # doubles their VMEM footprint -> single-buffer them.
                return pl.BlockSpec(shape, index_map, pipeline_mode=pl.Buffered(1))
            return pl.BlockSpec(shape, index_map)

        grid_spec = pltpu.PrefetchScalarGridSpec(
            num_scalar_prefetch=0,
            grid=(B, n_kv),                 # batch parallel, KV tiles sequential
            in_specs=[
                pl.BlockSpec((1, N, C), lambda b, kv: (b, 0, 0)),     # query
                pl.BlockSpec((1, tkv, C), lambda b, kv: (b, kv, 0)),  # key_value
                const_spec((C, AH)),        # wq (scale folded)
                const_spec((1, AH)),        # bq (scale folded)
                const_spec((C, 2 * AH)),    # wk | wv
                const_spec((1, AH)),        # bv
                const_spec((AH, C)),        # wp
                const_spec((1, C)),         # bp
            ],
            out_specs=pl.BlockSpec((1, N, C), lambda b, kv: (b, 0, 0)),
            scratch_shapes=[
                pltpu.VMEM((H, N, D), compute_dtype),   # q, head-split
                pltpu.VMEM((H, N, 1), jnp.float32),     # running max
                pltpu.VMEM((H, N, 1), jnp.float32),     # running sum
                pltpu.VMEM((H, N, D), jnp.float32),     # running output
            ],
        )
        return pl.pallas_call(
            eva_cross_attention_kernel,
            out_shape=jax.ShapeDtypeStruct((B, N, C), query.dtype),
            grid_spec=grid_spec,
            compiler_params=pltpu.CompilerParams(
                dimension_semantics=("parallel", "arbitrary"),
                vmem_limit_bytes=48 * 1024 * 1024,
            ),
            cost_estimate=cost,
        )

    args = (query, key_value, *weights)
    try:
        return build(True)(*args)
    except Exception:
        # Fallback for JAX versions where single-buffered pipeline_mode is not
        # supported on pallas_call inputs; default double-buffering instead.
        return build(False)(*args)


def reference(query, key_value, params, *, num_heads):
    """Pure-JAX reference matching the PyTorch forward (rope/mask None, eval)."""
    B, N, C = query.shape
    _, M, _ = key_value.shape
    AH = params["wq"].shape[1]
    D = AH // num_heads
    q = query @ params["wq"] + params["bq"]
    k = key_value @ params["wk"]
    v = key_value @ params["wv"] + params["bv"]
    q = q.reshape(B, N, num_heads, D).transpose(0, 2, 1, 3)
    k = k.reshape(B, M, num_heads, D).transpose(0, 2, 1, 3)
    v = v.reshape(B, M, num_heads, D).transpose(0, 2, 1, 3)
    attn = jnp.einsum("bhnd,bhmd->bhnm", q * (D ** -0.5), k)
    attn = jax.nn.softmax(attn, axis=-1)
    x = jnp.einsum("bhnm,bhmd->bhnd", attn, v)
    x = x.transpose(0, 2, 1, 3).reshape(B, N, AH)
    return x @ params["wp"] + params["bp"]


if __name__ == "__main__":
    # Small shapes consistent with the module: dim=32, num_heads=4 (head_dim=8).
    B, N, M, C = 2, 8, 16, 32
    num_heads = 4
    AH = C  # all_head_dim == dim (attn_head_dim=None)

    key = jax.random.PRNGKey(0)
    ks = jax.random.split(key, 9)
    params = {
        "wq": jax.random.normal(ks[0], (C, AH), jnp.float32) * 0.05,
        "bq": jax.random.normal(ks[1], (1, AH), jnp.float32) * 0.05,
        "wk": jax.random.normal(ks[2], (C, AH), jnp.float32) * 0.05,
        "wv": jax.random.normal(ks[3], (C, AH), jnp.float32) * 0.05,
        "bv": jax.random.normal(ks[4], (1, AH), jnp.float32) * 0.05,
        "wp": jax.random.normal(ks[5], (AH, C), jnp.float32) * 0.05,
        "bp": jax.random.normal(ks[6], (1, C), jnp.float32) * 0.05,
    }
    query = jax.random.normal(ks[7], (B, N, C), jnp.float32)
    key_value = jax.random.normal(ks[8], (B, M, C), jnp.float32)

    ref = reference(query, key_value, params, num_heads=num_heads)

    # 1) f32 compute, kv_block=8 -> two KV tiles: exercises the online softmax.
    out_f32 = eva_cross_attention(query, key_value, params, num_heads=num_heads,
                                  kv_block=8, compute_dtype=jnp.float32)
    out_f32 = jax.block_until_ready(out_f32)
    assert out_f32.shape == (B, N, C)
    # Tolerance accounts for the approximate EUP reciprocal in the softmax.
    assert jnp.allclose(out_f32, ref, atol=2e-3, rtol=2e-3), "f32 kernel mismatch"

    # 2) default bf16 MXU operands (f32 accumulation), single KV tile.
    out_bf16 = eva_cross_attention(query, key_value, params, num_heads=num_heads)
    out_bf16 = jax.block_until_ready(out_bf16)
    assert out_bf16.shape == (B, N, C)
    # Looser tolerance: MXU operands are bf16 (accumulation stays f32).
    assert jnp.allclose(out_bf16, ref, atol=1e-2, rtol=1e-2), "bf16 kernel mismatch"

    print("KERNEL_OK")
</pallas_src>

<mosaic_0001>
module attributes {stable_mosaic.version = 11 : i64} {
  func.func @eva_cross_attention_kernel(%arg0: i32, %arg1: i32, %arg2: memref<1x8x32xf32, #tpu.memory_space<vmem>>, %arg3: memref<1x8x32xf32, #tpu.memory_space<vmem>>, %arg4: memref<32x32xf32, #tpu.memory_space<vmem>>, %arg5: memref<1x32xf32, #tpu.memory_space<vmem>>, %arg6: memref<32x64xf32, #tpu.memory_space<vmem>>, %arg7: memref<1x32xf32, #tpu.memory_space<vmem>>, %arg8: memref<32x32xf32, #tpu.memory_space<vmem>>, %arg9: memref<1x32xf32, #tpu.memory_space<vmem>>, %arg10: memref<1x8x32xf32, #tpu.memory_space<vmem>>, %arg11: memref<4x8x8xf32, #tpu.memory_space<vmem>>, %arg12: memref<4x8x1xf32, #tpu.memory_space<vmem>>, %arg13: memref<4x8x1xf32, #tpu.memory_space<vmem>>, %arg14: memref<4x8x8xf32, #tpu.memory_space<vmem>>) attributes {dimension_semantics = [#tpu.dimension_semantics<parallel>, #tpu.dimension_semantics<arbitrary>], iteration_bounds = array<i64: 2, 2>, scalar_prefetch = 0 : i64, scratch_operands = 4 : i64, tpu.core_type = #tpu.core_type<tc>, window_params = [{transform_indices = @transform_0, window_bounds = array<i64: 1, 8, 32>}, {transform_indices = @transform_1, window_bounds = array<i64: 1, 8, 32>}, {pipeline_mode = #tpu.pipeline_mode<synchronous>, transform_indices = @transform_2, window_bounds = array<i64: 32, 32>}, {pipeline_mode = #tpu.pipeline_mode<synchronous>, transform_indices = @transform_3, window_bounds = array<i64: 1, 32>}, {pipeline_mode = #tpu.pipeline_mode<synchronous>, transform_indices = @transform_4, window_bounds = array<i64: 32, 64>}, {pipeline_mode = #tpu.pipeline_mode<synchronous>, transform_indices = @transform_5, window_bounds = array<i64: 1, 32>}, {pipeline_mode = #tpu.pipeline_mode<synchronous>, transform_indices = @transform_6, window_bounds = array<i64: 32, 32>}, {pipeline_mode = #tpu.pipeline_mode<synchronous>, transform_indices = @transform_7, window_bounds = array<i64: 1, 32>}, {transform_indices = @transform_8, window_bounds = array<i64: 1, 8, 32>}]} {
    %c0_i32 = arith.constant 0 : i32
    %0 = arith.cmpi eq, %arg1, %c0_i32 : i32
    %1 = arith.extui %0 : i1 to i32
    %c0_i32_0 = arith.constant 0 : i32
    %2 = arith.cmpi ne, %1, %c0_i32_0 : i32
    scf.if %2 {
      %c0_33 = arith.constant 0 : index
      %c0_34 = arith.constant 0 : index
      %c0_35 = arith.constant 0 : index
      %43 = vector.load %arg2[%c0_33, %c0_34, %c0_35] : memref<1x8x32xf32, #tpu.memory_space<vmem>>, vector<1x8x32xf32>
      %44 = vector.shape_cast %43 : vector<1x8x32xf32> to vector<8x32xf32>
      %c0_36 = arith.constant 0 : index
      %c0_37 = arith.constant 0 : index
      %45 = vector.load %arg4[%c0_36, %c0_37] : memref<32x32xf32, #tpu.memory_space<vmem>>, vector<32x32xf32>
      %cst_38 = arith.constant dense<0.000000e+00> : vector<8x32xf32>
      %46 = tpu.matmul %44, %45, %cst_38 {dimension_numbers = #tpu.dot_dimension_numbers<[1], [0], [0], [1], [0, 0, 1, 1], [], []>} : vector<8x32xf32>, vector<32x32xf32>, vector<8x32xf32> -> vector<8x32xf32>
      %c0_39 = arith.constant 0 : index
      %c0_40 = arith.constant 0 : index
      %47 = vector.load %arg5[%c0_39, %c0_40] : memref<1x32xf32, #tpu.memory_space<vmem>>, vector<1x32xf32>
      %48 = vector.broadcast %47 : vector<1x32xf32> to vector<8x32xf32>
      %49 = arith.addf %46, %48 : vector<8x32xf32>
      %50 = vector.shape_cast %49 : vector<8x32xf32> to vector<8x4x8xf32>
      %51 = tpu.transpose %50, [1, 0, 2] : vector<8x4x8xf32> -> vector<4x8x8xf32>
      %c0_41 = arith.constant 0 : index
      %c0_42 = arith.constant 0 : index
      %c0_43 = arith.constant 0 : index
      %52 = vector.load %arg11[%c0_41, %c0_42, %c0_43] : memref<4x8x8xf32, #tpu.memory_space<vmem>>, vector<4x8x8xf32>
      tpu.vector_store %arg11[%c0_41, %c0_42, %c0_43], %51 {strides = array<i32>} : memref<4x8x8xf32, #tpu.memory_space<vmem>>, vector<4x8x8xf32>,
      %cst_44 = arith.constant 0xFF800000 : f32
      %53 = vector.broadcast %cst_44 : f32 to vector<4x8x1xf32>
      %c0_45 = arith.constant 0 : index
      %c0_46 = arith.constant 0 : index
      %c0_47 = arith.constant 0 : index
      %54 = vector.load %arg12[%c0_45, %c0_46, %c0_47] : memref<4x8x1xf32, #tpu.memory_space<vmem>>, vector<4x8x1xf32>
      tpu.vector_store %arg12[%c0_45, %c0_46, %c0_47], %53 {strides = array<i32>} : memref<4x8x1xf32, #tpu.memory_space<vmem>>, vector<4x8x1xf32>,
      %cst_48 = arith.constant 0.000000e+00 : f32
      %55 = vector.broadcast %cst_48 : f32 to vector<4x8x1xf32>
      %c0_49 = arith.constant 0 : index
      %c0_50 = arith.constant 0 : index
      %c0_51 = arith.constant 0 : index
      %56 = vector.load %arg13[%c0_49, %c0_50, %c0_51] : memref<4x8x1xf32, #tpu.memory_space<vmem>>, vector<4x8x1xf32>
      tpu.vector_store %arg13[%c0_49, %c0_50, %c0_51], %55 {strides = array<i32>} : memref<4x8x1xf32, #tpu.memory_space<vmem>>, vector<4x8x1xf32>,
      %cst_52 = arith.constant 0.000000e+00 : f32
      %57 = vector.broadcast %cst_52 : f32 to vector<4x8x8xf32>
      %c0_53 = arith.constant 0 : index
      %c0_54 = arith.constant 0 : index
      %c0_55 = arith.constant 0 : index
      %58 = vector.load %arg14[%c0_53, %c0_54, %c0_55] : memref<4x8x8xf32, #tpu.memory_space<vmem>>, vector<4x8x8xf32>
      tpu.vector_store %arg14[%c0_53, %c0_54, %c0_55], %57 {strides = array<i32>} : memref<4x8x8xf32, #tpu.memory_space<vmem>>, vector<4x8x8xf32>,
    } else {
    }
    %c0 = arith.constant 0 : index
    %c0_1 = arith.constant 0 : index
    %c0_2 = arith.constant 0 : index
    %3 = vector.load %arg3[%c0, %c0_1, %c0_2] : memref<1x8x32xf32, #tpu.memory_space<vmem>>, vector<1x8x32xf32>
    %4 = vector.shape_cast %3 : vector<1x8x32xf32> to vector<8x32xf32>
    %c0_3 = arith.constant 0 : index
    %c0_4 = arith.constant 0 : index
    %5 = vector.load %arg6[%c0_3, %c0_4] : memref<32x64xf32, #tpu.memory_space<vmem>>, vector<32x64xf32>
    %cst = arith.constant dense<0.000000e+00> : vector<8x64xf32>
    %6 = tpu.matmul %4, %5, %cst {dimension_numbers = #tpu.dot_dimension_numbers<[1], [0], [0], [1], [0, 0, 1, 1], [], []>} : vector<8x32xf32>, vector<32x64xf32>, vector<8x64xf32> -> vector<8x64xf32>
    %7 = vector.extract_strided_slice %6 {offsets = [0, 0], sizes = [8, 32], strides = [1, 1]} : vector<8x64xf32> to vector<8x32xf32>
    %8 = vector.shape_cast %7 : vector<8x32xf32> to vector<8x4x8xf32>
    %9 = tpu.transpose %8, [1, 0, 2] : vector<8x4x8xf32> -> vector<4x8x8xf32>
    %10 = vector.extract_strided_slice %6 {offsets = [0, 32], sizes = [8, 32], strides = [1, 1]} : vector<8x64xf32> to vector<8x32xf32>
    %c0_5 = arith.constant 0 : index
    %c0_6 = arith.constant 0 : index
    %11 = vector.load %arg7[%c0_5, %c0_6] : memref<1x32xf32, #tpu.memory_space<vmem>>, vector<1x32xf32>
    %12 = vector.broadcast %11 : vector<1x32xf32> to vector<8x32xf32>
    %13 = arith.addf %10, %12 : vector<8x32xf32>
    %14 = vector.shape_cast %13 : vector<8x32xf32> to vector<8x4x8xf32>
    %15 = tpu.transpose %14, [1, 0, 2] : vector<8x4x8xf32> -> vector<4x8x8xf32>
    %c0_7 = arith.constant 0 : index
    %c0_8 = arith.constant 0 : index
    %c0_9 = arith.constant 0 : index
    %16 = vector.load %arg11[%c0_7, %c0_8, %c0_9] : memref<4x8x8xf32, #tpu.memory_space<vmem>>, vector<4x8x8xf32>
    "tpu.trace_start"() <{level = 10 : i32, message = "hnd,hmd->hnm"}> : () -> ()
    %cst_10 = arith.constant dense<0.000000e+00> : vector<4x8x8xf32>
    %17 = tpu.matmul %16, %9, %cst_10 {dimension_numbers = #tpu.dot_dimension_numbers<[2], [2], [1], [1], [0, 0, 0, 1, 1, 1], [0], [0]>} : vector<4x8x8xf32>, vector<4x8x8xf32>, vector<4x8x8xf32> -> vector<4x8x8xf32>
    "tpu.trace_stop"() : () -> ()
    %c0_11 = arith.constant 0 : index
    %c0_12 = arith.constant 0 : index
    %c0_13 = arith.constant 0 : index
    %18 = vector.load %arg12[%c0_11, %c0_12, %c0_13] : memref<4x8x1xf32, #tpu.memory_space<vmem>>, vector<4x8x1xf32>
    %cst_14 = arith.constant dense<0xFF800000> : vector<4x8xf32>
    %19 = vector.multi_reduction <maximumf>, %17, %cst_14 [2] : vector<4x8x8xf32> to vector<4x8xf32>
    %20 = vector.shape_cast %19 : vector<4x8xf32> to vector<4x8x1xf32>
    %21 = arith.maximumf %18, %20 : vector<4x8x1xf32>
    %22 = arith.subf %18, %21 : vector<4x8x1xf32>
    %23 = math.exp %22 : vector<4x8x1xf32>
    %24 = vector.broadcast %21 : vector<4x8x1xf32> to vector<4x8x8xf32>
    %25 = arith.subf %17, %24 : vector<4x8x8xf32>
    %26 = math.exp %25 : vector<4x8x8xf32>
    %c0_15 = arith.constant 0 : index
    %c0_16 = arith.constant 0 : index
    %c0_17 = arith.constant 0 : index
    %27 = vector.load %arg13[%c0_15, %c0_16, %c0_17] : memref<4x8x1xf32, #tpu.memory_space<vmem>>, vector<4x8x1xf32>
    %28 = arith.mulf %23, %27 : vector<4x8x1xf32>
    %cst_18 = arith.constant dense<0.000000e+00> : vector<4x8xf32>
    %29 = vector.multi_reduction <add>, %26, %cst_18 [2] : vector<4x8x8xf32> to vector<4x8xf32>
    %30 = vector.shape_cast %29 : vector<4x8xf32> to vector<4x8x1xf32>
    %31 = arith.addf %28, %30 : vector<4x8x1xf32>
    %c0_19 = arith.constant 0 : index
    %c0_20 = arith.constant 0 : index
    %c0_21 = arith.constant 0 : index
    %32 = vector.load %arg13[%c0_19, %c0_20, %c0_21] : memref<4x8x1xf32, #tpu.memory_space<vmem>>, vector<4x8x1xf32>
    tpu.vector_store %arg13[%c0_19, %c0_20, %c0_21], %31 {strides = array<i32>} : memref<4x8x1xf32, #tpu.memory_space<vmem>>, vector<4x8x1xf32>,
    %c0_22 = arith.constant 0 : index
    %c0_23 = arith.constant 0 : index
    %c0_24 = arith.constant 0 : index
    %33 = vector.load %arg14[%c0_22, %c0_23, %c0_24] : memref<4x8x8xf32, #tpu.memory_space<vmem>>, vector<4x8x8xf32>
    %34 = vector.broadcast %23 : vector<4x8x1xf32> to vector<4x8x8xf32>
    %35 = arith.mulf %34, %33 : vector<4x8x8xf32>
    "tpu.trace_start"() <{level = 10 : i32, message = "hnm,hmd->hnd"}> : () -> ()
    %cst_25 = arith.constant dense<0.000000e+00> : vector<4x8x8xf32>
    %36 = tpu.matmul %26, %15, %cst_25 {dimension_numbers = #tpu.dot_dimension_numbers<[2], [1], [1], [2], [0, 0, 0, 1, 1, 2], [0], [0]>} : vector<4x8x8xf32>, vector<4x8x8xf32>, vector<4x8x8xf32> -> vector<4x8x8xf32>
    "tpu.trace_stop"() : () -> ()
    %37 = arith.addf %35, %36 : vector<4x8x8xf32>
    %c0_26 = arith.constant 0 : index
    %c0_27 = arith.constant 0 : index
    %c0_28 = arith.constant 0 : index
    %38 = vector.load %arg14[%c0_26, %c0_27, %c0_28] : memref<4x8x8xf32, #tpu.memory_space<vmem>>, vector<4x8x8xf32>
    tpu.vector_store %arg14[%c0_26, %c0_27, %c0_28], %37 {strides = array<i32>} : memref<4x8x8xf32, #tpu.memory_space<vmem>>, vector<4x8x8xf32>,
    %c0_29 = arith.constant 0 : index
    %c0_30 = arith.constant 0 : index
    %c0_31 = arith.constant 0 : index
    %39 = vector.load %arg12[%c0_29, %c0_30, %c0_31] : memref<4x8x1xf32, #tpu.memory_space<vmem>>, vector<4x8x1xf32>
    tpu.vector_store %arg12[%c0_29, %c0_30, %c0_31], %21 {strides = array<i32>} : memref<4x8x1xf32, #tpu.memory_space<vmem>>, vector<4x8x1xf32>,
    %c1_i32 = arith.constant 1 : i32
    %40 = arith.cmpi eq, %arg1, %c1_i32 : i32
    %41 = arith.extui %40 : i1 to i32
    %c0_i32_32 = arith.constant 0 : i32
    %42 = arith.cmpi ne, %41, %c0_i32_32 : i32
    scf.if %42 {
      %c0_33 = arith.constant 0 : index
      %c0_34 = arith.constant 0 : index
      %c0_35 = arith.constant 0 : index
      %43 = vector.load %arg14[%c0_33, %c0_34, %c0_35] : memref<4x8x8xf32, #tpu.memory_space<vmem>>, vector<4x8x8xf32>
      %c0_36 = arith.constant 0 : index
      %c0_37 = arith.constant 0 : index
      %c0_38 = arith.constant 0 : index
      %44 = vector.load %arg13[%c0_36, %c0_37, %c0_38] : memref<4x8x1xf32, #tpu.memory_space<vmem>>, vector<4x8x1xf32>
      %45 = tpu.reciprocal %44 {approx = true} : vector<4x8x1xf32> -> vector<4x8x1xf32>
      %46 = vector.broadcast %45 : vector<4x8x1xf32> to vector<4x8x8xf32>
      %47 = arith.mulf %43, %46 : vector<4x8x8xf32>
      %48 = tpu.transpose %47, [1, 0, 2] : vector<4x8x8xf32> -> vector<8x4x8xf32>
      %49 = vector.shape_cast %48 : vector<8x4x8xf32> to vector<8x32xf32>
      %c0_39 = arith.constant 0 : index
      %c0_40 = arith.constant 0 : index
      %50 = vector.load %arg8[%c0_39, %c0_40] : memref<32x32xf32, #tpu.memory_space<vmem>>, vector<32x32xf32>
      %cst_41 = arith.constant dense<0.000000e+00> : vector<8x32xf32>
      %51 = tpu.matmul %49, %50, %cst_41 {dimension_numbers = #tpu.dot_dimension_numbers<[1], [0], [0], [1], [0, 0, 1, 1], [], []>} : vector<8x32xf32>, vector<32x32xf32>, vector<8x32xf32> -> vector<8x32xf32>
      %c0_42 = arith.constant 0 : index
      %c0_43 = arith.constant 0 : index
      %52 = vector.load %arg9[%c0_42, %c0_43] : memref<1x32xf32, #tpu.memory_space<vmem>>, vector<1x32xf32>
      %53 = vector.broadcast %52 : vector<1x32xf32> to vector<8x32xf32>
      %54 = arith.addf %51, %53 : vector<8x32xf32>
      %c0_44 = arith.constant 0 : index
      %c0_45 = arith.constant 0 : index
      %c0_46 = arith.constant 0 : index
      %55 = vector.load %arg10[%c0_44, %c0_45, %c0_46] : memref<1x8x32xf32, #tpu.memory_space<vmem>>, vector<1x8x32xf32>
      %56 = vector.shape_cast %55 : vector<1x8x32xf32> to vector<8x32xf32>
      %57 = vector.shape_cast %54 : vector<8x32xf32> to vector<1x8x32xf32>
      tpu.vector_store %arg10[%c0_44, %c0_45, %c0_46], %57 {strides = array<i32>} : memref<1x8x32xf32, #tpu.memory_space<vmem>>, vector<1x8x32xf32>,
    } else {
    }
    return
  }
  func.func @transform_0(%arg0: i32, %arg1: i32) -> (i32, i32, i32) {
    %c0_i32 = arith.constant 0 : i32
    %c0_i32_0 = arith.constant 0 : i32
    %c0_i32_1 = arith.constant 0 : i32
    return %arg0, %c0_i32, %c0_i32_0 : i32, i32, i32
  }
  func.func @transform_1(%arg0: i32, %arg1: i32) -> (i32, i32, i32) {
    %c0_i32 = arith.constant 0 : i32
    %c0_i32_0 = arith.constant 0 : i32
    return %arg0, %arg1, %c0_i32 : i32, i32, i32
  }
  func.func @transform_2(%arg0: i32, %arg1: i32) -> (i32, i32) {
    %c0_i32 = arith.constant 0 : i32
    %c0_i32_0 = arith.constant 0 : i32
    %c0_i32_1 = arith.constant 0 : i32
    return %c0_i32, %c0_i32_0 : i32, i32
  }
  func.func @transform_3(%arg0: i32, %arg1: i32) -> (i32, i32) {
    %c0_i32 = arith.constant 0 : i32
    %c0_i32_0 = arith.constant 0 : i32
    %c0_i32_1 = arith.constant 0 : i32
    return %c0_i32, %c0_i32_0 : i32, i32
  }
  func.func @transform_4(%arg0: i32, %arg1: i32) -> (i32, i32) {
    %c0_i32 = arith.constant 0 : i32
    %c0_i32_0 = arith.constant 0 : i32
    %c0_i32_1 = arith.constant 0 : i32
    return %c0_i32, %c0_i32_0 : i32, i32
  }
  func.func @transform_5(%arg0: i32, %arg1: i32) -> (i32, i32) {
    %c0_i32 = arith.constant 0 : i32
    %c0_i32_0 = arith.constant 0 : i32
    %c0_i32_1 = arith.constant 0 : i32
    return %c0_i32, %c0_i32_0 : i32, i32
  }
  func.func @transform_6(%arg0: i32, %arg1: i32) -> (i32, i32) {
    %c0_i32 = arith.constant 0 : i32
    %c0_i32_0 = arith.constant 0 : i32
    %c0_i32_1 = arith.constant 0 : i32
    return %c0_i32, %c0_i32_0 : i32, i32
  }
  func.func @transform_7(%arg0: i32, %arg1: i32) -> (i32, i32) {
    %c0_i32 = arith.constant 0 : i32
    %c0_i32_0 = arith.constant 0 : i32
    %c0_i32_1 = arith.constant 0 : i32
    return %c0_i32, %c0_i32_0 : i32, i32
  }
  func.func @transform_8(%arg0: i32, %arg1: i32) -> (i32, i32, i32) {
    %c0_i32 = arith.constant 0 : i32
    %c0_i32_0 = arith.constant 0 : i32
    %c0_i32_1 = arith.constant 0 : i32
    return %arg0, %c0_i32, %c0_i32_0 : i32, i32, i32
  }
}

module attributes {stable_mosaic.version = 11 : i64} {
  func.func @eva_cross_attention_kernel(%arg0: i32, %arg1: i32, %arg2: memref<1x8x32xf32, #tpu.memory_space<vmem>>, %arg3: memref<1x8x32xf32, #tpu.memory_space<vmem>>, %arg4: memref<32x32xf32, #tpu.memory_space<vmem>>, %arg5: memref<1x32xf32, #tpu.memory_space<vmem>>, %arg6: memref<32x64xf32, #tpu.memory_space<vmem>>, %arg7: memref<1x32xf32, #tpu.memory_space<vmem>>, %arg8: memref<32x32xf32, #tpu.memory_space<vmem>>, %arg9: memref<1x32xf32, #tpu.memory_space<vmem>>, %arg10: memref<1x8x32xf32, #tpu.memory_space<vmem>>, %arg11: memref<4x8x8xf32, #tpu.memory_space<vmem>>, %arg12: memref<4x8x1xf32, #tpu.memory_space<vmem>>, %arg13: memref<4x8x1xf32, #tpu.memory_space<vmem>>, %arg14: memref<4x8x8xf32, #tpu.memory_space<vmem>>) attributes {dimension_semantics = [#tpu.dimension_semantics<parallel>, #tpu.dimension_semantics<arbitrary>], iteration_bounds = array<i64: 2, 2>, scalar_prefetch = 0 : i64, scratch_operands = 4 : i64, tpu.core_type = #tpu.core_type<tc>, window_params = [{transform_indices = @transform_0, window_bounds = array<i64: 1, 8, 32>}, {transform_indices = @transform_1, window_bounds = array<i64: 1, 8, 32>}, {pipeline_mode = #tpu.pipeline_mode<synchronous>, transform_indices = @transform_2, window_bounds = array<i64: 32, 32>}, {pipeline_mode = #tpu.pipeline_mode<synchronous>, transform_indices = @transform_3, window_bounds = array<i64: 1, 32>}, {pipeline_mode = #tpu.pipeline_mode<synchronous>, transform_indices = @transform_4, window_bounds = array<i64: 32, 64>}, {pipeline_mode = #tpu.pipeline_mode<synchronous>, transform_indices = @transform_5, window_bounds = array<i64: 1, 32>}, {pipeline_mode = #tpu.pipeline_mode<synchronous>, transform_indices = @transform_6, window_bounds = array<i64: 32, 32>}, {pipeline_mode = #tpu.pipeline_mode<synchronous>, transform_indices = @transform_7, window_bounds = array<i64: 1, 32>}, {transform_indices = @transform_8, window_bounds = array<i64: 1, 8, 32>}]} {
    %c0_i32 = arith.constant 0 : i32
    %0 = arith.cmpi eq, %arg1, %c0_i32 : i32
    %1 = arith.extui %0 : i1 to i32
    %c0_i32_0 = arith.constant 0 : i32
    %2 = arith.cmpi ne, %1, %c0_i32_0 : i32
    scf.if %2 {
      %c0_33 = arith.constant 0 : index
      %c0_34 = arith.constant 0 : index
      %c0_35 = arith.constant 0 : index
      %43 = vector.load %arg2[%c0_33, %c0_34, %c0_35] : memref<1x8x32xf32, #tpu.memory_space<vmem>>, vector<1x8x32xf32>
      %44 = vector.shape_cast %43 : vector<1x8x32xf32> to vector<8x32xf32>
      %c0_36 = arith.constant 0 : index
      %c0_37 = arith.constant 0 : index
      %45 = vector.load %arg4[%c0_36, %c0_37] : memref<32x32xf32, #tpu.memory_space<vmem>>, vector<32x32xf32>
      %cst_38 = arith.constant dense<0.000000e+00> : vector<8x32xf32>
      %46 = tpu.matmul %44, %45, %cst_38 {dimension_numbers = #tpu.dot_dimension_numbers<[1], [0], [0], [1], [0, 0, 1, 1], [], []>} : vector<8x32xf32>, vector<32x32xf32>, vector<8x32xf32> -> vector<8x32xf32>
      %c0_39 = arith.constant 0 : index
      %c0_40 = arith.constant 0 : index
      %47 = vector.load %arg5[%c0_39, %c0_40] : memref<1x32xf32, #tpu.memory_space<vmem>>, vector<1x32xf32>
      %48 = vector.broadcast %47 : vector<1x32xf32> to vector<8x32xf32>
      %49 = arith.addf %46, %48 : vector<8x32xf32>
      %50 = vector.shape_cast %49 : vector<8x32xf32> to vector<8x4x8xf32>
      %51 = tpu.transpose %50, [1, 0, 2] : vector<8x4x8xf32> -> vector<4x8x8xf32>
      %c0_41 = arith.constant 0 : index
      %c0_42 = arith.constant 0 : index
      %c0_43 = arith.constant 0 : index
      %52 = vector.load %arg11[%c0_41, %c0_42, %c0_43] : memref<4x8x8xf32, #tpu.memory_space<vmem>>, vector<4x8x8xf32>
      tpu.vector_store %arg11[%c0_41, %c0_42, %c0_43], %51 {strides = array<i32>} : memref<4x8x8xf32, #tpu.memory_space<vmem>>, vector<4x8x8xf32>,
      %cst_44 = arith.constant 0xFF800000 : f32
      %53 = vector.broadcast %cst_44 : f32 to vector<4x8x1xf32>
      %c0_45 = arith.constant 0 : index
      %c0_46 = arith.constant 0 : index
      %c0_47 = arith.constant 0 : index
      %54 = vector.load %arg12[%c0_45, %c0_46, %c0_47] : memref<4x8x1xf32, #tpu.memory_space<vmem>>, vector<4x8x1xf32>
      tpu.vector_store %arg12[%c0_45, %c0_46, %c0_47], %53 {strides = array<i32>} : memref<4x8x1xf32, #tpu.memory_space<vmem>>, vector<4x8x1xf32>,
      %cst_48 = arith.constant 0.000000e+00 : f32
      %55 = vector.broadcast %cst_48 : f32 to vector<4x8x1xf32>
      %c0_49 = arith.constant 0 : index
      %c0_50 = arith.constant 0 : index
      %c0_51 = arith.constant 0 : index
      %56 = vector.load %arg13[%c0_49, %c0_50, %c0_51] : memref<4x8x1xf32, #tpu.memory_space<vmem>>, vector<4x8x1xf32>
      tpu.vector_store %arg13[%c0_49, %c0_50, %c0_51], %55 {strides = array<i32>} : memref<4x8x1xf32, #tpu.memory_space<vmem>>, vector<4x8x1xf32>,
      %cst_52 = arith.constant 0.000000e+00 : f32
      %57 = vector.broadcast %cst_52 : f32 to vector<4x8x8xf32>
      %c0_53 = arith.constant 0 : index
      %c0_54 = arith.constant 0 : index
      %c0_55 = arith.constant 0 : index
      %58 = vector.load %arg14[%c0_53, %c0_54, %c0_55] : memref<4x8x8xf32, #tpu.memory_space<vmem>>, vector<4x8x8xf32>
      tpu.vector_store %arg14[%c0_53, %c0_54, %c0_55], %57 {strides = array<i32>} : memref<4x8x8xf32, #tpu.memory_space<vmem>>, vector<4x8x8xf32>,
    } else {
    }
    %c0 = arith.constant 0 : index
    %c0_1 = arith.constant 0 : index
    %c0_2 = arith.constant 0 : index
    %3 = vector.load %arg3[%c0, %c0_1, %c0_2] : memref<1x8x32xf32, #tpu.memory_space<vmem>>, vector<1x8x32xf32>
    %4 = vector.shape_cast %3 : vector<1x8x32xf32> to vector<8x32xf32>
    %c0_3 = arith.constant 0 : index
    %c0_4 = arith.constant 0 : index
    %5 = vector.load %arg6[%c0_3, %c0_4] : memref<32x64xf32, #tpu.memory_space<vmem>>, vector<32x64xf32>
    %cst = arith.constant dense<0.000000e+00> : vector<8x64xf32>
    %6 = tpu.matmul %4, %5, %cst {dimension_numbers = #tpu.dot_dimension_numbers<[1], [0], [0], [1], [0, 0, 1, 1], [], []>} : vector<8x32xf32>, vector<32x64xf32>, vector<8x64xf32> -> vector<8x64xf32>
    %7 = vector.extract_strided_slice %6 {offsets = [0, 0], sizes = [8, 32], strides = [1, 1]} : vector<8x64xf32> to vector<8x32xf32>
    %8 = vector.shape_cast %7 : vector<8x32xf32> to vector<8x4x8xf32>
    %9 = tpu.transpose %8, [1, 0, 2] : vector<8x4x8xf32> -> vector<4x8x8xf32>
    %10 = vector.extract_strided_slice %6 {offsets = [0, 32], sizes = [8, 32], strides = [1, 1]} : vector<8x64xf32> to vector<8x32xf32>
    %c0_5 = arith.constant 0 : index
    %c0_6 = arith.constant 0 : index
    %11 = vector.load %arg7[%c0_5, %c0_6] : memref<1x32xf32, #tpu.memory_space<vmem>>, vector<1x32xf32>
    %12 = vector.broadcast %11 : vector<1x32xf32> to vector<8x32xf32>
    %13 = arith.addf %10, %12 : vector<8x32xf32>
    %14 = vector.shape_cast %13 : vector<8x32xf32> to vector<8x4x8xf32>
    %15 = tpu.transpose %14, [1, 0, 2] : vector<8x4x8xf32> -> vector<4x8x8xf32>
    %c0_7 = arith.constant 0 : index
    %c0_8 = arith.constant 0 : index
    %c0_9 = arith.constant 0 : index
    %16 = vector.load %arg11[%c0_7, %c0_8, %c0_9] : memref<4x8x8xf32, #tpu.memory_space<vmem>>, vector<4x8x8xf32>
    "tpu.trace_start"() <{level = 10 : i32, message = "hnd,hmd->hnm"}> : () -> ()
    %cst_10 = arith.constant dense<0.000000e+00> : vector<4x8x8xf32>
    %17 = tpu.matmul %16, %9, %cst_10 {dimension_numbers = #tpu.dot_dimension_numbers<[2], [2], [1], [1], [0, 0, 0, 1, 1, 1], [0], [0]>} : vector<4x8x8xf32>, vector<4x8x8xf32>, vector<4x8x8xf32> -> vector<4x8x8xf32>
    "tpu.trace_stop"() : () -> ()
    %c0_11 = arith.constant 0 : index
    %c0_12 = arith.constant 0 : index
    %c0_13 = arith.constant 0 : index
    %18 = vector.load %arg12[%c0_11, %c0_12, %c0_13] : memref<4x8x1xf32, #tpu.memory_space<vmem>>, vector<4x8x1xf32>
    %cst_14 = arith.constant dense<0xFF800000> : vector<4x8xf32>
    %19 = vector.multi_reduction <maximumf>, %17, %cst_14 [2] : vector<4x8x8xf32> to vector<4x8xf32>
    %20 = vector.shape_cast %19 : vector<4x8xf32> to vector<4x8x1xf32>
    %21 = arith.maximumf %18, %20 : vector<4x8x1xf32>
    %22 = arith.subf %18, %21 : vector<4x8x1xf32>
    %23 = math.exp %22 : vector<4x8x1xf32>
    %24 = vector.broadcast %21 : vector<4x8x1xf32> to vector<4x8x8xf32>
    %25 = arith.subf %17, %24 : vector<4x8x8xf32>
    %26 = math.exp %25 : vector<4x8x8xf32>
    %c0_15 = arith.constant 0 : index
    %c0_16 = arith.constant 0 : index
    %c0_17 = arith.constant 0 : index
    %27 = vector.load %arg13[%c0_15, %c0_16, %c0_17] : memref<4x8x1xf32, #tpu.memory_space<vmem>>, vector<4x8x1xf32>
    %28 = arith.mulf %23, %27 : vector<4x8x1xf32>
    %cst_18 = arith.constant dense<0.000000e+00> : vector<4x8xf32>
    %29 = vector.multi_reduction <add>, %26, %cst_18 [2] : vector<4x8x8xf32> to vector<4x8xf32>
    %30 = vector.shape_cast %29 : vector<4x8xf32> to vector<4x8x1xf32>
    %31 = arith.addf %28, %30 : vector<4x8x1xf32>
    %c0_19 = arith.constant 0 : index
    %c0_20 = arith.constant 0 : index
    %c0_21 = arith.constant 0 : index
    %32 = vector.load %arg13[%c0_19, %c0_20, %c0_21] : memref<4x8x1xf32, #tpu.memory_space<vmem>>, vector<4x8x1xf32>
    tpu.vector_store %arg13[%c0_19, %c0_20, %c0_21], %31 {strides = array<i32>} : memref<4x8x1xf32, #tpu.memory_space<vmem>>, vector<4x8x1xf32>,
    %c0_22 = arith.constant 0 : index
    %c0_23 = arith.constant 0 : index
    %c0_24 = arith.constant 0 : index
    %33 = vector.load %arg14[%c0_22, %c0_23, %c0_24] : memref<4x8x8xf32, #tpu.memory_space<vmem>>, vector<4x8x8xf32>
    %34 = vector.broadcast %23 : vector<4x8x1xf32> to vector<4x8x8xf32>
    %35 = arith.mulf %34, %33 : vector<4x8x8xf32>
    "tpu.trace_start"() <{level = 10 : i32, message = "hnm,hmd->hnd"}> : () -> ()
    %cst_25 = arith.constant dense<0.000000e+00> : vector<4x8x8xf32>
    %36 = tpu.matmul %26, %15, %cst_25 {dimension_numbers = #tpu.dot_dimension_numbers<[2], [1], [1], [2], [0, 0, 0, 1, 1, 2], [0], [0]>} : vector<4x8x8xf32>, vector<4x8x8xf32>, vector<4x8x8xf32> -> vector<4x8x8xf32>
    "tpu.trace_stop"() : () -> ()
    %37 = arith.addf %35, %36 : vector<4x8x8xf32>
    %c0_26 = arith.constant 0 : index
    %c0_27 = arith.constant 0 : index
    %c0_28 = arith.constant 0 : index
    %38 = vector.load %arg14[%c0_26, %c0_27, %c0_28] : memref<4x8x8xf32, #tpu.memory_space<vmem>>, vector<4x8x8xf32>
    tpu.vector_store %arg14[%c0_26, %c0_27, %c0_28], %37 {strides = array<i32>} : memref<4x8x8xf32, #tpu.memory_space<vmem>>, vector<4x8x8xf32>,
    %c0_29 = arith.constant 0 : index
    %c0_30 = arith.constant 0 : index
    %c0_31 = arith.constant 0 : index
    %39 = vector.load %arg12[%c0_29, %c0_30, %c0_31] : memref<4x8x1xf32, #tpu.memory_space<vmem>>, vector<4x8x1xf32>
    tpu.vector_store %arg12[%c0_29, %c0_30, %c0_31], %21 {strides = array<i32>} : memref<4x8x1xf32, #tpu.memory_space<vmem>>, vector<4x8x1xf32>,
    %c1_i32 = arith.constant 1 : i32
    %40 = arith.cmpi eq, %arg1, %c1_i32 : i32
    %41 = arith.extui %40 : i1 to i32
    %c0_i32_32 = arith.constant 0 : i32
    %42 = arith.cmpi ne, %41, %c0_i32_32 : i32
    scf.if %42 {
      %c0_33 = arith.constant 0 : index
      %c0_34 = arith.constant 0 : index
      %c0_35 = arith.constant 0 : index
      %43 = vector.load %arg14[%c0_33, %c0_34, %c0_35] : memref<4x8x8xf32, #tpu.memory_space<vmem>>, vector<4x8x8xf32>
      %c0_36 = arith.constant 0 : index
      %c0_37 = arith.constant 0 : index
      %c0_38 = arith.constant 0 : index
      %44 = vector.load %arg13[%c0_36, %c0_37, %c0_38] : memref<4x8x1xf32, #tpu.memory_space<vmem>>, vector<4x8x1xf32>
      %45 = tpu.reciprocal %44 {approx = true} : vector<4x8x1xf32> -> vector<4x8x1xf32>
      %46 = vector.broadcast %45 : vector<4x8x1xf32> to vector<4x8x8xf32>
      %47 = arith.mulf %43, %46 : vector<4x8x8xf32>
      %48 = tpu.transpose %47, [1, 0, 2] : vector<4x8x8xf32> -> vector<8x4x8xf32>
      %49 = vector.shape_cast %48 : vector<8x4x8xf32> to vector<8x32xf32>
      %c0_39 = arith.constant 0 : index
      %c0_40 = arith.constant 0 : index
      %50 = vector.load %arg8[%c0_39, %c0_40] : memref<32x32xf32, #tpu.memory_space<vmem>>, vector<32x32xf32>
      %cst_41 = arith.constant dense<0.000000e+00> : vector<8x32xf32>
      %51 = tpu.matmul %49, %50, %cst_41 {dimension_numbers = #tpu.dot_dimension_numbers<[1], [0], [0], [1], [0, 0, 1, 1], [], []>} : vector<8x32xf32>, vector<32x32xf32>, vector<8x32xf32> -> vector<8x32xf32>
      %c0_42 = arith.constant 0 : index
      %c0_43 = arith.constant 0 : index
      %52 = vector.load %arg9[%c0_42, %c0_43] : memref<1x32xf32, #tpu.memory_space<vmem>>, vector<1x32xf32>
      %53 = vector.broadcast %52 : vector<1x32xf32> to vector<8x32xf32>
      %54 = arith.addf %51, %53 : vector<8x32xf32>
      %c0_44 = arith.constant 0 : index
      %c0_45 = arith.constant 0 : index
      %c0_46 = arith.constant 0 : index
      %55 = vector.load %arg10[%c0_44, %c0_45, %c0_46] : memref<1x8x32xf32, #tpu.memory_space<vmem>>, vector<1x8x32xf32>
      %56 = vector.shape_cast %55 : vector<1x8x32xf32> to vector<8x32xf32>
      %57 = vector.shape_cast %54 : vector<8x32xf32> to vector<1x8x32xf32>
      tpu.vector_store %arg10[%c0_44, %c0_45, %c0_46], %57 {strides = array<i32>} : memref<1x8x32xf32, #tpu.memory_space<vmem>>, vector<1x8x32xf32>,
    } else {
    }
    return
  }
  func.func @transform_0(%arg0: i32, %arg1: i32) -> (i32, i32, i32) {
    %c0_i32 = arith.constant 0 : i32
    %c0_i32_0 = arith.constant 0 : i32
    %c0_i32_1 = arith.constant 0 : i32
    return %arg0, %c0_i32, %c0_i32_0 : i32, i32, i32
  }
  func.func @transform_1(%arg0: i32, %arg1: i32) -> (i32, i32, i32) {
    %c0_i32 = arith.constant 0 : i32
    %c0_i32_0 = arith.constant 0 : i32
    return %arg0, %arg1, %c0_i32 : i32, i32, i32
  }
  func.func @transform_2(%arg0: i32, %arg1: i32) -> (i32, i32) {
    %c0_i32 = arith.constant 0 : i32
    %c0_i32_0 = arith.constant 0 : i32
    %c0_i32_1 = arith.constant 0 : i32
    return %c0_i32, %c0_i32_0 : i32, i32
  }
  func.func @transform_3(%arg0: i32, %arg1: i32) -> (i32, i32) {
    %c0_i32 = arith.constant 0 : i32
    %c0_i32_0 = arith.constant 0 : i32
    %c0_i32_1 = arith.constant 0 : i32
    return %c0_i32, %c0_i32_0 : i32, i32
  }
  func.func @transform_4(%arg0: i32, %arg1: i32) -> (i32, i32) {
    %c0_i32 = arith.constant 0 : i32
    %c0_i32_0 = arith.constant 0 : i32
    %c0_i32_1 = arith.constant 0 : i32
    return %c0_i32, %c0_i32_0 : i32, i32
  }
  func.func @transform_5(%arg0: i32, %arg1: i32) -> (i32, i32) {
    %c0_i32 = arith.constant 0 : i32
    %c0_i32_0 = arith.constant 0 : i32
    %c0_i32_1 = arith.constant 0 : i32
    return %c0_i32, %c0_i32_0 : i32, i32
  }
  func.func @transform_6(%arg0: i32, %arg1: i32) -> (i32, i32) {
    %c0_i32 = arith.constant 0 : i32
    %c0_i32_0 = arith.constant 0 : i32
    %c0_i32_1 = arith.constant 0 : i32
    return %c0_i32, %c0_i32_0 : i32, i32
  }
  func.func @transform_7(%arg0: i32, %arg1: i32) -> (i32, i32) {
    %c0_i32 = arith.constant 0 : i32
    %c0_i32_0 = arith.constant 0 : i32
    %c0_i32_1 = arith.constant 0 : i32
    return %c0_i32, %c0_i32_0 : i32, i32
  }
  func.func @transform_8(%arg0: i32, %arg1: i32) -> (i32, i32, i32) {
    %c0_i32 = arith.constant 0 : i32
    %c0_i32_0 = arith.constant 0 : i32
    %c0_i32_1 = arith.constant 0 : i32
    return %arg0, %c0_i32, %c0_i32_0 : i32, i32, i32
  }
}

</mosaic_0001>

<llo_original>
// kernel: tpu_custom_call.1
$region0: #{tpu_custom_call.1}
  #allocation0 [shape = 'u32[]', space=smem, size = 0x4, offset = 0x4, fixed_abs, tag = 'smem constant byte address 0x4 - core index']
  #allocation1 [shape = 'u32[144,128]{1,0:T(1,128)}', space=vmem, size = 0x12000, scoped, tag = 'internal scratch']
  #allocation2 [shape = 'f32[4,8,8]{2,1,0:T(8,128)}', space=vmem, size = 0x4000, scoped, tag = 'scratch operand']
  #allocation3 [shape = 'f32[4,8,1]{2,1,0:T(8,128)}', space=vmem, size = 0x4000, scoped, tag = 'scratch operand']
  #allocation4 [shape = 'f32[4,8,1]{2,1,0:T(8,128)}', space=vmem, size = 0x4000, scoped, tag = 'scratch operand']
  #allocation5 [shape = 'f32[4,8,8]{2,1,0:T(8,128)}', space=vmem, size = 0x4000, scoped, tag = 'scratch operand']
  %s0 = inlined_call_operand.hbm [shape: f32[2,8,32], index: 0, kind: input, shape index: {}]
  %s1 = inlined_call_operand.hbm [shape: f32[2,16,32], index: 1, kind: input, shape index: {}]
  %s2 = inlined_call_operand.hbm [shape: f32[32,32], index: 2, kind: input, shape index: {}]
  %s3 = inlined_call_operand.vmem [shape: f32[1,32], index: 3, kind: input, shape index: {}]
  %s4 = inlined_call_operand.hbm [shape: f32[32,64], index: 4, kind: input, shape index: {}]
  %s5 = inlined_call_operand.vmem [shape: f32[1,32], index: 5, kind: input, shape index: {}]
  %s6 = inlined_call_operand.hbm [shape: f32[32,32], index: 6, kind: input, shape index: {}]
  %s7 = inlined_call_operand.vmem [shape: f32[1,32], index: 7, kind: input, shape index: {}]
  %s8 = inlined_call_operand.hbm [shape: f32[2,8,32], index: 8, kind: output, shape index: {}]
  %s9 = sld [smem:[#allocation0]]
  $region93: #{tpu_custom_call.1} parent=0
    _
  %s11 = ssub.s32 1, %s9
  %s12 = scalar_select 0, %s11, %s9
  $region1: #{tpu_custom_call.1} parent=0
    #allocation6 [shape = 'u8[8192]{0}', space=vmem, size = 0x2000, scoped, tag = 'input window, operand 0']
    #allocation7 [shape = 's32[2]{0}', space=sflag, size = 0x8, scoped, tag = 'scoped memory for tpu_custom_call.1']
    #allocation8 [shape = 's32[2]{0}', space=sflag, size = 0x8, scoped, tag = 'scoped memory for tpu_custom_call.1']
    #allocation9 [shape = 'u8[8192]{0}', space=vmem, size = 0x2000, scoped, tag = 'input window, operand 1']
    #allocation10 [shape = 's32[2]{0}', space=sflag, size = 0x8, scoped, tag = 'scoped memory for tpu_custom_call.1']
    #allocation11 [shape = 'u8[16384]{0}', space=vmem, size = 0x4000, scoped, tag = 'input window, operand 2, single buffered']
    #allocation12 [shape = 'u8[16384]{0}', space=vmem, size = 0x4000, scoped, tag = 'input window, operand 4, single buffered']
    #allocation13 [shape = 's32[1]{0}', space=sflag, size = 0x4, scoped, tag = 'scoped memory for tpu_custom_call.1']
    #allocation14 [shape = 'u8[16384]{0}', space=vmem, size = 0x4000, scoped, tag = 'input window, operand 6, single buffered']
    #allocation15 [shape = 'u8[8192]{0}', space=vmem, size = 0x2000, scoped, tag = 'output window, operand 0']
    %13 = vsyncpa [#allocation7], 0
    %s14 = scalar_lea.sflag [#allocation7], 1
    %15 = vsyncpa %s14, 0
    %16 = vsyncpa [#allocation10], 0
    %s17 = scalar_lea.sflag [#allocation10], 1
    %18 = vsyncpa %s17, 0
    %19 = vsyncpa [#allocation13], 0
    %20 = vsyncpa [#allocation8], 0
    %s21 = scalar_lea.sflag [#allocation8], 1
    %22 = vsyncpa %s21, 0
    loop: start=0, step=1, limit=6
    $region2: #{tpu_custom_call.1} parent=1 // loop_pre_header
      _
    $region3: #{tpu_custom_call.1} parent=1 // loop_header
      %s24 = sphi 0, %s28
      %p25 = scmp.ge.s32.totalorder %s24, 6
      %s31 = sphi 0, %s43
      %s32 = sphi 0, %s39
      %s33 = sphi 0, %s31
      %s34 = sphi 0, %s32
      %s35 = sphi 0, %s33
      %s36 = sphi 0, %s34
      %s46 = sphi 0, %s48
      %s49 = sphi 0, %s46
      %s50 = sphi 0, %s49
      %s66 = sphi 0, %s50
      %s74 = sphi 0, %s76
      %s77 = sphi 0, %s74
      %s78 = sphi 0, %s77
      %s94 = sphi 0, %s78
      %s98 = sphi 0, %s98
      %s100 = sphi 0, %s98
      %s101 = sphi 0, %s100
      %s115 = sphi 0, %s101
      %s119 = sphi 0, %s119
      %s121 = sphi 0, %s119
      %s122 = sphi 0, %s121
      %s136 = sphi 0, %s122
      %s140 = sphi 0, %s140
      %s142 = sphi 0, %s140
      %s143 = sphi 0, %s142
      %s157 = sphi 0, %s143
      %s161 = sphi 0, %s161
      %s163 = sphi 0, %s161
      %s164 = sphi 0, %s163
      %s178 = sphi 0, %s164
      %s182 = sphi 0, %s182
      %s184 = sphi 0, %s182
      %s185 = sphi 0, %s184
      %s199 = sphi 0, %s185
      %s203 = sphi 0, %s203
      %s205 = sphi 0, %s203
      %s206 = sphi 0, %s205
      %s220 = sphi 0, %s206
      %s226 = sphi 0, %s228
      %s229 = sphi 0, %s226
      %s230 = sphi 0, %s229
      %s246 = sphi 0, %s230
    $region4: #{tpu_custom_call.1} parent=1 // loop_header_branch
      %27 = sbr.rel (%p25) target = $region8
    $region5: #{tpu_custom_call.1} parent=1 // loop_body
      %s29 = ssub.s32 %s24, 1
      %s30 = ssub.s32 %s24, 2
      %s37 = sadd.s32 1, %s32
      %p38 = scmp.ge.s32.totalorder %s37, 2
      %s39 = scalar_select %p38, 0, %s37
      %s40 = sadd.s32 1, %s31
      %s41 = scalar_select %p38, %s40, %s31
      %p42 = scmp.ge.s32.totalorder %s41, 2
      %s43 = scalar_select %p42, 0, %s41
      %s44 = ssub.s32 %s31, %s43
      %p45 = scmp.eq.s32.totalorder %s44, 0
      %s47 = sadd.s32 %s46, 1
      %s48 = scalar_select %p45, %s46, %s47
      %p51 = pneg %p45
      %p52 = scmp.eq.s32.totalorder %s24, 3
      %p53 = por %p51, %p52
      %p54 = scmp.ne.s32.totalorder %s46, %s49
      %p55 = scmp.eq.s32.totalorder %s24, 0
      %p56 = por %p54, %p55
      %p57 = scmp.ne.s32.totalorder %s46, %s49
      %p58 = scmp.eq.s32.totalorder %s29, 3
      %p59 = por %p57, %p58
      %p60 = scmp.ne.s32.totalorder %s49, %s50
      %p61 = scmp.eq.s32.totalorder %s29, 0
      %p62 = por %p60, %p61
      %p63 = scmp.ne.s32.totalorder %s49, %s50
      %p64 = scmp.eq.s32.totalorder %s30, 3
      %p65 = por %p63, %p64
      %p67 = scmp.ne.s32.totalorder %s50, %s66
      %p68 = scmp.eq.s32.totalorder %s30, 0
      %p69 = por %p67, %p68
      %s70 = ssub.s32 %s31, %s43
      %s71 = ssub.s32 %s32, %s39
      %s72 = sor.u32 %s70, %s71
      %p73 = scmp.eq.s32.totalorder %s72, 0
      %s75 = sadd.s32 %s74, 1
      %s76 = scalar_select %p73, %s74, %s75
      %p79 = pneg %p73
      %p80 = scmp.eq.s32.totalorder %s24, 3
      %p81 = por %p79, %p80
      %p82 = scmp.ne.s32.totalorder %s74, %s77
      %p83 = scmp.eq.s32.totalorder %s24, 0
      %p84 = por %p82, %p83
      %p85 = scmp.ne.s32.totalorder %s74, %s77
      %p86 = scmp.eq.s32.totalorder %s29, 3
      %p87 = por %p85, %p86
      %p88 = scmp.ne.s32.totalorder %s77, %s78
      %p89 = scmp.eq.s32.totalorder %s29, 0
      %p90 = por %p88, %p89
      %p91 = scmp.ne.s32.totalorder %s77, %s78
      %p92 = scmp.eq.s32.totalorder %s30, 3
      %p93 = por %p91, %p92
      %p95 = scmp.ne.s32.totalorder %s78, %s94
      %p96 = scmp.eq.s32.totalorder %s30, 0
      %p97 = por %p95, %p96
      %s99 = sadd.s32 %s98, 1
      %p102 = scmp.eq.s32.totalorder %s24, 3
      %p103 = scmp.ne.s32.totalorder %s98, %s100
      %p104 = scmp.eq.s32.totalorder %s24, 0
      %p105 = por %p103, %p104
      %p106 = scmp.ne.s32.totalorder %s98, %s100
      %p107 = scmp.eq.s32.totalorder %s29, 3
      %p108 = por %p106, %p107
      %p109 = scmp.ne.s32.totalorder %s100, %s101
      %p110 = scmp.eq.s32.totalorder %s29, 0
      %p111 = por %p109, %p110
      %p112 = scmp.ne.s32.totalorder %s100, %s101
      %p113 = scmp.eq.s32.totalorder %s30, 3
      %p114 = por %p112, %p113
      %p116 = scmp.ne.s32.totalorder %s101, %s115
      %p117 = scmp.eq.s32.totalorder %s30, 0
      %p118 = por %p116, %p117
      %s120 = sadd.s32 %s119, 1
      %p123 = scmp.eq.s32.totalorder %s24, 3
      %p124 = scmp.ne.s32.totalorder %s119, %s121
      %p125 = scmp.eq.s32.totalorder %s24, 0
      %p126 = por %p124, %p125
      %p127 = scmp.ne.s32.totalorder %s119, %s121
      %p128 = scmp.eq.s32.totalorder %s29, 3
      %p129 = por %p127, %p128
      %p130 = scmp.ne.s32.totalorder %s121, %s122
      %p131 = scmp.eq.s32.totalorder %s29, 0
      %p132 = por %p130, %p131
      %p133 = scmp.ne.s32.totalorder %s121, %s122
      %p134 = scmp.eq.s32.totalorder %s30, 3
      %p135 = por %p133, %p134
      %p137 = scmp.ne.s32.totalorder %s122, %s136
      %p138 = scmp.eq.s32.totalorder %s30, 0
      %p139 = por %p137, %p138
      %s141 = sadd.s32 %s140, 1
      %p144 = scmp.eq.s32.totalorder %s24, 3
      %p145 = scmp.ne.s32.totalorder %s140, %s142
      %p146 = scmp.eq.s32.totalorder %s24, 0
      %p147 = por %p145, %p146
      %p148 = scmp.ne.s32.totalorder %s140, %s142
      %p149 = scmp.eq.s32.totalorder %s29, 3
      %p150 = por %p148, %p149
      %p151 = scmp.ne.s32.totalorder %s142, %s143
      %p152 = scmp.eq.s32.totalorder %s29, 0
      %p153 = por %p151, %p152
      %p154 = scmp.ne.s32.totalorder %s142, %s143
      %p155 = scmp.eq.s32.totalorder %s30, 3
      %p156 = por %p154, %p155
      %p158 = scmp.ne.s32.totalorder %s143, %s157
      %p159 = scmp.eq.s32.totalorder %s30, 0
      %p160 = por %p158, %p159
      %s162 = sadd.s32 %s161, 1
      %p165 = scmp.eq.s32.totalorder %s24, 3
      %p166 = scmp.ne.s32.totalorder %s161, %s163
      %p167 = scmp.eq.s32.totalorder %s24, 0
      %p168 = por %p166, %p167
      %p169 = scmp.ne.s32.totalorder %s161, %s163
      %p170 = scmp.eq.s32.totalorder %s29, 3
      %p171 = por %p169, %p170
      %p172 = scmp.ne.s32.totalorder %s163, %s164
      %p173 = scmp.eq.s32.totalorder %s29, 0
      %p174 = por %p172, %p173
      %p175 = scmp.ne.s32.totalorder %s163, %s164
      %p176 = scmp.eq.s32.totalorder %s30, 3
      %p177 = por %p175, %p176
      %p179 = scmp.ne.s32.totalorder %s164, %s178
      %p180 = scmp.eq.s32.totalorder %s30, 0
      %p181 = por %p179, %p180
      %s183 = sadd.s32 %s182, 1
      %p186 = scmp.eq.s32.totalorder %s24, 3
      %p187 = scmp.ne.s32.totalorder %s182, %s184
      %p188 = scmp.eq.s32.totalorder %s24, 0
      %p189 = por %p187, %p188
      %p190 = scmp.ne.s32.totalorder %s182, %s184
      %p191 = scmp.eq.s32.totalorder %s29, 3
      %p192 = por %p190, %p191
      %p193 = scmp.ne.s32.totalorder %s184, %s185
      %p194 = scmp.eq.s32.totalorder %s29, 0
      %p195 = por %p193, %p194
      %p196 = scmp.ne.s32.totalorder %s184, %s185
      %p197 = scmp.eq.s32.totalorder %s30, 3
      %p198 = por %p196, %p197
      %p200 = scmp.ne.s32.totalorder %s185, %s199
      %p201 = scmp.eq.s32.totalorder %s30, 0
      %p202 = por %p200, %p201
      %s204 = sadd.s32 %s203, 1
      %p207 = scmp.eq.s32.totalorder %s24, 3
      %p208 = scmp.ne.s32.totalorder %s203, %s205
      %p209 = scmp.eq.s32.totalorder %s24, 0
      %p210 = por %p208, %p209
      %p211 = scmp.ne.s32.totalorder %s203, %s205
      %p212 = scmp.eq.s32.totalorder %s29, 3
      %p213 = por %p211, %p212
      %p214 = scmp.ne.s32.totalorder %s205, %s206
      %p215 = scmp.eq.s32.totalorder %s29, 0
      %p216 = por %p214, %p215
      %p217 = scmp.ne.s32.totalorder %s205, %s206
      %p218 = scmp.eq.s32.totalorder %s30, 3
      %p219 = por %p217, %p218
      %p221 = scmp.ne.s32.totalorder %s206, %s220
      %p222 = scmp.eq.s32.totalorder %s30, 0
      %p223 = por %p221, %p222
      %s224 = ssub.s32 %s31, %s43
      %p225 = scmp.eq.s32.totalorder %s224, 0
      %s227 = sadd.s32 %s226, 1
      %s228 = scalar_select %p225, %s226, %s227
      %p231 = pneg %p225
      %p232 = scmp.eq.s32.totalorder %s24, 3
      %p233 = por %p231, %p232
      %p234 = scmp.ne.s32.totalorder %s226, %s229
      %p235 = scmp.eq.s32.totalorder %s24, 0
      %p236 = por %p234, %p235
      %p237 = scmp.ne.s32.totalorder %s226, %s229
      %p238 = scmp.eq.s32.totalorder %s29, 3
      %p239 = por %p237, %p238
      %p240 = scmp.ne.s32.totalorder %s229, %s230
      %p241 = scmp.eq.s32.totalorder %s29, 0
      %p242 = por %p240, %p241
      %p243 = scmp.ne.s32.totalorder %s229, %s230
      %p244 = scmp.eq.s32.totalorder %s30, 3
      %p245 = por %p243, %p244
      %p247 = scmp.ne.s32.totalorder %s230, %s246
      %p248 = scmp.eq.s32.totalorder %s30, 0
      %p249 = por %p247, %p248
      %p250 = scmp.le.s32.totalorder 1, %s24
      %p251 = scmp.lt.s32.totalorder %s24, 5
      %p252 = pnand %p250, %p251
      %p253 = pneg %p252
      // Predicated region
      $region9: #{tpu_custom_call.1} parent=5 // pred_check
        _
      $region10: #{tpu_custom_call.1} parent=5 // pred_check_branch
        %255 = sbr.rel (%p252) target = $region12
      $region11: #{tpu_custom_call.1} parent=5 // pred_region
        %s256 = ssub.s32 %s24, 1
        // Predicated region
        $region13: #{tpu_custom_call.1} parent=11 // pred_check
          %p257 = pneg %p111
        $region14: #{tpu_custom_call.1} parent=11 // pred_check_branch
          %259 = sbr.rel (%p257) target = $region16
        $region15: #{tpu_custom_call.1} parent=11 // pred_region
          %s261 = ssub.s32 512, 512
          %262 = vsyncadd [#allocation10], %s261
          %s263 = sshll.u32 [#allocation11], 4
          %s264 = int_to_ptr.vmem [resolvable:$true] %s263
          %269 = dma.hbm_to_vmem [thread:$0]  %s2, 512, %s264, [#allocation10], 128, 128, 8
        $region16: #{tpu_custom_call.1} parent=11 // pred_fallthru
          _
        // Predicated region
        $region17: #{tpu_custom_call.1} parent=11 // pred_check
          %p270 = pneg %p132
        $region18: #{tpu_custom_call.1} parent=11 // pred_check_branch
          %272 = sbr.rel (%p270) target = $region20
        $region19: #{tpu_custom_call.1} parent=11 // pred_region
          _
        $region20: #{tpu_custom_call.1} parent=11 // pred_fallthru
          _
        // Predicated region
        $region21: #{tpu_custom_call.1} parent=11 // pred_check
          %p273 = pneg %p153
        $region22: #{tpu_custom_call.1} parent=11 // pred_check_branch
          %275 = sbr.rel (%p273) target = $region24
        $region23: #{tpu_custom_call.1} parent=11 // pred_region
          %s277 = ssub.s32 512, 512
          %278 = vsyncadd [#allocation13], %s277
          %s279 = sshll.u32 [#allocation12], 4
          %s280 = int_to_ptr.vmem [resolvable:$true] %s279
          %285 = dma.hbm_to_vmem [thread:$0]  %s4, 512, %s280, [#allocation13], 128, 128, 8
        $region24: #{tpu_custom_call.1} parent=11 // pred_fallthru
          _
        // Predicated region
        $region25: #{tpu_custom_call.1} parent=11 // pred_check
          %p286 = pneg %p174
        $region26: #{tpu_custom_call.1} parent=11 // pred_check_branch
          %288 = sbr.rel (%p286) target = $region28
        $region27: #{tpu_custom_call.1} parent=11 // pred_region
          _
        $region28: #{tpu_custom_call.1} parent=11 // pred_fallthru
          _
        // Predicated region
        $region29: #{tpu_custom_call.1} parent=11 // pred_check
          %p289 = pneg %p195
        $region30: #{tpu_custom_call.1} parent=11 // pred_check_branch
          %291 = sbr.rel (%p289) target = $region32
        $region31: #{tpu_custom_call.1} parent=11 // pred_region
          %s293 = ssub.s32 512, 512
          %294 = vsyncadd [#allocation13], %s293
          %s295 = sshll.u32 [#allocation14], 4
          %s296 = int_to_ptr.vmem [resolvable:$true] %s295
          %301 = dma.hbm_to_vmem [thread:$0]  %s6, 512, %s296, [#allocation13], 128, 128, 8
        $region32: #{tpu_custom_call.1} parent=11 // pred_fallthru
          _
        // Predicated region
        $region33: #{tpu_custom_call.1} parent=11 // pred_check
          %p302 = pneg %p216
        $region34: #{tpu_custom_call.1} parent=11 // pred_check_branch
          %304 = sbr.rel (%p302) target = $region36
        $region35: #{tpu_custom_call.1} parent=11 // pred_region
          _
        $region36: #{tpu_custom_call.1} parent=11 // pred_fallthru
          _
      $region12: #{tpu_custom_call.1} parent=5 // pred_fallthru
        _
      %p305 = scmp.lt.s32.totalorder %s24, 4
      // Predicated region
      $region37: #{tpu_custom_call.1} parent=5 // pred_check
        %p306 = pneg %p305
      $region38: #{tpu_custom_call.1} parent=5 // pred_check_branch
        %308 = sbr.rel (%p306) target = $region40
      $region39: #{tpu_custom_call.1} parent=5 // pred_region
        // Predicated region
        $region41: #{tpu_custom_call.1} parent=39 // pred_check
          %p309 = pneg %p56
        $region42: #{tpu_custom_call.1} parent=39 // pred_check_branch
          %311 = sbr.rel (%p309) target = $region44
        $region43: #{tpu_custom_call.1} parent=39 // pred_region
          %s312 = sand.u32 %s46, 1
          %s313 = scalar_lea.sflag [#allocation7], %s312
          %s314 = sand.u32 %s46, 1
          %s315 = smul.addr %s314, 8
          %s316 = scalar_lea.vmem [#allocation6], %s315
          %s318 = ssub.s32 128, 128
          %319 = vsyncadd %s313, %s318
          %s320 = smul.addr %s31, 128
          %s321 = scalar_lea.hbm %s0, %s320
          %s323 = sshll.u32 %s316, 4
          %s324 = int_to_ptr.vmem [resolvable:$true] %s323
          %326 = dma.hbm_to_vmem [thread:$0]  %s321, 128, %s324, %s313
        $region44: #{tpu_custom_call.1} parent=39 // pred_fallthru
          _
        // Predicated region
        $region45: #{tpu_custom_call.1} parent=39 // pred_check
          %p327 = pneg %p84
        $region46: #{tpu_custom_call.1} parent=39 // pred_check_branch
          %329 = sbr.rel (%p327) target = $region48
        $region47: #{tpu_custom_call.1} parent=39 // pred_region
          %s330 = sand.u32 %s24, 1
          %s331 = scalar_lea.sflag [#allocation10], %s330
          %s332 = sand.u32 %s74, 1
          %s333 = smul.addr %s332, 8
          %s334 = scalar_lea.vmem [#allocation9], %s333
          %s336 = ssub.s32 128, 128
          %337 = vsyncadd %s331, %s336
          %s338 = smul.addr %s31, 2
          %s339 = sadd.s32 %s32, %s338
          %s340 = smul.addr %s339, 128
          %s341 = scalar_lea.hbm %s1, %s340
          %s343 = sshll.u32 %s334, 4
          %s344 = int_to_ptr.vmem [resolvable:$true] %s343
          %346 = dma.hbm_to_vmem [thread:$0]  %s341, 128, %s344, %s331
        $region48: #{tpu_custom_call.1} parent=39 // pred_fallthru
          _
      $region40: #{tpu_custom_call.1} parent=5 // pred_fallthru
        _
      %p347 = scmp.le.s32.totalorder 1, %s24
      %p348 = scmp.lt.s32.totalorder %s24, 5
      %p349 = pnand %p347, %p348
      %p350 = pneg %p349
      // Predicated region
      $region49: #{tpu_custom_call.1} parent=5 // pred_check
        _
      $region50: #{tpu_custom_call.1} parent=5 // pred_check_branch
        %352 = sbr.rel (%p349) target = $region52
      $region51: #{tpu_custom_call.1} parent=5 // pred_region
        %s353 = ssub.s32 %s24, 1
        %s354 = sand.u32 %s49, 1
        %s355 = scalar_lea.sflag [#allocation7], %s354
        %s356 = sand.u32 %s49, 1
        %s357 = smul.addr %s356, 8
        %s358 = scalar_lea.vmem [#allocation6], %s357
        // Predicated region
        $region53: #{tpu_custom_call.1} parent=51 // pred_check
          %p359 = pneg %p62
        $region54: #{tpu_custom_call.1} parent=51 // pred_check_branch
          %361 = sbr.rel (%p359) target = $region56
        $region55: #{tpu_custom_call.1} parent=51 // pred_region
          %362 = dma.done %s355, 128
        $region56: #{tpu_custom_call.1} parent=51 // pred_fallthru
          _
        %s363 = sand.u32 %s29, 1
        %s364 = scalar_lea.sflag [#allocation10], %s363
        %s365 = sand.u32 %s77, 1
        %s366 = smul.addr %s365, 8
        %s367 = scalar_lea.vmem [#allocation9], %s366
        // Predicated region
        $region57: #{tpu_custom_call.1} parent=51 // pred_check
          %p368 = pneg %p90
        $region58: #{tpu_custom_call.1} parent=51 // pred_check_branch
          %370 = sbr.rel (%p368) target = $region60
        $region59: #{tpu_custom_call.1} parent=51 // pred_region
          %371 = dma.done %s364, 128
        $region60: #{tpu_custom_call.1} parent=51 // pred_fallthru
          _
        // Predicated region
        $region61: #{tpu_custom_call.1} parent=51 // pred_check
          %p372 = pneg %p111
        $region62: #{tpu_custom_call.1} parent=51 // pred_check_branch
          %374 = sbr.rel (%p372) target = $region64
        $region63: #{tpu_custom_call.1} parent=51 // pred_region
          %375 = dma.done [#allocation10], 512
        $region64: #{tpu_custom_call.1} parent=51 // pred_fallthru
          _
        // Predicated region
        $region65: #{tpu_custom_call.1} parent=51 // pred_check
          %p376 = pneg %p153
        $region66: #{tpu_custom_call.1} parent=51 // pred_check_branch
          %378 = sbr.rel (%p376) target = $region68
        $region67: #{tpu_custom_call.1} parent=51 // pred_region
          %379 = dma.done [#allocation13], 512
        $region68: #{tpu_custom_call.1} parent=51 // pred_fallthru
          _
        // Predicated region
        $region69: #{tpu_custom_call.1} parent=51 // pred_check
          %p380 = pneg %p195
        $region70: #{tpu_custom_call.1} parent=51 // pred_check_branch
          %382 = sbr.rel (%p380) target = $region72
        $region71: #{tpu_custom_call.1} parent=51 // pred_region
          %383 = dma.done [#allocation13], 512
        $region72: #{tpu_custom_call.1} parent=51 // pred_fallthru
          _
        %s384 = sand.u32 %s49, 1
        %s385 = scalar_lea.sflag [#allocation7], %s384
        %s386 = sand.u32 %s49, 1
        %s387 = smul.addr %s386, 8
        %s388 = scalar_lea.vmem [#allocation6], %s387
        %p389 = pneg %p62
        %p390 = pneg %p59
        %s391 = sand.u32 %s29, 1
        %s392 = scalar_lea.sflag [#allocation10], %s391
        %s393 = sand.u32 %s77, 1
        %s394 = smul.addr %s393, 8
        %s395 = scalar_lea.vmem [#allocation9], %s394
        %p396 = pneg %p90
        %p397 = pneg %p87
        %p398 = pneg %p111
        %p399 = pneg %p108
        %p400 = pneg %p132
        %p401 = pneg %p129
        %p402 = pneg %p153
        %p403 = pneg %p150
        %p404 = pneg %p174
        %p405 = pneg %p171
        %p406 = pneg %p195
        %p407 = pneg %p192
        %p408 = pneg %p216
        %p409 = pneg %p213
        %p410 = pneg %p242
        %p411 = pneg %p239
        %s412 = sand.u32 %s229, 1
        %s413 = scalar_lea.sflag [#allocation8], %s412
        %s414 = sand.u32 %s229, 1
        %s415 = smul.addr %s414, 8
        %s416 = scalar_lea.vmem [#allocation15], %s415
        %p417 = scmp.eq.s32.totalorder %s34, 0
        // Predicated region
        $region73: #{tpu_custom_call.1} parent=51 // pred_check
          %p418 = pneg %p417
        $region74: #{tpu_custom_call.1} parent=51 // pred_check_branch
          %420 = sbr.rel (%p418) target = $region76
        $region75: #{tpu_custom_call.1} parent=51 // pred_region
          %v421 = vld [vmem:[%s358] sm:$0xff]
          %v422 = vld [vmem:[#allocation11] sm:$0xff]
          %v423 = vld [vmem:[#allocation11 + $0x8] sm:$0xff]
          %v424 = vld [vmem:[#allocation11 + $0x10] sm:$0xff]
          %v425 = vld [vmem:[#allocation11 + $0x18] sm:$0xff]
          %v426 = vld [vmem:[%s3] sm:$0x1]
          %v428 = vlaneseq
          %v429 = vshrl.u32 %v428, 7
          %v430 = vsub.s32 0, %v429
          %v431 = vrot.slane %v426, %v430
          %vm433 = vcmask 261120
          %v435 = vsel %vm433, %v421, 0
          %437 = vmatprep.subr.mxu0 0.0
          %438 = vmatpush1.msra.mxu0 0.0
          %439 = vmatprep.subr.mxu0 0.0
          %440 = vmatpush1.msra.mxu0 0.0
          %441 = vmatprep.subr.mxu0 0.0
          %442 = vmatpush1.msra.mxu0 0.0
          %443 = vmatprep.subr.mxu0 0.0
          %444 = vmatpush1.msra.mxu0 0.0
          %445 = vmatprep.subr.mxu0 0.0
          %446 = vmatpush1.msra.mxu0 0.0
          %447 = vmatprep.subr.mxu0 0.0
          %448 = vmatpush1.msra.mxu0 0.0
          %449 = vmatprep.subr.mxu0 0.0
          %450 = vmatpush1.msra.mxu0 0.0
          %451 = vmatprep.subr.mxu0 0.0
          %452 = vmatpush1.msra.mxu0 0.0
          %453 = vmatprep.subr.mxu0 0.0
          %454 = vmatpush1.msra.mxu0 0.0
          %455 = vmatprep.subr.mxu0 0.0
          %456 = vmatpush1.msra.mxu0 0.0
          %457 = vmatprep.subr.mxu0 0.0
          %458 = vmatpush1.msra.mxu0 0.0
          %459 = vmatprep.subr.mxu0 0.0
          %460 = vmatpush1.msra.mxu0 0.0
          %461 = vmatprep.subr.mxu0 0.0
          %462 = vmatpush1.msra.mxu0 %v425
          %463 = vmatprep.subr.mxu0 0.0
          %464 = vmatpush1.msra.mxu0 %v424
          %465 = vmatprep.subr.mxu0 0.0
          %466 = vmatpush1.msra.mxu0 %v423
          %467 = vmatprep.subr.mxu0 0.0
          %468 = vmatpush1.msra.mxu0 %v422
          %469 = vmatprep.subr.mxu0 0.0
          %470 = vmatpush2.msra.mxu0 0.0
          %471 = vmatprep.subr.mxu0 0.0
          %472 = vmatpush2.msra.mxu0 0.0
          %473 = vmatprep.subr.mxu0 0.0
          %474 = vmatpush2.msra.mxu0 0.0
          %475 = vmatprep.subr.mxu0 0.0
          %476 = vmatpush2.msra.mxu0 0.0
          %477 = vmatprep.subr.mxu0 0.0
          %478 = vmatpush2.msra.mxu0 0.0
          %479 = vmatprep.subr.mxu0 0.0
          %480 = vmatpush2.msra.mxu0 0.0
          %481 = vmatprep.subr.mxu0 0.0
          %482 = vmatpush2.msra.mxu0 0.0
          %483 = vmatprep.subr.mxu0 0.0
          %484 = vmatpush2.msra.mxu0 0.0
          %485 = vmatprep.subr.mxu0 0.0
          %486 = vmatpush2.msra.mxu0 0.0
          %487 = vmatprep.subr.mxu0 0.0
          %488 = vmatpush2.msra.mxu0 0.0
          %489 = vmatprep.subr.mxu0 0.0
          %490 = vmatpush2.msra.mxu0 0.0
          %491 = vmatprep.subr.mxu0 0.0
          %492 = vmatpush2.msra.mxu0 0.0
          %493 = vmatprep.subr.mxu0 0.0
          %494 = vmatpush2.msra.mxu0 0.0
          %495 = vmatprep.subr.mxu0 0.0
          %496 = vmatpush2.msra.mxu0 0.0
          %497 = vmatprep.subr.mxu0 0.0
          %498 = vmatpush2.msra.mxu0 0.0
          %499 = vmatprep.subr.mxu0 0.0
          %500 = vmatpush2.msra.mxu0 0.0
          %501 = vmatprep.mubr.f32.mxu0 0.0
          %502 = vmatmul.mubr.f32.gmra.mxu0 %v435
          %v503 = vpop.f32.mrf.mxu0
          %v504 = vadd.f32 %v431, %v503
          %v505 = vpop.f32.mrf.mxu0
          %506 = vdwg.mxu0
          %508 = vrot.lane.b32.xlu0 %v504, 120
          %v509 = vpop.permute.xlu0 %508
          %511 = vrot.lane.b32.xlu0 %v504, 112
          %v512 = vpop.permute.xlu0 %511
          %514 = vrot.lane.b32.xlu0 %v504, 104
          %v515 = vpop.permute.xlu0 %514
          %v517 = vcombine.low %v504, %v512
          %v518 = vcombine.high %v504, %v512
          %v520 = vunpack.c.l.s4 1983009808
          %v521 = vunpack.c.0.s8 %v520
          %v522 = vlaneseq
          %v523 = vshrl.u32 %v522, 7
          %v524 = vsub.s32 %v521, %v523
          %v525 = vrot.slane %v517, %v524
          %v527 = vunpack.c.l.s4 1983009808
          %v528 = vunpack.c.0.s8 %v527
          %v529 = vlaneseq
          %v530 = vshrl.u32 %v529, 7
          %v531 = vsub.s32 %v528, %v530
          %v532 = vrot.slane %v518, %v531
          %v533 = vcombine.low %v509, %v515
          %v534 = vcombine.high %v509, %v515
          %v536 = vunpack.c.l.s4 1983009808
          %v537 = vunpack.c.0.s8 %v536
          %v538 = vlaneseq
          %v539 = vshrl.u32 %v538, 7
          %v540 = vsub.s32 %v537, %v539
          %v541 = vrot.slane %v533, %v540
          %v543 = vunpack.c.l.s4 1983009808
          %v544 = vunpack.c.0.s8 %v543
          %v545 = vlaneseq
          %v546 = vshrl.u32 %v545, 7
          %v547 = vsub.s32 %v544, %v546
          %v548 = vrot.slane %v534, %v547
          %v549 = vcombine.low %v525, %v541
          %v550 = vcombine.high %v525, %v541
          %v552 = vunpack.c.l.s4 1934713408
          %v553 = vunpack.c.0.s8 %v552
          %v554 = vlaneseq
          %v555 = vshrl.u32 %v554, 7
          %v556 = vsub.s32 %v553, %v555
          %v557 = vrot.slane %v549, %v556
          %v559 = vunpack.c.l.s4 1934713408
          %v560 = vunpack.c.0.s8 %v559
          %v561 = vlaneseq
          %v562 = vshrl.u32 %v561, 7
          %v563 = vsub.s32 %v560, %v562
          %v564 = vrot.slane %v550, %v563
          %v565 = vcombine.low %v532, %v548
          %v566 = vcombine.high %v532, %v548
          %v568 = vunpack.c.l.s4 1934713408
          %v569 = vunpack.c.0.s8 %v568
          %v570 = vlaneseq
          %v571 = vshrl.u32 %v570, 7
          %v572 = vsub.s32 %v569, %v571
          %v573 = vrot.slane %v565, %v572
          %v575 = vunpack.c.l.s4 1934713408
          %v576 = vunpack.c.0.s8 %v575
          %v577 = vlaneseq
          %v578 = vshrl.u32 %v577, 7
          %v579 = vsub.s32 %v576, %v578
          %v580 = vrot.slane %v566, %v579
          %v581 = vcombine.high %v557, 0.0
          %v582 = vcombine.high %v564, 0.0
          %v583 = vcombine.high %v573, 0.0
          %v584 = vcombine.high %v580, 0.0
          %v585 = vcombine.low %v557, %v564
          %v587 = vunpack.c.l.s4 1983009808
          %v588 = vunpack.c.0.s8 %v587
          %v589 = vlaneseq
          %v590 = vshrl.u32 %v589, 7
          %v591 = vsub.s32 %v588, %v590
          %v592 = vrot.slane %v585, %v591
          %v593 = vcombine.low %v581, %v582
          %v595 = vunpack.c.l.s4 1983009808
          %v596 = vunpack.c.0.s8 %v595
          %v597 = vlaneseq
          %v598 = vshrl.u32 %v597, 7
          %v599 = vsub.s32 %v596, %v598
          %v600 = vrot.slane %v593, %v599
          %v601 = vcombine.low %v573, %v580
          %v603 = vunpack.c.l.s4 1983009808
          %v604 = vunpack.c.0.s8 %v603
          %v605 = vlaneseq
          %v606 = vshrl.u32 %v605, 7
          %v607 = vsub.s32 %v604, %v606
          %v608 = vrot.slane %v601, %v607
          %v609 = vcombine.low %v583, %v584
          %v611 = vunpack.c.l.s4 1983009808
          %v612 = vunpack.c.0.s8 %v611
          %v613 = vlaneseq
          %v614 = vshrl.u32 %v613, 7
          %v615 = vsub.s32 %v612, %v614
          %v616 = vrot.slane %v609, %v615
          %v617 = vcombine.low %v592, %v600
          %v618 = vcombine.high %v592, %v600
          %v620 = vunpack.c.l.s4 1934713408
          %v621 = vunpack.c.0.s8 %v620
          %v622 = vlaneseq
          %v623 = vshrl.u32 %v622, 7
          %v624 = vsub.s32 %v621, %v623
          %v625 = vrot.slane %v617, %v624
          %v627 = vunpack.c.l.s4 1934713408
          %v628 = vunpack.c.0.s8 %v627
          %v629 = vlaneseq
          %v630 = vshrl.u32 %v629, 7
          %v631 = vsub.s32 %v628, %v630
          %v632 = vrot.slane %v618, %v631
          %v633 = vcombine.low %v608, %v616
          %v634 = vcombine.high %v608, %v616
          %v636 = vunpack.c.l.s4 1934713408
          %v637 = vunpack.c.0.s8 %v636
          %v638 = vlaneseq
          %v639 = vshrl.u32 %v638, 7
          %v640 = vsub.s32 %v637, %v639
          %v641 = vrot.slane %v633, %v640
          %v643 = vunpack.c.l.s4 1934713408
          %v644 = vunpack.c.0.s8 %v643
          %v645 = vlaneseq
          %v646 = vshrl.u32 %v645, 7
          %v647 = vsub.s32 %v644, %v646
          %v648 = vrot.slane %v634, %v647
          %v649 = vcombine.low %v625, %v641
          %v650 = vcombine.high %v625, %v641
          %v651 = vcombine.low %v632, %v648
          %v652 = vcombine.high %v632, %v648
          %vm653 = vcmask 64512
          %654 = vst.msk [vmem:[#allocation2] sm:$0xff] %vm653, %v649
          %655 = vst.msk [vmem:[#allocation2 + $0x8] sm:$0xff] %vm653, %v650
          %656 = vst.msk [vmem:[#allocation2 + $0x10] sm:$0xff] %vm653, %v651
          %657 = vst.msk [vmem:[#allocation2 + $0x18] sm:$0xff] %vm653, %v652
          %vm658 = vcmask 7168
          %659 = vst.msk [vmem:[#allocation3] sm:$0xff] %vm658, -inf
          %660 = vst.msk [vmem:[#allocation3 + $0x8] sm:$0xff] %vm658, -inf
          %661 = vst.msk [vmem:[#allocation3 + $0x10] sm:$0xff] %vm658, -inf
          %662 = vst.msk [vmem:[#allocation3 + $0x18] sm:$0xff] %vm658, -inf
          %663 = vst.msk [vmem:[#allocation4] sm:$0xff] %vm658, 0.0
          %664 = vst.msk [vmem:[#allocation4 + $0x8] sm:$0xff] %vm658, 0.0
          %665 = vst.msk [vmem:[#allocation4 + $0x10] sm:$0xff] %vm658, 0.0
          %666 = vst.msk [vmem:[#allocation4 + $0x18] sm:$0xff] %vm658, 0.0
          %667 = vst.msk [vmem:[#allocation5] sm:$0xff] %vm653, 0.0
          %668 = vst.msk [vmem:[#allocation5 + $0x8] sm:$0xff] %vm653, 0.0
          %669 = vst.msk [vmem:[#allocation5 + $0x10] sm:$0xff] %vm653, 0.0
          %670 = vst.msk [vmem:[#allocation5 + $0x18] sm:$0xff] %vm653, 0.0
        $region76: #{tpu_custom_call.1} parent=51 // pred_fallthru
          _
        %v671 = vld [vmem:[%s367] sm:$0xff]
        %v672 = vld [vmem:[#allocation12] sm:$0xff]
        %v673 = vld [vmem:[#allocation12 + $0x8] sm:$0xff]
        %v674 = vld [vmem:[#allocation12 + $0x10] sm:$0xff]
        %v675 = vld [vmem:[#allocation12 + $0x18] sm:$0xff]
        %vm676 = vcmask 261120
        %v678 = vsel %vm676, %v671, 0
        %680 = vmatprep.subr.mxu0 0.0
        %681 = vmatpush1.msra.mxu0 0.0
        %682 = vmatprep.subr.mxu0 0.0
        %683 = vmatpush1.msra.mxu0 0.0
        %684 = vmatprep.subr.mxu0 0.0
        %685 = vmatpush1.msra.mxu0 0.0
        %686 = vmatprep.subr.mxu0 0.0
        %687 = vmatpush1.msra.mxu0 0.0
        %688 = vmatprep.subr.mxu0 0.0
        %689 = vmatpush1.msra.mxu0 0.0
        %690 = vmatprep.subr.mxu0 0.0
        %691 = vmatpush1.msra.mxu0 0.0
        %692 = vmatprep.subr.mxu0 0.0
        %693 = vmatpush1.msra.mxu0 0.0
        %694 = vmatprep.subr.mxu0 0.0
        %695 = vmatpush1.msra.mxu0 0.0
        %696 = vmatprep.subr.mxu0 0.0
        %697 = vmatpush1.msra.mxu0 0.0
        %698 = vmatprep.subr.mxu0 0.0
        %699 = vmatpush1.msra.mxu0 0.0
        %700 = vmatprep.subr.mxu0 0.0
        %701 = vmatpush1.msra.mxu0 0.0
        %702 = vmatprep.subr.mxu0 0.0
        %703 = vmatpush1.msra.mxu0 0.0
        %704 = vmatprep.subr.mxu0 0.0
        %705 = vmatpush1.msra.mxu0 %v675
        %706 = vmatprep.subr.mxu0 0.0
        %707 = vmatpush1.msra.mxu0 %v674
        %708 = vmatprep.subr.mxu0 0.0
        %709 = vmatpush1.msra.mxu0 %v673
        %710 = vmatprep.subr.mxu0 0.0
        %711 = vmatpush1.msra.mxu0 %v672
        %712 = vmatprep.subr.mxu0 0.0
        %713 = vmatpush2.msra.mxu0 0.0
        %714 = vmatprep.subr.mxu0 0.0
        %715 = vmatpush2.msra.mxu0 0.0
        %716 = vmatprep.subr.mxu0 0.0
        %717 = vmatpush2.msra.mxu0 0.0
        %718 = vmatprep.subr.mxu0 0.0
        %719 = vmatpush2.msra.mxu0 0.0
        %720 = vmatprep.subr.mxu0 0.0
        %721 = vmatpush2.msra.mxu0 0.0
        %722 = vmatprep.subr.mxu0 0.0
        %723 = vmatpush2.msra.mxu0 0.0
        %724 = vmatprep.subr.mxu0 0.0
        %725 = vmatpush2.msra.mxu0 0.0
        %726 = vmatprep.subr.mxu0 0.0
        %727 = vmatpush2.msra.mxu0 0.0
        %728 = vmatprep.subr.mxu0 0.0
        %729 = vmatpush2.msra.mxu0 0.0
        %730 = vmatprep.subr.mxu0 0.0
        %731 = vmatpush2.msra.mxu0 0.0
        %732 = vmatprep.subr.mxu0 0.0
        %733 = vmatpush2.msra.mxu0 0.0
        %734 = vmatprep.subr.mxu0 0.0
        %735 = vmatpush2.msra.mxu0 0.0
        %736 = vmatprep.subr.mxu0 0.0
        %737 = vmatpush2.msra.mxu0 0.0
        %738 = vmatprep.subr.mxu0 0.0
        %739 = vmatpush2.msra.mxu0 0.0
        %740 = vmatprep.subr.mxu0 0.0
        %741 = vmatpush2.msra.mxu0 0.0
        %742 = vmatprep.subr.mxu0 0.0
        %743 = vmatpush2.msra.mxu0 0.0
        %744 = vmatprep.mubr.f32.mxu0 0.0
        %745 = vmatmul.mubr.f32.gmra.mxu0 %v678
        %v746 = vpop.f32.mrf.mxu0
        %v747 = vadd.f32 0.0, %v746
        %v748 = vpop.f32.mrf.mxu0
        %749 = vdwg.mxu0
        %751 = vrot.lane.b32.xlu0 %v747, 120
        %v752 = vpop.permute.xlu0 %751
        %754 = vrot.lane.b32.xlu0 %v747, 112
        %v755 = vpop.permute.xlu0 %754
        %757 = vrot.lane.b32.xlu0 %v747, 104
        %v758 = vpop.permute.xlu0 %757
        %v760 = vcombine.low %v747, %v755
        %v761 = vcombine.high %v747, %v755
        %v763 = vunpack.c.l.s4 1983009808
        %v764 = vunpack.c.0.s8 %v763
        %v765 = vlaneseq
        %v766 = vshrl.u32 %v765, 7
        %v767 = vsub.s32 %v764, %v766
        %v768 = vrot.slane %v760, %v767
        %v770 = vunpack.c.l.s4 1983009808
        %v771 = vunpack.c.0.s8 %v770
        %v772 = vlaneseq
        %v773 = vshrl.u32 %v772, 7
        %v774 = vsub.s32 %v771, %v773
        %v775 = vrot.slane %v761, %v774
        %v776 = vcombine.low %v752, %v758
        %v777 = vcombine.high %v752, %v758
        %v779 = vunpack.c.l.s4 1983009808
        %v780 = vunpack.c.0.s8 %v779
        %v781 = vlaneseq
        %v782 = vshrl.u32 %v781, 7
        %v783 = vsub.s32 %v780, %v782
        %v784 = vrot.slane %v776, %v783
        %v786 = vunpack.c.l.s4 1983009808
        %v787 = vunpack.c.0.s8 %v786
        %v788 = vlaneseq
        %v789 = vshrl.u32 %v788, 7
        %v790 = vsub.s32 %v787, %v789
        %v791 = vrot.slane %v777, %v790
        %v792 = vcombine.low %v768, %v784
        %v793 = vcombine.high %v768, %v784
        %v795 = vunpack.c.l.s4 1934713408
        %v796 = vunpack.c.0.s8 %v795
        %v797 = vlaneseq
        %v798 = vshrl.u32 %v797, 7
        %v799 = vsub.s32 %v796, %v798
        %v800 = vrot.slane %v792, %v799
        %v802 = vunpack.c.l.s4 1934713408
        %v803 = vunpack.c.0.s8 %v802
        %v804 = vlaneseq
        %v805 = vshrl.u32 %v804, 7
        %v806 = vsub.s32 %v803, %v805
        %v807 = vrot.slane %v793, %v806
        %v808 = vcombine.low %v775, %v791
        %v809 = vcombine.high %v775, %v791
        %v811 = vunpack.c.l.s4 1934713408
        %v812 = vunpack.c.0.s8 %v811
        %v813 = vlaneseq
        %v814 = vshrl.u32 %v813, 7
        %v815 = vsub.s32 %v812, %v814
        %v816 = vrot.slane %v808, %v815
        %v818 = vunpack.c.l.s4 1934713408
        %v819 = vunpack.c.0.s8 %v818
        %v820 = vlaneseq
        %v821 = vshrl.u32 %v820, 7
        %v822 = vsub.s32 %v819, %v821
        %v823 = vrot.slane %v809, %v822
        %v824 = vcombine.high %v800, 0.0
        %v825 = vcombine.high %v807, 0.0
        %v826 = vcombine.high %v816, 0.0
        %v827 = vcombine.high %v823, 0.0
        %v828 = vcombine.low %v800, %v807
        %v830 = vunpack.c.l.s4 1983009808
        %v831 = vunpack.c.0.s8 %v830
        %v832 = vlaneseq
        %v833 = vshrl.u32 %v832, 7
        %v834 = vsub.s32 %v831, %v833
        %v835 = vrot.slane %v828, %v834
        %v836 = vcombine.low %v824, %v825
        %v838 = vunpack.c.l.s4 1983009808
        %v839 = vunpack.c.0.s8 %v838
        %v840 = vlaneseq
        %v841 = vshrl.u32 %v840, 7
        %v842 = vsub.s32 %v839, %v841
        %v843 = vrot.slane %v836, %v842
        %v844 = vcombine.low %v816, %v823
        %v846 = vunpack.c.l.s4 1983009808
        %v847 = vunpack.c.0.s8 %v846
        %v848 = vlaneseq
        %v849 = vshrl.u32 %v848, 7
        %v850 = vsub.s32 %v847, %v849
        %v851 = vrot.slane %v844, %v850
        %v852 = vcombine.low %v826, %v827
        %v854 = vunpack.c.l.s4 1983009808
        %v855 = vunpack.c.0.s8 %v854
        %v856 = vlaneseq
        %v857 = vshrl.u32 %v856, 7
        %v858 = vsub.s32 %v855, %v857
        %v859 = vrot.slane %v852, %v858
        %v860 = vcombine.low %v835, %v843
        %v861 = vcombine.high %v835, %v843
        %v863 = vunpack.c.l.s4 1934713408
        %v864 = vunpack.c.0.s8 %v863
        %v865 = vlaneseq
        %v866 = vshrl.u32 %v865, 7
        %v867 = vsub.s32 %v864, %v866
        %v868 = vrot.slane %v860, %v867
        %v870 = vunpack.c.l.s4 1934713408
        %v871 = vunpack.c.0.s8 %v870
        %v872 = vlaneseq
        %v873 = vshrl.u32 %v872, 7
        %v874 = vsub.s32 %v871, %v873
        %v875 = vrot.slane %v861, %v874
        %v876 = vcombine.low %v851, %v859
        %v877 = vcombine.high %v851, %v859
        %v879 = vunpack.c.l.s4 1934713408
        %v880 = vunpack.c.0.s8 %v879
        %v881 = vlaneseq
        %v882 = vshrl.u32 %v881, 7
        %v883 = vsub.s32 %v880, %v882
        %v884 = vrot.slane %v876, %v883
        %v886 = vunpack.c.l.s4 1934713408
        %v887 = vunpack.c.0.s8 %v886
        %v888 = vlaneseq
        %v889 = vshrl.u32 %v888, 7
        %v890 = vsub.s32 %v887, %v889
        %v891 = vrot.slane %v877, %v890
        %v892 = vcombine.low %v868, %v884
        %v893 = vcombine.high %v868, %v884
        %v894 = vcombine.low %v875, %v891
        %v895 = vcombine.high %v875, %v891
        %v896 = vld [vmem:[%s5] sm:$0x1]
        %v898 = vlaneseq
        %v899 = vshrl.u32 %v898, 7
        %v900 = vsub.s32 0, %v899
        %v901 = vrot.slane %v896, %v900
        %902 = vrot.lane.b32.xlu0 %v901, 32
        %v903 = vpop.permute.xlu0 %902
        %v905 = vadd.f32 %v747, %v903
        %907 = vrot.lane.b32.xlu0 %v905, 120
        %v908 = vpop.permute.xlu0 %907
        %909 = vrot.lane.b32.xlu0 %v905, 112
        %v910 = vpop.permute.xlu0 %909
        %911 = vrot.lane.b32.xlu0 %v905, 104
        %v912 = vpop.permute.xlu0 %911
        %913 = vrot.lane.b32.xlu0 %v905, 96
        %v914 = vpop.permute.xlu0 %913
        %915 = vrot.lane.b32.xlu0 %v908, 96
        %v916 = vpop.permute.xlu0 %915
        %917 = vrot.lane.b32.xlu0 %v910, 96
        %v918 = vpop.permute.xlu0 %917
        %919 = vrot.lane.b32.xlu0 %v912, 96
        %v920 = vpop.permute.xlu0 %919
        %v925 = vcombine.low %v914, %v918
        %v926 = vcombine.high %v914, %v918
        %v928 = vunpack.c.l.s4 1983009808
        %v929 = vunpack.c.0.s8 %v928
        %v930 = vlaneseq
        %v931 = vshrl.u32 %v930, 7
        %v932 = vsub.s32 %v929, %v931
        %v933 = vrot.slane %v925, %v932
        %v935 = vunpack.c.l.s4 1983009808
        %v936 = vunpack.c.0.s8 %v935
        %v937 = vlaneseq
        %v938 = vshrl.u32 %v937, 7
        %v939 = vsub.s32 %v936, %v938
        %v940 = vrot.slane %v926, %v939
        %v941 = vcombine.low %v916, %v920
        %v942 = vcombine.high %v916, %v920
        %v944 = vunpack.c.l.s4 1983009808
        %v945 = vunpack.c.0.s8 %v944
        %v946 = vlaneseq
        %v947 = vshrl.u32 %v946, 7
        %v948 = vsub.s32 %v945, %v947
        %v949 = vrot.slane %v941, %v948
        %v951 = vunpack.c.l.s4 1983009808
        %v952 = vunpack.c.0.s8 %v951
        %v953 = vlaneseq
        %v954 = vshrl.u32 %v953, 7
        %v955 = vsub.s32 %v952, %v954
        %v956 = vrot.slane %v942, %v955
        %v957 = vcombine.low %v933, %v949
        %v958 = vcombine.high %v933, %v949
        %v960 = vunpack.c.l.s4 1934713408
        %v961 = vunpack.c.0.s8 %v960
        %v962 = vlaneseq
        %v963 = vshrl.u32 %v962, 7
        %v964 = vsub.s32 %v961, %v963
        %v965 = vrot.slane %v957, %v964
        %v967 = vunpack.c.l.s4 1934713408
        %v968 = vunpack.c.0.s8 %v967
        %v969 = vlaneseq
        %v970 = vshrl.u32 %v969, 7
        %v971 = vsub.s32 %v968, %v970
        %v972 = vrot.slane %v958, %v971
        %v973 = vcombine.low %v940, %v956
        %v974 = vcombine.high %v940, %v956
        %v976 = vunpack.c.l.s4 1934713408
        %v977 = vunpack.c.0.s8 %v976
        %v978 = vlaneseq
        %v979 = vshrl.u32 %v978, 7
        %v980 = vsub.s32 %v977, %v979
        %v981 = vrot.slane %v973, %v980
        %v983 = vunpack.c.l.s4 1934713408
        %v984 = vunpack.c.0.s8 %v983
        %v985 = vlaneseq
        %v986 = vshrl.u32 %v985, 7
        %v987 = vsub.s32 %v984, %v986
        %v988 = vrot.slane %v974, %v987
        %v989 = vcombine.high %v965, 0.0
        %v990 = vcombine.high %v972, 0.0
        %v991 = vcombine.high %v981, 0.0
        %v992 = vcombine.high %v988, 0.0
        %v993 = vcombine.low %v965, %v972
        %v995 = vunpack.c.l.s4 1983009808
        %v996 = vunpack.c.0.s8 %v995
        %v997 = vlaneseq
        %v998 = vshrl.u32 %v997, 7
        %v999 = vsub.s32 %v996, %v998
        %v1000 = vrot.slane %v993, %v999
        %v1001 = vcombine.low %v989, %v990
        %v1003 = vunpack.c.l.s4 1983009808
        %v1004 = vunpack.c.0.s8 %v1003
        %v1005 = vlaneseq
        %v1006 = vshrl.u32 %v1005, 7
        %v1007 = vsub.s32 %v1004, %v1006
        %v1008 = vrot.slane %v1001, %v1007
        %v1009 = vcombine.low %v981, %v988
        %v1011 = vunpack.c.l.s4 1983009808
        %v1012 = vunpack.c.0.s8 %v1011
        %v1013 = vlaneseq
        %v1014 = vshrl.u32 %v1013, 7
        %v1015 = vsub.s32 %v1012, %v1014
        %v1016 = vrot.slane %v1009, %v1015
        %v1017 = vcombine.low %v991, %v992
        %v1019 = vunpack.c.l.s4 1983009808
        %v1020 = vunpack.c.0.s8 %v1019
        %v1021 = vlaneseq
        %v1022 = vshrl.u32 %v1021, 7
        %v1023 = vsub.s32 %v1020, %v1022
        %v1024 = vrot.slane %v1017, %v1023
        %v1025 = vcombine.low %v1000, %v1008
        %v1026 = vcombine.high %v1000, %v1008
        %v1028 = vunpack.c.l.s4 1934713408
        %v1029 = vunpack.c.0.s8 %v1028
        %v1030 = vlaneseq
        %v1031 = vshrl.u32 %v1030, 7
        %v1032 = vsub.s32 %v1029, %v1031
        %v1033 = vrot.slane %v1025, %v1032
        %v1035 = vunpack.c.l.s4 1934713408
        %v1036 = vunpack.c.0.s8 %v1035
        %v1037 = vlaneseq
        %v1038 = vshrl.u32 %v1037, 7
        %v1039 = vsub.s32 %v1036, %v1038
        %v1040 = vrot.slane %v1026, %v1039
        %v1041 = vcombine.low %v1016, %v1024
        %v1042 = vcombine.high %v1016, %v1024
        %v1044 = vunpack.c.l.s4 1934713408
        %v1045 = vunpack.c.0.s8 %v1044
        %v1046 = vlaneseq
        %v1047 = vshrl.u32 %v1046, 7
        %v1048 = vsub.s32 %v1045, %v1047
        %v1049 = vrot.slane %v1041, %v1048
        %v1051 = vunpack.c.l.s4 1934713408
        %v1052 = vunpack.c.0.s8 %v1051
        %v1053 = vlaneseq
        %v1054 = vshrl.u32 %v1053, 7
        %v1055 = vsub.s32 %v1052, %v1054
        %v1056 = vrot.slane %v1042, %v1055
        %v1057 = vcombine.low %v1033, %v1049
        %v1058 = vcombine.high %v1033, %v1049
        %v1059 = vcombine.low %v1040, %v1056
        %v1060 = vcombine.high %v1040, %v1056
        %v1061 = vld [vmem:[#allocation2] sm:$0xff]
        %v1062 = vld [vmem:[#allocation2 + $0x8] sm:$0xff]
        %v1063 = vld [vmem:[#allocation2 + $0x10] sm:$0xff]
        %v1064 = vld [vmem:[#allocation2 + $0x18] sm:$0xff]
        %vm1065 = vcmask 64512
        %v1067 = vsel %vm1065, %v1061, 0
        %v1070 = vsel %vm1065, %v892, 0
        %1072 = vmatprep.subr.mxu0 0.0
        %1073 = vmatpush1.xpose.msra.mxu0 0.0
        %1074 = vmatprep.subr.mxu0 0.0
        %1075 = vmatpush1.xpose.msra.mxu0 0.0
        %1076 = vmatprep.subr.mxu0 0.0
        %1077 = vmatpush1.xpose.msra.mxu0 0.0
        %1078 = vmatprep.subr.mxu0 0.0
        %1079 = vmatpush1.xpose.msra.mxu0 0.0
        %1080 = vmatprep.subr.mxu0 0.0
        %1081 = vmatpush1.xpose.msra.mxu0 0.0
        %1082 = vmatprep.subr.mxu0 0.0
        %1083 = vmatpush1.xpose.msra.mxu0 0.0
        %1084 = vmatprep.subr.mxu0 0.0
        %1085 = vmatpush1.xpose.msra.mxu0 0.0
        %1086 = vmatprep.subr.mxu0 0.0
        %1087 = vmatpush1.xpose.msra.mxu0 0.0
        %1088 = vmatprep.subr.mxu0 0.0
        %1089 = vmatpush1.xpose.msra.mxu0 0.0
        %1090 = vmatprep.subr.mxu0 0.0
        %1091 = vmatpush1.xpose.msra.mxu0 0.0
        %1092 = vmatprep.subr.mxu0 0.0
        %1093 = vmatpush1.xpose.msra.mxu0 0.0
        %1094 = vmatprep.subr.mxu0 0.0
        %1095 = vmatpush1.xpose.msra.mxu0 0.0
        %1096 = vmatprep.subr.mxu0 0.0
        %1097 = vmatpush1.xpose.msra.mxu0 0.0
        %1098 = vmatprep.subr.mxu0 0.0
        %1099 = vmatpush1.xpose.msra.mxu0 0.0
        %1100 = vmatprep.subr.mxu0 0.0
        %1101 = vmatpush1.xpose.msra.mxu0 0.0
        %1102 = vmatprep.subr.mxu0 0.0
        %1103 = vmatpush1.xpose.msra.mxu0 %v1070
        %1104 = vmatprep.subr.mxu0 0.0
        %1105 = vmatpush2.xpose.msra.mxu0 0.0
        %1106 = vmatprep.subr.mxu0 0.0
        %1107 = vmatpush2.xpose.msra.mxu0 0.0
        %1108 = vmatprep.subr.mxu0 0.0
        %1109 = vmatpush2.xpose.msra.mxu0 0.0
        %1110 = vmatprep.subr.mxu0 0.0
        %1111 = vmatpush2.xpose.msra.mxu0 0.0
        %1112 = vmatprep.subr.mxu0 0.0
        %1113 = vmatpush2.xpose.msra.mxu0 0.0
        %1114 = vmatprep.subr.mxu0 0.0
        %1115 = vmatpush2.xpose.msra.mxu0 0.0
        %1116 = vmatprep.subr.mxu0 0.0
        %1117 = vmatpush2.xpose.msra.mxu0 0.0
        %1118 = vmatprep.subr.mxu0 0.0
        %1119 = vmatpush2.xpose.msra.mxu0 0.0
        %1120 = vmatprep.subr.mxu0 0.0
        %1121 = vmatpush2.xpose.msra.mxu0 0.0
        %1122 = vmatprep.subr.mxu0 0.0
        %1123 = vmatpush2.xpose.msra.mxu0 0.0
        %1124 = vmatprep.subr.mxu0 0.0
        %1125 = vmatpush2.xpose.msra.mxu0 0.0
        %1126 = vmatprep.subr.mxu0 0.0
        %1127 = vmatpush2.xpose.msra.mxu0 0.0
        %1128 = vmatprep.subr.mxu0 0.0
        %1129 = vmatpush2.xpose.msra.mxu0 0.0
        %1130 = vmatprep.subr.mxu0 0.0
        %1131 = vmatpush2.xpose.msra.mxu0 0.0
        %1132 = vmatprep.subr.mxu0 0.0
        %1133 = vmatpush2.xpose.msra.mxu0 0.0
        %1134 = vmatprep.subr.mxu0 0.0
        %1135 = vmatpush2.xpose.msra.mxu0 0.0
        %1136 = vmatprep.mubr.f32.mxu0 0.0
        %1137 = vmatmul.mubr.f32.gmra.mxu0 %v1067
        %v1138 = vpop.f32.mrf.mxu0
        %v1139 = vadd.f32 0.0, %v1138
        %v1140 = vpop.f32.mrf.mxu0
        %1141 = vdwg.mxu0
        %v1143 = vsel %vm1065, %v1062, 0
        %v1146 = vsel %vm1065, %v893, 0
        %1148 = vmatprep.subr.mxu0 0.0
        %1149 = vmatpush1.xpose.msra.mxu0 0.0
        %1150 = vmatprep.subr.mxu0 0.0
        %1151 = vmatpush1.xpose.msra.mxu0 0.0
        %1152 = vmatprep.subr.mxu0 0.0
        %1153 = vmatpush1.xpose.msra.mxu0 0.0
        %1154 = vmatprep.subr.mxu0 0.0
        %1155 = vmatpush1.xpose.msra.mxu0 0.0
        %1156 = vmatprep.subr.mxu0 0.0
        %1157 = vmatpush1.xpose.msra.mxu0 0.0
        %1158 = vmatprep.subr.mxu0 0.0
        %1159 = vmatpush1.xpose.msra.mxu0 0.0
        %1160 = vmatprep.subr.mxu0 0.0
        %1161 = vmatpush1.xpose.msra.mxu0 0.0
        %1162 = vmatprep.subr.mxu0 0.0
        %1163 = vmatpush1.xpose.msra.mxu0 0.0
        %1164 = vmatprep.subr.mxu0 0.0
        %1165 = vmatpush1.xpose.msra.mxu0 0.0
        %1166 = vmatprep.subr.mxu0 0.0
        %1167 = vmatpush1.xpose.msra.mxu0 0.0
        %1168 = vmatprep.subr.mxu0 0.0
        %1169 = vmatpush1.xpose.msra.mxu0 0.0
        %1170 = vmatprep.subr.mxu0 0.0
        %1171 = vmatpush1.xpose.msra.mxu0 0.0
        %1172 = vmatprep.subr.mxu0 0.0
        %1173 = vmatpush1.xpose.msra.mxu0 0.0
        %1174 = vmatprep.subr.mxu0 0.0
        %1175 = vmatpush1.xpose.msra.mxu0 0.0
        %1176 = vmatprep.subr.mxu0 0.0
        %1177 = vmatpush1.xpose.msra.mxu0 0.0
        %1178 = vmatprep.subr.mxu0 0.0
        %1179 = vmatpush1.xpose.msra.mxu0 %v1146
        %1180 = vmatprep.subr.mxu0 0.0
        %1181 = vmatpush2.xpose.msra.mxu0 0.0
        %1182 = vmatprep.subr.mxu0 0.0
        %1183 = vmatpush2.xpose.msra.mxu0 0.0
        %1184 = vmatprep.subr.mxu0 0.0
        %1185 = vmatpush2.xpose.msra.mxu0 0.0
        %1186 = vmatprep.subr.mxu0 0.0
        %1187 = vmatpush2.xpose.msra.mxu0 0.0
        %1188 = vmatprep.subr.mxu0 0.0
        %1189 = vmatpush2.xpose.msra.mxu0 0.0
        %1190 = vmatprep.subr.mxu0 0.0
        %1191 = vmatpush2.xpose.msra.mxu0 0.0
        %1192 = vmatprep.subr.mxu0 0.0
        %1193 = vmatpush2.xpose.msra.mxu0 0.0
        %1194 = vmatprep.subr.mxu0 0.0
        %1195 = vmatpush2.xpose.msra.mxu0 0.0
        %1196 = vmatprep.subr.mxu0 0.0
        %1197 = vmatpush2.xpose.msra.mxu0 0.0
        %1198 = vmatprep.subr.mxu0 0.0
        %1199 = vmatpush2.xpose.msra.mxu0 0.0
        %1200 = vmatprep.subr.mxu0 0.0
        %1201 = vmatpush2.xpose.msra.mxu0 0.0
        %1202 = vmatprep.subr.mxu0 0.0
        %1203 = vmatpush2.xpose.msra.mxu0 0.0
        %1204 = vmatprep.subr.mxu0 0.0
        %1205 = vmatpush2.xpose.msra.mxu0 0.0
        %1206 = vmatprep.subr.mxu0 0.0
        %1207 = vmatpush2.xpose.msra.mxu0 0.0
        %1208 = vmatprep.subr.mxu0 0.0
        %1209 = vmatpush2.xpose.msra.mxu0 0.0
        %1210 = vmatprep.subr.mxu0 0.0
        %1211 = vmatpush2.xpose.msra.mxu0 0.0
        %1212 = vmatprep.mubr.f32.mxu0 0.0
        %1213 = vmatmul.mubr.f32.gmra.mxu0 %v1143
        %v1214 = vpop.f32.mrf.mxu0
        %v1215 = vadd.f32 0.0, %v1214
        %v1216 = vpop.f32.mrf.mxu0
        %1217 = vdwg.mxu0
        %v1219 = vsel %vm1065, %v1063, 0
        %v1222 = vsel %vm1065, %v894, 0
        %1224 = vmatprep.subr.mxu0 0.0
        %1225 = vmatpush1.xpose.msra.mxu0 0.0
        %1226 = vmatprep.subr.mxu0 0.0
        %1227 = vmatpush1.xpose.msra.mxu0 0.0
        %1228 = vmatprep.subr.mxu0 0.0
        %1229 = vmatpush1.xpose.msra.mxu0 0.0
        %1230 = vmatprep.subr.mxu0 0.0
        %1231 = vmatpush1.xpose.msra.mxu0 0.0
        %1232 = vmatprep.subr.mxu0 0.0
        %1233 = vmatpush1.xpose.msra.mxu0 0.0
        %1234 = vmatprep.subr.mxu0 0.0
        %1235 = vmatpush1.xpose.msra.mxu0 0.0
        %1236 = vmatprep.subr.mxu0 0.0
        %1237 = vmatpush1.xpose.msra.mxu0 0.0
        %1238 = vmatprep.subr.mxu0 0.0
        %1239 = vmatpush1.xpose.msra.mxu0 0.0
        %1240 = vmatprep.subr.mxu0 0.0
        %1241 = vmatpush1.xpose.msra.mxu0 0.0
        %1242 = vmatprep.subr.mxu0 0.0
        %1243 = vmatpush1.xpose.msra.mxu0 0.0
        %1244 = vmatprep.subr.mxu0 0.0
        %1245 = vmatpush1.xpose.msra.mxu0 0.0
        %1246 = vmatprep.subr.mxu0 0.0
        %1247 = vmatpush1.xpose.msra.mxu0 0.0
        %1248 = vmatprep.subr.mxu0 0.0
        %1249 = vmatpush1.xpose.msra.mxu0 0.0
        %1250 = vmatprep.subr.mxu0 0.0
        %1251 = vmatpush1.xpose.msra.mxu0 0.0
        %1252 = vmatprep.subr.mxu0 0.0
        %1253 = vmatpush1.xpose.msra.mxu0 0.0
        %1254 = vmatprep.subr.mxu0 0.0
        %1255 = vmatpush1.xpose.msra.mxu0 %v1222
        %1256 = vmatprep.subr.mxu0 0.0
        %1257 = vmatpush2.xpose.msra.mxu0 0.0
        %1258 = vmatprep.subr.mxu0 0.0
        %1259 = vmatpush2.xpose.msra.mxu0 0.0
        %1260 = vmatprep.subr.mxu0 0.0
        %1261 = vmatpush2.xpose.msra.mxu0 0.0
        %1262 = vmatprep.subr.mxu0 0.0
        %1263 = vmatpush2.xpose.msra.mxu0 0.0
        %1264 = vmatprep.subr.mxu0 0.0
        %1265 = vmatpush2.xpose.msra.mxu0 0.0
        %1266 = vmatprep.subr.mxu0 0.0
        %1267 = vmatpush2.xpose.msra.mxu0 0.0
        %1268 = vmatprep.subr.mxu0 0.0
        %1269 = vmatpush2.xpose.msra.mxu0 0.0
        %1270 = vmatprep.subr.mxu0 0.0
        %1271 = vmatpush2.xpose.msra.mxu0 0.0
        %1272 = vmatprep.subr.mxu0 0.0
        %1273 = vmatpush2.xpose.msra.mxu0 0.0
        %1274 = vmatprep.subr.mxu0 0.0
        %1275 = vmatpush2.xpose.msra.mxu0 0.0
        %1276 = vmatprep.subr.mxu0 0.0
        %1277 = vmatpush2.xpose.msra.mxu0 0.0
        %1278 = vmatprep.subr.mxu0 0.0
        %1279 = vmatpush2.xpose.msra.mxu0 0.0
        %1280 = vmatprep.subr.mxu0 0.0
        %1281 = vmatpush2.xpose.msra.mxu0 0.0
        %1282 = vmatprep.subr.mxu0 0.0
        %1283 = vmatpush2.xpose.msra.mxu0 0.0
        %1284 = vmatprep.subr.mxu0 0.0
        %1285 = vmatpush2.xpose.msra.mxu0 0.0
        %1286 = vmatprep.subr.mxu0 0.0
        %1287 = vmatpush2.xpose.msra.mxu0 0.0
        %1288 = vmatprep.mubr.f32.mxu0 0.0
        %1289 = vmatmul.mubr.f32.gmra.mxu0 %v1219
        %v1290 = vpop.f32.mrf.mxu0
        %v1291 = vadd.f32 0.0, %v1290
        %v1292 = vpop.f32.mrf.mxu0
        %1293 = vdwg.mxu0
        %v1295 = vsel %vm1065, %v1064, 0
        %v1298 = vsel %vm1065, %v895, 0
        %1300 = vmatprep.subr.mxu0 0.0
        %1301 = vmatpush1.xpose.msra.mxu0 0.0
        %1302 = vmatprep.subr.mxu0 0.0
        %1303 = vmatpush1.xpose.msra.mxu0 0.0
        %1304 = vmatprep.subr.mxu0 0.0
        %1305 = vmatpush1.xpose.msra.mxu0 0.0
        %1306 = vmatprep.subr.mxu0 0.0
        %1307 = vmatpush1.xpose.msra.mxu0 0.0
        %1308 = vmatprep.subr.mxu0 0.0
        %1309 = vmatpush1.xpose.msra.mxu0 0.0
        %1310 = vmatprep.subr.mxu0 0.0
        %1311 = vmatpush1.xpose.msra.mxu0 0.0
        %1312 = vmatprep.subr.mxu0 0.0
        %1313 = vmatpush1.xpose.msra.mxu0 0.0
        %1314 = vmatprep.subr.mxu0 0.0
        %1315 = vmatpush1.xpose.msra.mxu0 0.0
        %1316 = vmatprep.subr.mxu0 0.0
        %1317 = vmatpush1.xpose.msra.mxu0 0.0
        %1318 = vmatprep.subr.mxu0 0.0
        %1319 = vmatpush1.xpose.msra.mxu0 0.0
        %1320 = vmatprep.subr.mxu0 0.0
        %1321 = vmatpush1.xpose.msra.mxu0 0.0
        %1322 = vmatprep.subr.mxu0 0.0
        %1323 = vmatpush1.xpose.msra.mxu0 0.0
        %1324 = vmatprep.subr.mxu0 0.0
        %1325 = vmatpush1.xpose.msra.mxu0 0.0
        %1326 = vmatprep.subr.mxu0 0.0
        %1327 = vmatpush1.xpose.msra.mxu0 0.0
        %1328 = vmatprep.subr.mxu0 0.0
        %1329 = vmatpush1.xpose.msra.mxu0 0.0
        %1330 = vmatprep.subr.mxu0 0.0
        %1331 = vmatpush1.xpose.msra.mxu0 %v1298
        %1332 = vmatprep.subr.mxu0 0.0
        %1333 = vmatpush2.xpose.msra.mxu0 0.0
        %1334 = vmatprep.subr.mxu0 0.0
        %1335 = vmatpush2.xpose.msra.mxu0 0.0
        %1336 = vmatprep.subr.mxu0 0.0
        %1337 = vmatpush2.xpose.msra.mxu0 0.0
        %1338 = vmatprep.subr.mxu0 0.0
        %1339 = vmatpush2.xpose.msra.mxu0 0.0
        %1340 = vmatprep.subr.mxu0 0.0
        %1341 = vmatpush2.xpose.msra.mxu0 0.0
        %1342 = vmatprep.subr.mxu0 0.0
        %1343 = vmatpush2.xpose.msra.mxu0 0.0
        %1344 = vmatprep.subr.mxu0 0.0
        %1345 = vmatpush2.xpose.msra.mxu0 0.0
        %1346 = vmatprep.subr.mxu0 0.0
        %1347 = vmatpush2.xpose.msra.mxu0 0.0
        %1348 = vmatprep.subr.mxu0 0.0
        %1349 = vmatpush2.xpose.msra.mxu0 0.0
        %1350 = vmatprep.subr.mxu0 0.0
        %1351 = vmatpush2.xpose.msra.mxu0 0.0
        %1352 = vmatprep.subr.mxu0 0.0
        %1353 = vmatpush2.xpose.msra.mxu0 0.0
        %1354 = vmatprep.subr.mxu0 0.0
        %1355 = vmatpush2.xpose.msra.mxu0 0.0
        %1356 = vmatprep.subr.mxu0 0.0
        %1357 = vmatpush2.xpose.msra.mxu0 0.0
        %1358 = vmatprep.subr.mxu0 0.0
        %1359 = vmatpush2.xpose.msra.mxu0 0.0
        %1360 = vmatprep.subr.mxu0 0.0
        %1361 = vmatpush2.xpose.msra.mxu0 0.0
        %1362 = vmatprep.subr.mxu0 0.0
        %1363 = vmatpush2.xpose.msra.mxu0 0.0
        %1364 = vmatprep.mubr.f32.mxu0 0.0
        %1365 = vmatmul.mubr.f32.gmra.mxu0 %v1295
        %v1366 = vpop.f32.mrf.mxu0
        %v1367 = vadd.f32 0.0, %v1366
        %v1368 = vpop.f32.mrf.mxu0
        %1369 = vdwg.mxu0
        %v1370 = vld [vmem:[#allocation3] sm:$0xff]
        %v1371 = vld [vmem:[#allocation3 + $0x8] sm:$0xff]
        %v1372 = vld [vmem:[#allocation3 + $0x10] sm:$0xff]
        %v1373 = vld [vmem:[#allocation3 + $0x18] sm:$0xff]
        %v1374 = vsel %vm1065, %v1139, -inf
        %1375 = vmax.xlane.f32.xlu0 %v1374
        %v1376 = vpop.xlane.xlu0 %1375
        %v1377 = vsel %vm1065, %v1215, -inf
        %1378 = vmax.xlane.f32.xlu0 %v1377
        %v1379 = vpop.xlane.xlu0 %1378
        %v1380 = vsel %vm1065, %v1291, -inf
        %1381 = vmax.xlane.f32.xlu0 %v1380
        %v1382 = vpop.xlane.xlu0 %1381
        %v1383 = vsel %vm1065, %v1367, -inf
        %1384 = vmax.xlane.f32.xlu0 %v1383
        %v1385 = vpop.xlane.xlu0 %1384
        %v1386 = vmax.f32 %v1370, %v1376
        %v1387 = vmax.f32 %v1371, %v1379
        %v1388 = vmax.f32 %v1372, %v1382
        %v1389 = vmax.f32 %v1373, %v1385
        %v1390 = vsub.f32 %v1370, %v1386
        %v1391 = vsub.f32 %v1371, %v1387
        %v1392 = vsub.f32 %v1372, %v1388
        %v1393 = vsub.f32 %v1373, %v1389
        %v1394 = vmul.f32 %v1390, 1.442695
        %v1395 = vpow.pop %v1394
        %v1396 = vmul.f32 %v1391, 1.442695
        %v1397 = vpow.pop %v1396
        %v1398 = vmul.f32 %v1392, 1.442695
        %v1399 = vpow.pop %v1398
        %v1400 = vmul.f32 %v1393, 1.442695
        %v1401 = vpow.pop %v1400
        %1403 = vset.pattern.permute.xlu0 0
        %1404 = vperm.xlu0 %1403, %v1386
        %v1405 = vpop.permute.xlu0 %1404
        %1408 = vset.pattern.permute.xlu0 0
        %1409 = vperm.xlu0 %1408, %v1387
        %v1410 = vpop.permute.xlu0 %1409
        %1413 = vset.pattern.permute.xlu0 0
        %1414 = vperm.xlu0 %1413, %v1388
        %v1415 = vpop.permute.xlu0 %1414
        %1418 = vset.pattern.permute.xlu0 0
        %1419 = vperm.xlu0 %1418, %v1389
        %v1420 = vpop.permute.xlu0 %1419
        %v1422 = vsub.f32 %v1139, %v1405
        %v1423 = vsub.f32 %v1215, %v1410
        %v1424 = vsub.f32 %v1291, %v1415
        %v1425 = vsub.f32 %v1367, %v1420
        %v1426 = vmul.f32 %v1422, 1.442695
        %v1427 = vpow.pop %v1426
        %v1428 = vmul.f32 %v1423, 1.442695
        %v1429 = vpow.pop %v1428
        %v1430 = vmul.f32 %v1424, 1.442695
        %v1431 = vpow.pop %v1430
        %v1432 = vmul.f32 %v1425, 1.442695
        %v1433 = vpow.pop %v1432
        %v1434 = vld [vmem:[#allocation4] sm:$0xff]
        %v1435 = vld [vmem:[#allocation4 + $0x8] sm:$0xff]
        %v1436 = vld [vmem:[#allocation4 + $0x10] sm:$0xff]
        %v1437 = vld [vmem:[#allocation4 + $0x18] sm:$0xff]
        %v1438 = vmul.f32 %v1395, %v1434
        %v1439 = vmul.f32 %v1397, %v1435
        %v1440 = vmul.f32 %v1399, %v1436
        %v1441 = vmul.f32 %v1401, %v1437
        %v1442 = vsel %vm1065, %v1427, 0.0
        %1443 = vadd.xlane.f32.xlu0 %v1442
        %v1444 = vpop.xlane.xlu0 %1443
        %v1445 = vsel %vm1065, %v1429, 0.0
        %1446 = vadd.xlane.f32.xlu0 %v1445
        %v1447 = vpop.xlane.xlu0 %1446
        %v1448 = vsel %vm1065, %v1431, 0.0
        %1449 = vadd.xlane.f32.xlu0 %v1448
        %v1450 = vpop.xlane.xlu0 %1449
        %v1451 = vsel %vm1065, %v1433, 0.0
        %1452 = vadd.xlane.f32.xlu0 %v1451
        %v1453 = vpop.xlane.xlu0 %1452
        %v1454 = vadd.f32 %v1438, %v1444
        %v1455 = vadd.f32 %v1439, %v1447
        %v1456 = vadd.f32 %v1440, %v1450
        %v1457 = vadd.f32 %v1441, %v1453
        %vm1458 = vcmask 7168
        %1459 = vst.msk [vmem:[#allocation4] sm:$0xff] %vm1458, %v1454
        %1460 = vst.msk [vmem:[#allocation4 + $0x8] sm:$0xff] %vm1458, %v1455
        %1461 = vst.msk [vmem:[#allocation4 + $0x10] sm:$0xff] %vm1458, %v1456
        %1462 = vst.msk [vmem:[#allocation4 + $0x18] sm:$0xff] %vm1458, %v1457
        %v1463 = vld [vmem:[#allocation5] sm:$0xff]
        %v1464 = vld [vmem:[#allocation5 + $0x8] sm:$0xff]
        %v1465 = vld [vmem:[#allocation5 + $0x10] sm:$0xff]
        %v1466 = vld [vmem:[#allocation5 + $0x18] sm:$0xff]
        %1468 = vset.pattern.permute.xlu0 0
        %1469 = vperm.xlu0 %1468, %v1395
        %v1470 = vpop.permute.xlu0 %1469
        %1473 = vset.pattern.permute.xlu0 0
        %1474 = vperm.xlu0 %1473, %v1397
        %v1475 = vpop.permute.xlu0 %1474
        %1478 = vset.pattern.permute.xlu0 0
        %1479 = vperm.xlu0 %1478, %v1399
        %v1480 = vpop.permute.xlu0 %1479
        %1483 = vset.pattern.permute.xlu0 0
        %1484 = vperm.xlu0 %1483, %v1401
        %v1485 = vpop.permute.xlu0 %1484
        %v1487 = vmul.f32 %v1470, %v1463
        %v1488 = vmul.f32 %v1475, %v1464
        %v1489 = vmul.f32 %v1480, %v1465
        %v1490 = vmul.f32 %v1485, %v1466
        %v1492 = vsel %vm1065, %v1427, 0
        %1494 = vmatprep.subr.mxu0 0.0
        %1495 = vmatpush1.msra.mxu0 0.0
        %1496 = vmatprep.subr.mxu0 0.0
        %1497 = vmatpush1.msra.mxu0 0.0
        %1498 = vmatprep.subr.mxu0 0.0
        %1499 = vmatpush1.msra.mxu0 0.0
        %1500 = vmatprep.subr.mxu0 0.0
        %1501 = vmatpush1.msra.mxu0 0.0
        %1502 = vmatprep.subr.mxu0 0.0
        %1503 = vmatpush1.msra.mxu0 0.0
        %1504 = vmatprep.subr.mxu0 0.0
        %1505 = vmatpush1.msra.mxu0 0.0
        %1506 = vmatprep.subr.mxu0 0.0
        %1507 = vmatpush1.msra.mxu0 0.0
        %1508 = vmatprep.subr.mxu0 0.0
        %1509 = vmatpush1.msra.mxu0 0.0
        %1510 = vmatprep.subr.mxu0 0.0
        %1511 = vmatpush1.msra.mxu0 0.0
        %1512 = vmatprep.subr.mxu0 0.0
        %1513 = vmatpush1.msra.mxu0 0.0
        %1514 = vmatprep.subr.mxu0 0.0
        %1515 = vmatpush1.msra.mxu0 0.0
        %1516 = vmatprep.subr.mxu0 0.0
        %1517 = vmatpush1.msra.mxu0 0.0
        %1518 = vmatprep.subr.mxu0 0.0
        %1519 = vmatpush1.msra.mxu0 0.0
        %1520 = vmatprep.subr.mxu0 0.0
        %1521 = vmatpush1.msra.mxu0 0.0
        %1522 = vmatprep.subr.mxu0 0.0
        %1523 = vmatpush1.msra.mxu0 0.0
        %1524 = vmatprep.subr.mxu0 0.0
        %1525 = vmatpush1.msra.mxu0 %v1057
        %1526 = vmatprep.subr.mxu0 0.0
        %1527 = vmatpush2.msra.mxu0 0.0
        %1528 = vmatprep.subr.mxu0 0.0
        %1529 = vmatpush2.msra.mxu0 0.0
        %1530 = vmatprep.subr.mxu0 0.0
        %1531 = vmatpush2.msra.mxu0 0.0
        %1532 = vmatprep.subr.mxu0 0.0
        %1533 = vmatpush2.msra.mxu0 0.0
        %1534 = vmatprep.subr.mxu0 0.0
        %1535 = vmatpush2.msra.mxu0 0.0
        %1536 = vmatprep.subr.mxu0 0.0
        %1537 = vmatpush2.msra.mxu0 0.0
        %1538 = vmatprep.subr.mxu0 0.0
        %1539 = vmatpush2.msra.mxu0 0.0
        %1540 = vmatprep.subr.mxu0 0.0
        %1541 = vmatpush2.msra.mxu0 0.0
        %1542 = vmatprep.subr.mxu0 0.0
        %1543 = vmatpush2.msra.mxu0 0.0
        %1544 = vmatprep.subr.mxu0 0.0
        %1545 = vmatpush2.msra.mxu0 0.0
        %1546 = vmatprep.subr.mxu0 0.0
        %1547 = vmatpush2.msra.mxu0 0.0
        %1548 = vmatprep.subr.mxu0 0.0
        %1549 = vmatpush2.msra.mxu0 0.0
        %1550 = vmatprep.subr.mxu0 0.0
        %1551 = vmatpush2.msra.mxu0 0.0
        %1552 = vmatprep.subr.mxu0 0.0
        %1553 = vmatpush2.msra.mxu0 0.0
        %1554 = vmatprep.subr.mxu0 0.0
        %1555 = vmatpush2.msra.mxu0 0.0
        %1556 = vmatprep.subr.mxu0 0.0
        %1557 = vmatpush2.msra.mxu0 0.0
        %1558 = vmatprep.mubr.f32.mxu0 0.0
        %1559 = vmatmul.mubr.f32.gmra.mxu0 %v1492
        %v1560 = vpop.f32.mrf.mxu0
        %v1561 = vadd.f32 0.0, %v1560
        %v1562 = vpop.f32.mrf.mxu0
        %1563 = vdwg.mxu0
        %v1565 = vsel %vm1065, %v1429, 0
        %1567 = vmatprep.subr.mxu0 0.0
        %1568 = vmatpush1.msra.mxu0 0.0
        %1569 = vmatprep.subr.mxu0 0.0
        %1570 = vmatpush1.msra.mxu0 0.0
        %1571 = vmatprep.subr.mxu0 0.0
        %1572 = vmatpush1.msra.mxu0 0.0
        %1573 = vmatprep.subr.mxu0 0.0
        %1574 = vmatpush1.msra.mxu0 0.0
        %1575 = vmatprep.subr.mxu0 0.0
        %1576 = vmatpush1.msra.mxu0 0.0
        %1577 = vmatprep.subr.mxu0 0.0
        %1578 = vmatpush1.msra.mxu0 0.0
        %1579 = vmatprep.subr.mxu0 0.0
        %1580 = vmatpush1.msra.mxu0 0.0
        %1581 = vmatprep.subr.mxu0 0.0
        %1582 = vmatpush1.msra.mxu0 0.0
        %1583 = vmatprep.subr.mxu0 0.0
        %1584 = vmatpush1.msra.mxu0 0.0
        %1585 = vmatprep.subr.mxu0 0.0
        %1586 = vmatpush1.msra.mxu0 0.0
        %1587 = vmatprep.subr.mxu0 0.0
        %1588 = vmatpush1.msra.mxu0 0.0
        %1589 = vmatprep.subr.mxu0 0.0
        %1590 = vmatpush1.msra.mxu0 0.0
        %1591 = vmatprep.subr.mxu0 0.0
        %1592 = vmatpush1.msra.mxu0 0.0
        %1593 = vmatprep.subr.mxu0 0.0
        %1594 = vmatpush1.msra.mxu0 0.0
        %1595 = vmatprep.subr.mxu0 0.0
        %1596 = vmatpush1.msra.mxu0 0.0
        %1597 = vmatprep.subr.mxu0 0.0
        %1598 = vmatpush1.msra.mxu0 %v1058
        %1599 = vmatprep.subr.mxu0 0.0
        %1600 = vmatpush2.msra.mxu0 0.0
        %1601 = vmatprep.subr.mxu0 0.0
        %1602 = vmatpush2.msra.mxu0 0.0
        %1603 = vmatprep.subr.mxu0 0.0
        %1604 = vmatpush2.msra.mxu0 0.0
        %1605 = vmatprep.subr.mxu0 0.0
        %1606 = vmatpush2.msra.mxu0 0.0
        %1607 = vmatprep.subr.mxu0 0.0
        %1608 = vmatpush2.msra.mxu0 0.0
        %1609 = vmatprep.subr.mxu0 0.0
        %1610 = vmatpush2.msra.mxu0 0.0
        %1611 = vmatprep.subr.mxu0 0.0
        %1612 = vmatpush2.msra.mxu0 0.0
        %1613 = vmatprep.subr.mxu0 0.0
        %1614 = vmatpush2.msra.mxu0 0.0
        %1615 = vmatprep.subr.mxu0 0.0
        %1616 = vmatpush2.msra.mxu0 0.0
        %1617 = vmatprep.subr.mxu0 0.0
        %1618 = vmatpush2.msra.mxu0 0.0
        %1619 = vmatprep.subr.mxu0 0.0
        %1620 = vmatpush2.msra.mxu0 0.0
        %1621 = vmatprep.subr.mxu0 0.0
        %1622 = vmatpush2.msra.mxu0 0.0
        %1623 = vmatprep.subr.mxu0 0.0
        %1624 = vmatpush2.msra.mxu0 0.0
        %1625 = vmatprep.subr.mxu0 0.0
        %1626 = vmatpush2.msra.mxu0 0.0
        %1627 = vmatprep.subr.mxu0 0.0
        %1628 = vmatpush2.msra.mxu0 0.0
        %1629 = vmatprep.subr.mxu0 0.0
        %1630 = vmatpush2.msra.mxu0 0.0
        %1631 = vmatprep.mubr.f32.mxu0 0.0
        %1632 = vmatmul.mubr.f32.gmra.mxu0 %v1565
        %v1633 = vpop.f32.mrf.mxu0
        %v1634 = vadd.f32 0.0, %v1633
        %v1635 = vpop.f32.mrf.mxu0
        %1636 = vdwg.mxu0
        %v1638 = vsel %vm1065, %v1431, 0
        %1640 = vmatprep.subr.mxu0 0.0
        %1641 = vmatpush1.msra.mxu0 0.0
        %1642 = vmatprep.subr.mxu0 0.0
        %1643 = vmatpush1.msra.mxu0 0.0
        %1644 = vmatprep.subr.mxu0 0.0
        %1645 = vmatpush1.msra.mxu0 0.0
        %1646 = vmatprep.subr.mxu0 0.0
        %1647 = vmatpush1.msra.mxu0 0.0
        %1648 = vmatprep.subr.mxu0 0.0
        %1649 = vmatpush1.msra.mxu0 0.0
        %1650 = vmatprep.subr.mxu0 0.0
        %1651 = vmatpush1.msra.mxu0 0.0
        %1652 = vmatprep.subr.mxu0 0.0
        %1653 = vmatpush1.msra.mxu0 0.0
        %1654 = vmatprep.subr.mxu0 0.0
        %1655 = vmatpush1.msra.mxu0 0.0
        %1656 = vmatprep.subr.mxu0 0.0
        %1657 = vmatpush1.msra.mxu0 0.0
        %1658 = vmatprep.subr.mxu0 0.0
        %1659 = vmatpush1.msra.mxu0 0.0
        %1660 = vmatprep.subr.mxu0 0.0
        %1661 = vmatpush1.msra.mxu0 0.0
        %1662 = vmatprep.subr.mxu0 0.0
        %1663 = vmatpush1.msra.mxu0 0.0
        %1664 = vmatprep.subr.mxu0 0.0
        %1665 = vmatpush1.msra.mxu0 0.0
        %1666 = vmatprep.subr.mxu0 0.0
        %1667 = vmatpush1.msra.mxu0 0.0
        %1668 = vmatprep.subr.mxu0 0.0
        %1669 = vmatpush1.msra.mxu0 0.0
        %1670 = vmatprep.subr.mxu0 0.0
        %1671 = vmatpush1.msra.mxu0 %v1059
        %1672 = vmatprep.subr.mxu0 0.0
        %1673 = vmatpush2.msra.mxu0 0.0
        %1674 = vmatprep.subr.mxu0 0.0
        %1675 = vmatpush2.msra.mxu0 0.0
        %1676 = vmatprep.subr.mxu0 0.0
        %1677 = vmatpush2.msra.mxu0 0.0
        %1678 = vmatprep.subr.mxu0 0.0
        %1679 = vmatpush2.msra.mxu0 0.0
        %1680 = vmatprep.subr.mxu0 0.0
        %1681 = vmatpush2.msra.mxu0 0.0
        %1682 = vmatprep.subr.mxu0 0.0
        %1683 = vmatpush2.msra.mxu0 0.0
        %1684 = vmatprep.subr.mxu0 0.0
        %1685 = vmatpush2.msra.mxu0 0.0
        %1686 = vmatprep.subr.mxu0 0.0
        %1687 = vmatpush2.msra.mxu0 0.0
        %1688 = vmatprep.subr.mxu0 0.0
        %1689 = vmatpush2.msra.mxu0 0.0
        %1690 = vmatprep.subr.mxu0 0.0
        %1691 = vmatpush2.msra.mxu0 0.0
        %1692 = vmatprep.subr.mxu0 0.0
        %1693 = vmatpush2.msra.mxu0 0.0
        %1694 = vmatprep.subr.mxu0 0.0
        %1695 = vmatpush2.msra.mxu0 0.0
        %1696 = vmatprep.subr.mxu0 0.0
        %1697 = vmatpush2.msra.mxu0 0.0
        %1698 = vmatprep.subr.mxu0 0.0
        %1699 = vmatpush2.msra.mxu0 0.0
        %1700 = vmatprep.subr.mxu0 0.0
        %1701 = vmatpush2.msra.mxu0 0.0
        %1702 = vmatprep.subr.mxu0 0.0
        %1703 = vmatpush2.msra.mxu0 0.0
        %1704 = vmatprep.mubr.f32.mxu0 0.0
        %1705 = vmatmul.mubr.f32.gmra.mxu0 %v1638
        %v1706 = vpop.f32.mrf.mxu0
        %v1707 = vadd.f32 0.0, %v1706
        %v1708 = vpop.f32.mrf.mxu0
        %1709 = vdwg.mxu0
        %v1711 = vsel %vm1065, %v1433, 0
        %1713 = vmatprep.subr.mxu0 0.0
        %1714 = vmatpush1.msra.mxu0 0.0
        %1715 = vmatprep.subr.mxu0 0.0
        %1716 = vmatpush1.msra.mxu0 0.0
        %1717 = vmatprep.subr.mxu0 0.0
        %1718 = vmatpush1.msra.mxu0 0.0
        %1719 = vmatprep.subr.mxu0 0.0
        %1720 = vmatpush1.msra.mxu0 0.0
        %1721 = vmatprep.subr.mxu0 0.0
        %1722 = vmatpush1.msra.mxu0 0.0
        %1723 = vmatprep.subr.mxu0 0.0
        %1724 = vmatpush1.msra.mxu0 0.0
        %1725 = vmatprep.subr.mxu0 0.0
        %1726 = vmatpush1.msra.mxu0 0.0
        %1727 = vmatprep.subr.mxu0 0.0
        %1728 = vmatpush1.msra.mxu0 0.0
        %1729 = vmatprep.subr.mxu0 0.0
        %1730 = vmatpush1.msra.mxu0 0.0
        %1731 = vmatprep.subr.mxu0 0.0
        %1732 = vmatpush1.msra.mxu0 0.0
        %1733 = vmatprep.subr.mxu0 0.0
        %1734 = vmatpush1.msra.mxu0 0.0
        %1735 = vmatprep.subr.mxu0 0.0
        %1736 = vmatpush1.msra.mxu0 0.0
        %1737 = vmatprep.subr.mxu0 0.0
        %1738 = vmatpush1.msra.mxu0 0.0
        %1739 = vmatprep.subr.mxu0 0.0
        %1740 = vmatpush1.msra.mxu0 0.0
        %1741 = vmatprep.subr.mxu0 0.0
        %1742 = vmatpush1.msra.mxu0 0.0
        %1743 = vmatprep.subr.mxu0 0.0
        %1744 = vmatpush1.msra.mxu0 %v1060
        %1745 = vmatprep.subr.mxu0 0.0
        %1746 = vmatpush2.msra.mxu0 0.0
        %1747 = vmatprep.subr.mxu0 0.0
        %1748 = vmatpush2.msra.mxu0 0.0
        %1749 = vmatprep.subr.mxu0 0.0
        %1750 = vmatpush2.msra.mxu0 0.0
        %1751 = vmatprep.subr.mxu0 0.0
        %1752 = vmatpush2.msra.mxu0 0.0
        %1753 = vmatprep.subr.mxu0 0.0
        %1754 = vmatpush2.msra.mxu0 0.0
        %1755 = vmatprep.subr.mxu0 0.0
        %1756 = vmatpush2.msra.mxu0 0.0
        %1757 = vmatprep.subr.mxu0 0.0
        %1758 = vmatpush2.msra.mxu0 0.0
        %1759 = vmatprep.subr.mxu0 0.0
        %1760 = vmatpush2.msra.mxu0 0.0
        %1761 = vmatprep.subr.mxu0 0.0
        %1762 = vmatpush2.msra.mxu0 0.0
        %1763 = vmatprep.subr.mxu0 0.0
        %1764 = vmatpush2.msra.mxu0 0.0
        %1765 = vmatprep.subr.mxu0 0.0
        %1766 = vmatpush2.msra.mxu0 0.0
        %1767 = vmatprep.subr.mxu0 0.0
        %1768 = vmatpush2.msra.mxu0 0.0
        %1769 = vmatprep.subr.mxu0 0.0
        %1770 = vmatpush2.msra.mxu0 0.0
        %1771 = vmatprep.subr.mxu0 0.0
        %1772 = vmatpush2.msra.mxu0 0.0
        %1773 = vmatprep.subr.mxu0 0.0
        %1774 = vmatpush2.msra.mxu0 0.0
        %1775 = vmatprep.subr.mxu0 0.0
        %1776 = vmatpush2.msra.mxu0 0.0
        %1777 = vmatprep.mubr.f32.mxu0 0.0
        %1778 = vmatmul.mubr.f32.gmra.mxu0 %v1711
        %v1779 = vpop.f32.mrf.mxu0
        %v1780 = vadd.f32 0.0, %v1779
        %v1781 = vpop.f32.mrf.mxu0
        %1782 = vdwg.mxu0
        %v1783 = vadd.f32 %v1487, %v1561
        %v1784 = vadd.f32 %v1488, %v1634
        %v1785 = vadd.f32 %v1489, %v1707
        %v1786 = vadd.f32 %v1490, %v1780
        %1787 = vst.msk [vmem:[#allocation5] sm:$0xff] %vm1065, %v1783
        %1788 = vst.msk [vmem:[#allocation5 + $0x8] sm:$0xff] %vm1065, %v1784
        %1789 = vst.msk [vmem:[#allocation5 + $0x10] sm:$0xff] %vm1065, %v1785
        %1790 = vst.msk [vmem:[#allocation5 + $0x18] sm:$0xff] %vm1065, %v1786
        %1791 = vst.msk [vmem:[#allocation3] sm:$0xff] %vm1458, %v1386
        %1792 = vst.msk [vmem:[#allocation3 + $0x8] sm:$0xff] %vm1458, %v1387
        %1793 = vst.msk [vmem:[#allocation3 + $0x10] sm:$0xff] %vm1458, %v1388
        %1794 = vst.msk [vmem:[#allocation3 + $0x18] sm:$0xff] %vm1458, %v1389
        %p1795 = scmp.eq.s32.totalorder %s34, 1
        // Predicated region
        $region77: #{tpu_custom_call.1} parent=51 // pred_check
          %p1796 = pneg %p1795
        $region78: #{tpu_custom_call.1} parent=51 // pred_check_branch
          %1798 = sbr.rel (%p1796) target = $region80
        $region79: #{tpu_custom_call.1} parent=51 // pred_region
          %v1799 = vld [vmem:[#allocation5] sm:$0xff]
          %v1800 = vld [vmem:[#allocation5 + $0x8] sm:$0xff]
          %v1801 = vld [vmem:[#allocation5 + $0x10] sm:$0xff]
          %v1802 = vld [vmem:[#allocation5 + $0x18] sm:$0xff]
          %v1803 = vld [vmem:[#allocation4] sm:$0xff]
          %v1804 = vld [vmem:[#allocation4 + $0x8] sm:$0xff]
          %v1805 = vld [vmem:[#allocation4 + $0x10] sm:$0xff]
          %v1806 = vld [vmem:[#allocation4 + $0x18] sm:$0xff]
          %v1807 = vrcp.pop %v1803
          %v1808 = vrcp.pop %v1804
          %v1809 = vrcp.pop %v1805
          %v1810 = vrcp.pop %v1806
          %1812 = vset.pattern.permute.xlu0 0
          %1813 = vperm.xlu0 %1812, %v1807
          %v1814 = vpop.permute.xlu0 %1813
          %1817 = vset.pattern.permute.xlu0 0
          %1818 = vperm.xlu0 %1817, %v1808
          %v1819 = vpop.permute.xlu0 %1818
          %1822 = vset.pattern.permute.xlu0 0
          %1823 = vperm.xlu0 %1822, %v1809
          %v1824 = vpop.permute.xlu0 %1823
          %1827 = vset.pattern.permute.xlu0 0
          %1828 = vperm.xlu0 %1827, %v1810
          %v1829 = vpop.permute.xlu0 %1828
          %v1831 = vmul.f32 %v1799, %v1814
          %v1832 = vmul.f32 %v1800, %v1819
          %v1833 = vmul.f32 %v1801, %v1824
          %v1834 = vmul.f32 %v1802, %v1829
          %v1835 = vcombine.low %v1831, %v1833
          %v1836 = vcombine.high %v1831, %v1833
          %v1838 = vunpack.c.l.s4 1983009808
          %v1839 = vunpack.c.0.s8 %v1838
          %v1840 = vlaneseq
          %v1841 = vshrl.u32 %v1840, 7
          %v1842 = vsub.s32 %v1839, %v1841
          %v1843 = vrot.slane %v1835, %v1842
          %v1845 = vunpack.c.l.s4 1983009808
          %v1846 = vunpack.c.0.s8 %v1845
          %v1847 = vlaneseq
          %v1848 = vshrl.u32 %v1847, 7
          %v1849 = vsub.s32 %v1846, %v1848
          %v1850 = vrot.slane %v1836, %v1849
          %v1851 = vcombine.low %v1832, %v1834
          %v1852 = vcombine.high %v1832, %v1834
          %v1854 = vunpack.c.l.s4 1983009808
          %v1855 = vunpack.c.0.s8 %v1854
          %v1856 = vlaneseq
          %v1857 = vshrl.u32 %v1856, 7
          %v1858 = vsub.s32 %v1855, %v1857
          %v1859 = vrot.slane %v1851, %v1858
          %v1861 = vunpack.c.l.s4 1983009808
          %v1862 = vunpack.c.0.s8 %v1861
          %v1863 = vlaneseq
          %v1864 = vshrl.u32 %v1863, 7
          %v1865 = vsub.s32 %v1862, %v1864
          %v1866 = vrot.slane %v1852, %v1865
          %v1867 = vcombine.low %v1843, %v1859
          %v1868 = vcombine.high %v1843, %v1859
          %v1870 = vunpack.c.l.s4 1934713408
          %v1871 = vunpack.c.0.s8 %v1870
          %v1872 = vlaneseq
          %v1873 = vshrl.u32 %v1872, 7
          %v1874 = vsub.s32 %v1871, %v1873
          %v1875 = vrot.slane %v1867, %v1874
          %v1877 = vunpack.c.l.s4 1934713408
          %v1878 = vunpack.c.0.s8 %v1877
          %v1879 = vlaneseq
          %v1880 = vshrl.u32 %v1879, 7
          %v1881 = vsub.s32 %v1878, %v1880
          %v1882 = vrot.slane %v1868, %v1881
          %v1883 = vcombine.low %v1850, %v1866
          %v1884 = vcombine.high %v1850, %v1866
          %v1886 = vunpack.c.l.s4 1934713408
          %v1887 = vunpack.c.0.s8 %v1886
          %v1888 = vlaneseq
          %v1889 = vshrl.u32 %v1888, 7
          %v1890 = vsub.s32 %v1887, %v1889
          %v1891 = vrot.slane %v1883, %v1890
          %v1893 = vunpack.c.l.s4 1934713408
          %v1894 = vunpack.c.0.s8 %v1893
          %v1895 = vlaneseq
          %v1896 = vshrl.u32 %v1895, 7
          %v1897 = vsub.s32 %v1894, %v1896
          %v1898 = vrot.slane %v1884, %v1897
          %v1899 = vcombine.high %v1875, 0.0
          %v1900 = vcombine.high %v1882, 0.0
          %v1901 = vcombine.high %v1891, 0.0
          %v1902 = vcombine.high %v1898, 0.0
          %v1903 = vcombine.low %v1875, %v1882
          %v1905 = vunpack.c.l.s4 1983009808
          %v1906 = vunpack.c.0.s8 %v1905
          %v1907 = vlaneseq
          %v1908 = vshrl.u32 %v1907, 7
          %v1909 = vsub.s32 %v1906, %v1908
          %v1910 = vrot.slane %v1903, %v1909
          %v1911 = vcombine.low %v1899, %v1900
          %v1913 = vunpack.c.l.s4 1983009808
          %v1914 = vunpack.c.0.s8 %v1913
          %v1915 = vlaneseq
          %v1916 = vshrl.u32 %v1915, 7
          %v1917 = vsub.s32 %v1914, %v1916
          %v1918 = vrot.slane %v1911, %v1917
          %v1919 = vcombine.low %v1891, %v1898
          %v1921 = vunpack.c.l.s4 1983009808
          %v1922 = vunpack.c.0.s8 %v1921
          %v1923 = vlaneseq
          %v1924 = vshrl.u32 %v1923, 7
          %v1925 = vsub.s32 %v1922, %v1924
          %v1926 = vrot.slane %v1919, %v1925
          %v1927 = vcombine.low %v1901, %v1902
          %v1929 = vunpack.c.l.s4 1983009808
          %v1930 = vunpack.c.0.s8 %v1929
          %v1931 = vlaneseq
          %v1932 = vshrl.u32 %v1931, 7
          %v1933 = vsub.s32 %v1930, %v1932
          %v1934 = vrot.slane %v1927, %v1933
          %v1935 = vcombine.low %v1910, %v1918
          %v1936 = vcombine.high %v1910, %v1918
          %v1938 = vunpack.c.l.s4 1934713408
          %v1939 = vunpack.c.0.s8 %v1938
          %v1940 = vlaneseq
          %v1941 = vshrl.u32 %v1940, 7
          %v1942 = vsub.s32 %v1939, %v1941
          %v1943 = vrot.slane %v1935, %v1942
          %v1945 = vunpack.c.l.s4 1934713408
          %v1946 = vunpack.c.0.s8 %v1945
          %v1947 = vlaneseq
          %v1948 = vshrl.u32 %v1947, 7
          %v1949 = vsub.s32 %v1946, %v1948
          %v1950 = vrot.slane %v1936, %v1949
          %v1951 = vcombine.low %v1926, %v1934
          %v1952 = vcombine.high %v1926, %v1934
          %v1954 = vunpack.c.l.s4 1934713408
          %v1955 = vunpack.c.0.s8 %v1954
          %v1956 = vlaneseq
          %v1957 = vshrl.u32 %v1956, 7
          %v1958 = vsub.s32 %v1955, %v1957
          %v1959 = vrot.slane %v1951, %v1958
          %v1961 = vunpack.c.l.s4 1934713408
          %v1962 = vunpack.c.0.s8 %v1961
          %v1963 = vlaneseq
          %v1964 = vshrl.u32 %v1963, 7
          %v1965 = vsub.s32 %v1962, %v1964
          %v1966 = vrot.slane %v1952, %v1965
          %v1967 = vcombine.low %v1943, %v1959
          %v1968 = vcombine.high %v1943, %v1959
          %v1969 = vcombine.low %v1950, %v1966
          %v1970 = vcombine.high %v1950, %v1966
          %1972 = vrot.lane.b32.xlu0 %v1968, 8
          %v1973 = vpop.permute.xlu0 %1972
          %1976 = vrot.lane.b32.xlu0 %v1969, 16
          %v1977 = vpop.permute.xlu0 %1976
          %1980 = vrot.lane.b32.xlu0 %v1970, 24
          %v1981 = vpop.permute.xlu0 %1980
          %v1983 = vsel %vm1065, %v1967, %v1973
          %vm1984 = vcmask 130048
          %v1985 = vsel %vm1984, %v1983, %v1977
          %vm1986 = vcmask 195584
          %v1987 = vsel %vm1986, %v1985, %v1981
          %v1988 = vld [vmem:[#allocation14] sm:$0xff]
          %v1989 = vld [vmem:[#allocation14 + $0x8] sm:$0xff]
          %v1990 = vld [vmem:[#allocation14 + $0x10] sm:$0xff]
          %v1991 = vld [vmem:[#allocation14 + $0x18] sm:$0xff]
          %v1992 = vld [vmem:[%s7] sm:$0x1]
          %v1994 = vlaneseq
          %v1995 = vshrl.u32 %v1994, 7
          %v1996 = vsub.s32 0, %v1995
          %v1997 = vrot.slane %v1992, %v1996
          %v2000 = vsel %vm676, %v1987, 0
          %2002 = vmatprep.subr.mxu0 0.0
          %2003 = vmatpush1.msra.mxu0 0.0
          %2004 = vmatprep.subr.mxu0 0.0
          %2005 = vmatpush1.msra.mxu0 0.0
          %2006 = vmatprep.subr.mxu0 0.0
          %2007 = vmatpush1.msra.mxu0 0.0
          %2008 = vmatprep.subr.mxu0 0.0
          %2009 = vmatpush1.msra.mxu0 0.0
          %2010 = vmatprep.subr.mxu0 0.0
          %2011 = vmatpush1.msra.mxu0 0.0
          %2012 = vmatprep.subr.mxu0 0.0
          %2013 = vmatpush1.msra.mxu0 0.0
          %2014 = vmatprep.subr.mxu0 0.0
          %2015 = vmatpush1.msra.mxu0 0.0
          %2016 = vmatprep.subr.mxu0 0.0
          %2017 = vmatpush1.msra.mxu0 0.0
          %2018 = vmatprep.subr.mxu0 0.0
          %2019 = vmatpush1.msra.mxu0 0.0
          %2020 = vmatprep.subr.mxu0 0.0
          %2021 = vmatpush1.msra.mxu0 0.0
          %2022 = vmatprep.subr.mxu0 0.0
          %2023 = vmatpush1.msra.mxu0 0.0
          %2024 = vmatprep.subr.mxu0 0.0
          %2025 = vmatpush1.msra.mxu0 0.0
          %2026 = vmatprep.subr.mxu0 0.0
          %2027 = vmatpush1.msra.mxu0 %v1991
          %2028 = vmatprep.subr.mxu0 0.0
          %2029 = vmatpush1.msra.mxu0 %v1990
          %2030 = vmatprep.subr.mxu0 0.0
          %2031 = vmatpush1.msra.mxu0 %v1989
          %2032 = vmatprep.subr.mxu0 0.0
          %2033 = vmatpush1.msra.mxu0 %v1988
          %2034 = vmatprep.subr.mxu0 0.0
          %2035 = vmatpush2.msra.mxu0 0.0
          %2036 = vmatprep.subr.mxu0 0.0
          %2037 = vmatpush2.msra.mxu0 0.0
          %2038 = vmatprep.subr.mxu0 0.0
          %2039 = vmatpush2.msra.mxu0 0.0
          %2040 = vmatprep.subr.mxu0 0.0
          %2041 = vmatpush2.msra.mxu0 0.0
          %2042 = vmatprep.subr.mxu0 0.0
          %2043 = vmatpush2.msra.mxu0 0.0
          %2044 = vmatprep.subr.mxu0 0.0
          %2045 = vmatpush2.msra.mxu0 0.0
          %2046 = vmatprep.subr.mxu0 0.0
          %2047 = vmatpush2.msra.mxu0 0.0
          %2048 = vmatprep.subr.mxu0 0.0
          %2049 = vmatpush2.msra.mxu0 0.0
          %2050 = vmatprep.subr.mxu0 0.0
          %2051 = vmatpush2.msra.mxu0 0.0
          %2052 = vmatprep.subr.mxu0 0.0
          %2053 = vmatpush2.msra.mxu0 0.0
          %2054 = vmatprep.subr.mxu0 0.0
          %2055 = vmatpush2.msra.mxu0 0.0
          %2056 = vmatprep.subr.mxu0 0.0
          %2057 = vmatpush2.msra.mxu0 0.0
          %2058 = vmatprep.subr.mxu0 0.0
          %2059 = vmatpush2.msra.mxu0 0.0
          %2060 = vmatprep.subr.mxu0 0.0
          %2061 = vmatpush2.msra.mxu0 0.0
          %2062 = vmatprep.subr.mxu0 0.0
          %2063 = vmatpush2.msra.mxu0 0.0
          %2064 = vmatprep.subr.mxu0 0.0
          %2065 = vmatpush2.msra.mxu0 0.0
          %2066 = vmatprep.mubr.f32.mxu0 0.0
          %2067 = vmatmul.mubr.f32.gmra.mxu0 %v2000
          %v2068 = vpop.f32.mrf.mxu0
          %v2069 = vadd.f32 %v1997, %v2068
          %v2070 = vpop.f32.mrf.mxu0
          %2071 = vdwg.mxu0
          %2072 = vst.msk [vmem:[%s416] sm:$0xff] %vm676, %v2069
        $region80: #{tpu_custom_call.1} parent=51 // pred_fallthru
          _
        %s2073 = sand.u32 %s229, 1
        %s2074 = scalar_lea.sflag [#allocation8], %s2073
        %s2075 = sand.u32 %s229, 1
        %s2076 = smul.addr %s2075, 8
        %s2077 = scalar_lea.vmem [#allocation15], %s2076
        // Predicated region
        $region81: #{tpu_custom_call.1} parent=51 // pred_check
          %p2078 = pneg %p239
        $region82: #{tpu_custom_call.1} parent=51 // pred_check_branch
          %2080 = sbr.rel (%p2078) target = $region84
        $region83: #{tpu_custom_call.1} parent=51 // pred_region
          %s2082 = ssub.s32 128, 128
          %2083 = vsyncadd %s2074, %s2082
          %s2084 = smul.addr %s33, 128
          %s2085 = scalar_lea.hbm %s8, %s2084
          %s2087 = sshll.u32 %s2077, 4
          %s2088 = int_to_ptr.vmem [resolvable:$true] %s2087
          %2090 = dma.vmem_to_hbm [thread:$0]  %s2088, 128, %s2085, %s2074
        $region84: #{tpu_custom_call.1} parent=51 // pred_fallthru
          _
      $region52: #{tpu_custom_call.1} parent=5 // pred_fallthru
        _
      %p2091 = scmp.le.s32.totalorder 2, %s24
      // Predicated region
      $region85: #{tpu_custom_call.1} parent=5 // pred_check
        %p2092 = pneg %p2091
      $region86: #{tpu_custom_call.1} parent=5 // pred_check_branch
        %2094 = sbr.rel (%p2092) target = $region88
      $region87: #{tpu_custom_call.1} parent=5 // pred_region
        %s2095 = ssub.s32 %s24, 2
        // Predicated region
        $region89: #{tpu_custom_call.1} parent=87 // pred_check
          %p2096 = pneg %p245
        $region90: #{tpu_custom_call.1} parent=87 // pred_check_branch
          %2098 = sbr.rel (%p2096) target = $region92
        $region91: #{tpu_custom_call.1} parent=87 // pred_region
          %s2099 = sand.u32 %s230, 1
          %s2100 = scalar_lea.sflag [#allocation8], %s2099
          %s2101 = sand.u32 %s230, 1
          %s2102 = smul.addr %s2101, 8
          %s2103 = scalar_lea.vmem [#allocation15], %s2102
          %2104 = dma.done %s2100, 128
        $region92: #{tpu_custom_call.1} parent=87 // pred_fallthru
          _
      $region88: #{tpu_custom_call.1} parent=5 // pred_fallthru
        _
    $region6: #{tpu_custom_call.1} parent=1 // loop_footer
      %s28 = sadd.s32 1, %s24
    $region7: #{tpu_custom_call.1} parent=1 // loop_footer_branch
      %23 = sbr.rel target = $region3
    $region8: #{tpu_custom_call.1} parent=1 // loop_exit
      _
    %2105 = vsyncpa [#allocation7], 1
    %s2106 = scalar_lea.sflag [#allocation7], 1
    %2107 = vsyncpa %s2106, 1
    %2108 = vsyncpa [#allocation10], 1
    %s2109 = scalar_lea.sflag [#allocation10], 1
    %2110 = vsyncpa %s2109, 1
    %2111 = vsyncpa [#allocation13], 1
    %2112 = vsyncpa [#allocation8], 1
    %s2113 = scalar_lea.sflag [#allocation8], 1
    %2114 = vsyncpa %s2113, 1

// kernel: tpu_custom_call.1
$region0: #{tpu_custom_call.1}
  #allocation0 [shape = 'u32[]', space=smem, size = 0x4, offset = 0x4, fixed_abs, tag = 'smem constant byte address 0x4 - core index']
  #allocation1 [shape = 'u32[144,128]{1,0:T(1,128)}', space=vmem, size = 0x12000, scoped, tag = 'internal scratch']
  #allocation2 [shape = 'f32[4,8,8]{2,1,0:T(8,128)}', space=vmem, size = 0x4000, scoped, tag = 'scratch operand']
  #allocation3 [shape = 'f32[4,8,1]{2,1,0:T(8,128)}', space=vmem, size = 0x4000, scoped, tag = 'scratch operand']
  #allocation4 [shape = 'f32[4,8,1]{2,1,0:T(8,128)}', space=vmem, size = 0x4000, scoped, tag = 'scratch operand']
  #allocation5 [shape = 'f32[4,8,8]{2,1,0:T(8,128)}', space=vmem, size = 0x4000, scoped, tag = 'scratch operand']
  %s0 = inlined_call_operand.hbm [shape: f32[2,8,32], index: 0, kind: input, shape index: {}]
  %s1 = inlined_call_operand.hbm [shape: f32[2,16,32], index: 1, kind: input, shape index: {}]
  %s2 = inlined_call_operand.hbm [shape: f32[32,32], index: 2, kind: input, shape index: {}]
  %s3 = inlined_call_operand.vmem [shape: f32[1,32], index: 3, kind: input, shape index: {}]
  %s4 = inlined_call_operand.hbm [shape: f32[32,64], index: 4, kind: input, shape index: {}]
  %s5 = inlined_call_operand.vmem [shape: f32[1,32], index: 5, kind: input, shape index: {}]
  %s6 = inlined_call_operand.hbm [shape: f32[32,32], index: 6, kind: input, shape index: {}]
  %s7 = inlined_call_operand.vmem [shape: f32[1,32], index: 7, kind: input, shape index: {}]
  %s8 = inlined_call_operand.hbm [shape: f32[2,8,32], index: 8, kind: output, shape index: {}]
  %s9 = sld [smem:[#allocation0]]
  $region93: #{tpu_custom_call.1} parent=0
    _
  %s11 = ssub.s32 1, %s9
  %s12 = scalar_select 0, %s11, %s9
  $region1: #{tpu_custom_call.1} parent=0
    #allocation6 [shape = 'u8[8192]{0}', space=vmem, size = 0x2000, scoped, tag = 'input window, operand 0']
    #allocation7 [shape = 's32[2]{0}', space=sflag, size = 0x8, scoped, tag = 'scoped memory for tpu_custom_call.1']
    #allocation8 [shape = 's32[2]{0}', space=sflag, size = 0x8, scoped, tag = 'scoped memory for tpu_custom_call.1']
    #allocation9 [shape = 'u8[8192]{0}', space=vmem, size = 0x2000, scoped, tag = 'input window, operand 1']
    #allocation10 [shape = 's32[2]{0}', space=sflag, size = 0x8, scoped, tag = 'scoped memory for tpu_custom_call.1']
    #allocation11 [shape = 'u8[16384]{0}', space=vmem, size = 0x4000, scoped, tag = 'input window, operand 2, single buffered']
    #allocation12 [shape = 'u8[16384]{0}', space=vmem, size = 0x4000, scoped, tag = 'input window, operand 4, single buffered']
    #allocation13 [shape = 's32[1]{0}', space=sflag, size = 0x4, scoped, tag = 'scoped memory for tpu_custom_call.1']
    #allocation14 [shape = 'u8[16384]{0}', space=vmem, size = 0x4000, scoped, tag = 'input window, operand 6, single buffered']
    #allocation15 [shape = 'u8[8192]{0}', space=vmem, size = 0x2000, scoped, tag = 'output window, operand 0']
    %13 = vsyncpa [#allocation7], 0
    %s14 = scalar_lea.sflag [#allocation7], 1
    %15 = vsyncpa %s14, 0
    %16 = vsyncpa [#allocation10], 0
    %s17 = scalar_lea.sflag [#allocation10], 1
    %18 = vsyncpa %s17, 0
    %19 = vsyncpa [#allocation13], 0
    %20 = vsyncpa [#allocation8], 0
    %s21 = scalar_lea.sflag [#allocation8], 1
    %22 = vsyncpa %s21, 0
    loop: start=0, step=1, limit=6
    $region2: #{tpu_custom_call.1} parent=1 // loop_pre_header
      _
    $region3: #{tpu_custom_call.1} parent=1 // loop_header
      %s24 = sphi 0, %s28
      %p25 = scmp.ge.s32.totalorder %s24, 6
      %s31 = sphi 0, %s43
      %s32 = sphi 0, %s39
      %s33 = sphi 0, %s31
      %s34 = sphi 0, %s32
      %s35 = sphi 0, %s33
      %s36 = sphi 0, %s34
      %s46 = sphi 0, %s48
      %s49 = sphi 0, %s46
      %s50 = sphi 0, %s49
      %s66 = sphi 0, %s50
      %s74 = sphi 0, %s76
      %s77 = sphi 0, %s74
      %s78 = sphi 0, %s77
      %s94 = sphi 0, %s78
      %s98 = sphi 0, %s98
      %s100 = sphi 0, %s98
      %s101 = sphi 0, %s100
      %s115 = sphi 0, %s101
      %s119 = sphi 0, %s119
      %s121 = sphi 0, %s119
      %s122 = sphi 0, %s121
      %s136 = sphi 0, %s122
      %s140 = sphi 0, %s140
      %s142 = sphi 0, %s140
      %s143 = sphi 0, %s142
      %s157 = sphi 0, %s143
      %s161 = sphi 0, %s161
      %s163 = sphi 0, %s161
      %s164 = sphi 0, %s163
      %s178 = sphi 0, %s164
      %s182 = sphi 0, %s182
      %s184 = sphi 0, %s182
      %s185 = sphi 0, %s184
      %s199 = sphi 0, %s185
      %s203 = sphi 0, %s203
      %s205 = sphi 0, %s203
      %s206 = sphi 0, %s205
      %s220 = sphi 0, %s206
      %s226 = sphi 0, %s228
      %s229 = sphi 0, %s226
      %s230 = sphi 0, %s229
      %s246 = sphi 0, %s230
    $region4: #{tpu_custom_call.1} parent=1 // loop_header_branch
      %27 = sbr.rel (%p25) target = $region8
    $region5: #{tpu_custom_call.1} parent=1 // loop_body
      %s29 = ssub.s32 %s24, 1
      %s30 = ssub.s32 %s24, 2
      %s37 = sadd.s32 1, %s32
      %p38 = scmp.ge.s32.totalorder %s37, 2
      %s39 = scalar_select %p38, 0, %s37
      %s40 = sadd.s32 1, %s31
      %s41 = scalar_select %p38, %s40, %s31
      %p42 = scmp.ge.s32.totalorder %s41, 2
      %s43 = scalar_select %p42, 0, %s41
      %s44 = ssub.s32 %s31, %s43
      %p45 = scmp.eq.s32.totalorder %s44, 0
      %s47 = sadd.s32 %s46, 1
      %s48 = scalar_select %p45, %s46, %s47
      %p51 = pneg %p45
      %p52 = scmp.eq.s32.totalorder %s24, 3
      %p53 = por %p51, %p52
      %p54 = scmp.ne.s32.totalorder %s46, %s49
      %p55 = scmp.eq.s32.totalorder %s24, 0
      %p56 = por %p54, %p55
      %p57 = scmp.ne.s32.totalorder %s46, %s49
      %p58 = scmp.eq.s32.totalorder %s29, 3
      %p59 = por %p57, %p58
      %p60 = scmp.ne.s32.totalorder %s49, %s50
      %p61 = scmp.eq.s32.totalorder %s29, 0
      %p62 = por %p60, %p61
      %p63 = scmp.ne.s32.totalorder %s49, %s50
      %p64 = scmp.eq.s32.totalorder %s30, 3
      %p65 = por %p63, %p64
      %p67 = scmp.ne.s32.totalorder %s50, %s66
      %p68 = scmp.eq.s32.totalorder %s30, 0
      %p69 = por %p67, %p68
      %s70 = ssub.s32 %s31, %s43
      %s71 = ssub.s32 %s32, %s39
      %s72 = sor.u32 %s70, %s71
      %p73 = scmp.eq.s32.totalorder %s72, 0
      %s75 = sadd.s32 %s74, 1
      %s76 = scalar_select %p73, %s74, %s75
      %p79 = pneg %p73
      %p80 = scmp.eq.s32.totalorder %s24, 3
      %p81 = por %p79, %p80
      %p82 = scmp.ne.s32.totalorder %s74, %s77
      %p83 = scmp.eq.s32.totalorder %s24, 0
      %p84 = por %p82, %p83
      %p85 = scmp.ne.s32.totalorder %s74, %s77
      %p86 = scmp.eq.s32.totalorder %s29, 3
      %p87 = por %p85, %p86
      %p88 = scmp.ne.s32.totalorder %s77, %s78
      %p89 = scmp.eq.s32.totalorder %s29, 0
      %p90 = por %p88, %p89
      %p91 = scmp.ne.s32.totalorder %s77, %s78
      %p92 = scmp.eq.s32.totalorder %s30, 3
      %p93 = por %p91, %p92
      %p95 = scmp.ne.s32.totalorder %s78, %s94
      %p96 = scmp.eq.s32.totalorder %s30, 0
      %p97 = por %p95, %p96
      %s99 = sadd.s32 %s98, 1
      %p102 = scmp.eq.s32.totalorder %s24, 3
      %p103 = scmp.ne.s32.totalorder %s98, %s100
      %p104 = scmp.eq.s32.totalorder %s24, 0
      %p105 = por %p103, %p104
      %p106 = scmp.ne.s32.totalorder %s98, %s100
      %p107 = scmp.eq.s32.totalorder %s29, 3
      %p108 = por %p106, %p107
      %p109 = scmp.ne.s32.totalorder %s100, %s101
      %p110 = scmp.eq.s32.totalorder %s29, 0
      %p111 = por %p109, %p110
      %p112 = scmp.ne.s32.totalorder %s100, %s101
      %p113 = scmp.eq.s32.totalorder %s30, 3
      %p114 = por %p112, %p113
      %p116 = scmp.ne.s32.totalorder %s101, %s115
      %p117 = scmp.eq.s32.totalorder %s30, 0
      %p118 = por %p116, %p117
      %s120 = sadd.s32 %s119, 1
      %p123 = scmp.eq.s32.totalorder %s24, 3
      %p124 = scmp.ne.s32.totalorder %s119, %s121
      %p125 = scmp.eq.s32.totalorder %s24, 0
      %p126 = por %p124, %p125
      %p127 = scmp.ne.s32.totalorder %s119, %s121
      %p128 = scmp.eq.s32.totalorder %s29, 3
      %p129 = por %p127, %p128
      %p130 = scmp.ne.s32.totalorder %s121, %s122
      %p131 = scmp.eq.s32.totalorder %s29, 0
      %p132 = por %p130, %p131
      %p133 = scmp.ne.s32.totalorder %s121, %s122
      %p134 = scmp.eq.s32.totalorder %s30, 3
      %p135 = por %p133, %p134
      %p137 = scmp.ne.s32.totalorder %s122, %s136
      %p138 = scmp.eq.s32.totalorder %s30, 0
      %p139 = por %p137, %p138
      %s141 = sadd.s32 %s140, 1
      %p144 = scmp.eq.s32.totalorder %s24, 3
      %p145 = scmp.ne.s32.totalorder %s140, %s142
      %p146 = scmp.eq.s32.totalorder %s24, 0
      %p147 = por %p145, %p146
      %p148 = scmp.ne.s32.totalorder %s140, %s142
      %p149 = scmp.eq.s32.totalorder %s29, 3
      %p150 = por %p148, %p149
      %p151 = scmp.ne.s32.totalorder %s142, %s143
      %p152 = scmp.eq.s32.totalorder %s29, 0
      %p153 = por %p151, %p152
      %p154 = scmp.ne.s32.totalorder %s142, %s143
      %p155 = scmp.eq.s32.totalorder %s30, 3
      %p156 = por %p154, %p155
      %p158 = scmp.ne.s32.totalorder %s143, %s157
      %p159 = scmp.eq.s32.totalorder %s30, 0
      %p160 = por %p158, %p159
      %s162 = sadd.s32 %s161, 1
      %p165 = scmp.eq.s32.totalorder %s24, 3
      %p166 = scmp.ne.s32.totalorder %s161, %s163
      %p167 = scmp.eq.s32.totalorder %s24, 0
      %p168 = por %p166, %p167
      %p169 = scmp.ne.s32.totalorder %s161, %s163
      %p170 = scmp.eq.s32.totalorder %s29, 3
      %p171 = por %p169, %p170
      %p172 = scmp.ne.s32.totalorder %s163, %s164
      %p173 = scmp.eq.s32.totalorder %s29, 0
      %p174 = por %p172, %p173
      %p175 = scmp.ne.s32.totalorder %s163, %s164
      %p176 = scmp.eq.s32.totalorder %s30, 3
      %p177 = por %p175, %p176
      %p179 = scmp.ne.s32.totalorder %s164, %s178
      %p180 = scmp.eq.s32.totalorder %s30, 0
      %p181 = por %p179, %p180
      %s183 = sadd.s32 %s182, 1
      %p186 = scmp.eq.s32.totalorder %s24, 3
      %p187 = scmp.ne.s32.totalorder %s182, %s184
      %p188 = scmp.eq.s32.totalorder %s24, 0
      %p189 = por %p187, %p188
      %p190 = scmp.ne.s32.totalorder %s182, %s184
      %p191 = scmp.eq.s32.totalorder %s29, 3
      %p192 = por %p190, %p191
      %p193 = scmp.ne.s32.totalorder %s184, %s185
      %p194 = scmp.eq.s32.totalorder %s29, 0
      %p195 = por %p193, %p194
      %p196 = scmp.ne.s32.totalorder %s184, %s185
      %p197 = scmp.eq.s32.totalorder %s30, 3
      %p198 = por %p196, %p197
      %p200 = scmp.ne.s32.totalorder %s185, %s199
      %p201 = scmp.eq.s32.totalorder %s30, 0
      %p202 = por %p200, %p201
      %s204 = sadd.s32 %s203, 1
      %p207 = scmp.eq.s32.totalorder %s24, 3
      %p208 = scmp.ne.s32.totalorder %s203, %s205
      %p209 = scmp.eq.s32.totalorder %s24, 0
      %p210 = por %p208, %p209
      %p211 = scmp.ne.s32.totalorder %s203, %s205
      %p212 = scmp.eq.s32.totalorder %s29, 3
      %p213 = por %p211, %p212
      %p214 = scmp.ne.s32.totalorder %s205, %s206
      %p215 = scmp.eq.s32.totalorder %s29, 0
      %p216 = por %p214, %p215
      %p217 = scmp.ne.s32.totalorder %s205, %s206
      %p218 = scmp.eq.s32.totalorder %s30, 3
      %p219 = por %p217, %p218
      %p221 = scmp.ne.s32.totalorder %s206, %s220
      %p222 = scmp.eq.s32.totalorder %s30, 0
      %p223 = por %p221, %p222
      %s224 = ssub.s32 %s31, %s43
      %p225 = scmp.eq.s32.totalorder %s224, 0
      %s227 = sadd.s32 %s226, 1
      %s228 = scalar_select %p225, %s226, %s227
      %p231 = pneg %p225
      %p232 = scmp.eq.s32.totalorder %s24, 3
      %p233 = por %p231, %p232
      %p234 = scmp.ne.s32.totalorder %s226, %s229
      %p235 = scmp.eq.s32.totalorder %s24, 0
      %p236 = por %p234, %p235
      %p237 = scmp.ne.s32.totalorder %s226, %s229
      %p238 = scmp.eq.s32.totalorder %s29, 3
      %p239 = por %p237, %p238
      %p240 = scmp.ne.s32.totalorder %s229, %s230
      %p241 = scmp.eq.s32.totalorder %s29, 0
      %p242 = por %p240, %p241
      %p243 = scmp.ne.s32.totalorder %s229, %s230
      %p244 = scmp.eq.s32.totalorder %s30, 3
      %p245 = por %p243, %p244
      %p247 = scmp.ne.s32.totalorder %s230, %s246
      %p248 = scmp.eq.s32.totalorder %s30, 0
      %p249 = por %p247, %p248
      %p250 = scmp.le.s32.totalorder 1, %s24
      %p251 = scmp.lt.s32.totalorder %s24, 5
      %p252 = pnand %p250, %p251
      %p253 = pneg %p252
      // Predicated region
      $region9: #{tpu_custom_call.1} parent=5 // pred_check
        _
      $region10: #{tpu_custom_call.1} parent=5 // pred_check_branch
        %255 = sbr.rel (%p252) target = $region12
      $region11: #{tpu_custom_call.1} parent=5 // pred_region
        %s256 = ssub.s32 %s24, 1
        // Predicated region
        $region13: #{tpu_custom_call.1} parent=11 // pred_check
          %p257 = pneg %p111
        $region14: #{tpu_custom_call.1} parent=11 // pred_check_branch
          %259 = sbr.rel (%p257) target = $region16
        $region15: #{tpu_custom_call.1} parent=11 // pred_region
          %s261 = ssub.s32 512, 512
          %262 = vsyncadd [#allocation10], %s261
          %s263 = sshll.u32 [#allocation11], 4
          %s264 = int_to_ptr.vmem [resolvable:$true] %s263
          %269 = dma.hbm_to_vmem [thread:$0]  %s2, 512, %s264, [#allocation10], 128, 128, 8
        $region16: #{tpu_custom_call.1} parent=11 // pred_fallthru
          _
        // Predicated region
        $region17: #{tpu_custom_call.1} parent=11 // pred_check
          %p270 = pneg %p132
        $region18: #{tpu_custom_call.1} parent=11 // pred_check_branch
          %272 = sbr.rel (%p270) target = $region20
        $region19: #{tpu_custom_call.1} parent=11 // pred_region
          _
        $region20: #{tpu_custom_call.1} parent=11 // pred_fallthru
          _
        // Predicated region
        $region21: #{tpu_custom_call.1} parent=11 // pred_check
          %p273 = pneg %p153
        $region22: #{tpu_custom_call.1} parent=11 // pred_check_branch
          %275 = sbr.rel (%p273) target = $region24
        $region23: #{tpu_custom_call.1} parent=11 // pred_region
          %s277 = ssub.s32 512, 512
          %278 = vsyncadd [#allocation13], %s277
          %s279 = sshll.u32 [#allocation12], 4
          %s280 = int_to_ptr.vmem [resolvable:$true] %s279
          %285 = dma.hbm_to_vmem [thread:$0]  %s4, 512, %s280, [#allocation13], 128, 128, 8
        $region24: #{tpu_custom_call.1} parent=11 // pred_fallthru
          _
        // Predicated region
        $region25: #{tpu_custom_call.1} parent=11 // pred_check
          %p286 = pneg %p174
        $region26: #{tpu_custom_call.1} parent=11 // pred_check_branch
          %288 = sbr.rel (%p286) target = $region28
        $region27: #{tpu_custom_call.1} parent=11 // pred_region
          _
        $region28: #{tpu_custom_call.1} parent=11 // pred_fallthru
          _
        // Predicated region
        $region29: #{tpu_custom_call.1} parent=11 // pred_check
          %p289 = pneg %p195
        $region30: #{tpu_custom_call.1} parent=11 // pred_check_branch
          %291 = sbr.rel (%p289) target = $region32
        $region31: #{tpu_custom_call.1} parent=11 // pred_region
          %s293 = ssub.s32 512, 512
          %294 = vsyncadd [#allocation13], %s293
          %s295 = sshll.u32 [#allocation14], 4
          %s296 = int_to_ptr.vmem [resolvable:$true] %s295
          %301 = dma.hbm_to_vmem [thread:$0]  %s6, 512, %s296, [#allocation13], 128, 128, 8
        $region32: #{tpu_custom_call.1} parent=11 // pred_fallthru
          _
        // Predicated region
        $region33: #{tpu_custom_call.1} parent=11 // pred_check
          %p302 = pneg %p216
        $region34: #{tpu_custom_call.1} parent=11 // pred_check_branch
          %304 = sbr.rel (%p302) target = $region36
        $region35: #{tpu_custom_call.1} parent=11 // pred_region
          _
        $region36: #{tpu_custom_call.1} parent=11 // pred_fallthru
          _
      $region12: #{tpu_custom_call.1} parent=5 // pred_fallthru
        _
      %p305 = scmp.lt.s32.totalorder %s24, 4
      // Predicated region
      $region37: #{tpu_custom_call.1} parent=5 // pred_check
        %p306 = pneg %p305
      $region38: #{tpu_custom_call.1} parent=5 // pred_check_branch
        %308 = sbr.rel (%p306) target = $region40
      $region39: #{tpu_custom_call.1} parent=5 // pred_region
        // Predicated region
        $region41: #{tpu_custom_call.1} parent=39 // pred_check
          %p309 = pneg %p56
        $region42: #{tpu_custom_call.1} parent=39 // pred_check_branch
          %311 = sbr.rel (%p309) target = $region44
        $region43: #{tpu_custom_call.1} parent=39 // pred_region
          %s312 = sand.u32 %s46, 1
          %s313 = scalar_lea.sflag [#allocation7], %s312
          %s314 = sand.u32 %s46, 1
          %s315 = smul.addr %s314, 8
          %s316 = scalar_lea.vmem [#allocation6], %s315
          %s318 = ssub.s32 128, 128
          %319 = vsyncadd %s313, %s318
          %s320 = smul.addr %s31, 128
          %s321 = scalar_lea.hbm %s0, %s320
          %s323 = sshll.u32 %s316, 4
          %s324 = int_to_ptr.vmem [resolvable:$true] %s323
          %326 = dma.hbm_to_vmem [thread:$0]  %s321, 128, %s324, %s313
        $region44: #{tpu_custom_call.1} parent=39 // pred_fallthru
          _
        // Predicated region
        $region45: #{tpu_custom_call.1} parent=39 // pred_check
          %p327 = pneg %p84
        $region46: #{tpu_custom_call.1} parent=39 // pred_check_branch
          %329 = sbr.rel (%p327) target = $region48
        $region47: #{tpu_custom_call.1} parent=39 // pred_region
          %s330 = sand.u32 %s24, 1
          %s331 = scalar_lea.sflag [#allocation10], %s330
          %s332 = sand.u32 %s74, 1
          %s333 = smul.addr %s332, 8
          %s334 = scalar_lea.vmem [#allocation9], %s333
          %s336 = ssub.s32 128, 128
          %337 = vsyncadd %s331, %s336
          %s338 = smul.addr %s31, 2
          %s339 = sadd.s32 %s32, %s338
          %s340 = smul.addr %s339, 128
          %s341 = scalar_lea.hbm %s1, %s340
          %s343 = sshll.u32 %s334, 4
          %s344 = int_to_ptr.vmem [resolvable:$true] %s343
          %346 = dma.hbm_to_vmem [thread:$0]  %s341, 128, %s344, %s331
        $region48: #{tpu_custom_call.1} parent=39 // pred_fallthru
          _
      $region40: #{tpu_custom_call.1} parent=5 // pred_fallthru
        _
      %p347 = scmp.le.s32.totalorder 1, %s24
      %p348 = scmp.lt.s32.totalorder %s24, 5
      %p349 = pnand %p347, %p348
      %p350 = pneg %p349
      // Predicated region
      $region49: #{tpu_custom_call.1} parent=5 // pred_check
        _
      $region50: #{tpu_custom_call.1} parent=5 // pred_check_branch
        %352 = sbr.rel (%p349) target = $region52
      $region51: #{tpu_custom_call.1} parent=5 // pred_region
        %s353 = ssub.s32 %s24, 1
        %s354 = sand.u32 %s49, 1
        %s355 = scalar_lea.sflag [#allocation7], %s354
        %s356 = sand.u32 %s49, 1
        %s357 = smul.addr %s356, 8
        %s358 = scalar_lea.vmem [#allocation6], %s357
        // Predicated region
        $region53: #{tpu_custom_call.1} parent=51 // pred_check
          %p359 = pneg %p62
        $region54: #{tpu_custom_call.1} parent=51 // pred_check_branch
          %361 = sbr.rel (%p359) target = $region56
        $region55: #{tpu_custom_call.1} parent=51 // pred_region
          %362 = dma.done %s355, 128
        $region56: #{tpu_custom_call.1} parent=51 // pred_fallthru
          _
        %s363 = sand.u32 %s29, 1
        %s364 = scalar_lea.sflag [#allocation10], %s363
        %s365 = sand.u32 %s77, 1
        %s366 = smul.addr %s365, 8
        %s367 = scalar_lea.vmem [#allocation9], %s366
        // Predicated region
        $region57: #{tpu_custom_call.1} parent=51 // pred_check
          %p368 = pneg %p90
        $region58: #{tpu_custom_call.1} parent=51 // pred_check_branch
          %370 = sbr.rel (%p368) target = $region60
        $region59: #{tpu_custom_call.1} parent=51 // pred_region
          %371 = dma.done %s364, 128
        $region60: #{tpu_custom_call.1} parent=51 // pred_fallthru
          _
        // Predicated region
        $region61: #{tpu_custom_call.1} parent=51 // pred_check
          %p372 = pneg %p111
        $region62: #{tpu_custom_call.1} parent=51 // pred_check_branch
          %374 = sbr.rel (%p372) target = $region64
        $region63: #{tpu_custom_call.1} parent=51 // pred_region
          %375 = dma.done [#allocation10], 512
        $region64: #{tpu_custom_call.1} parent=51 // pred_fallthru
          _
        // Predicated region
        $region65: #{tpu_custom_call.1} parent=51 // pred_check
          %p376 = pneg %p153
        $region66: #{tpu_custom_call.1} parent=51 // pred_check_branch
          %378 = sbr.rel (%p376) target = $region68
        $region67: #{tpu_custom_call.1} parent=51 // pred_region
          %379 = dma.done [#allocation13], 512
        $region68: #{tpu_custom_call.1} parent=51 // pred_fallthru
          _
        // Predicated region
        $region69: #{tpu_custom_call.1} parent=51 // pred_check
          %p380 = pneg %p195
        $region70: #{tpu_custom_call.1} parent=51 // pred_check_branch
          %382 = sbr.rel (%p380) target = $region72
        $region71: #{tpu_custom_call.1} parent=51 // pred_region
          %383 = dma.done [#allocation13], 512
        $region72: #{tpu_custom_call.1} parent=51 // pred_fallthru
          _
        %s384 = sand.u32 %s49, 1
        %s385 = scalar_lea.sflag [#allocation7], %s384
        %s386 = sand.u32 %s49, 1
        %s387 = smul.addr %s386, 8
        %s388 = scalar_lea.vmem [#allocation6], %s387
        %p389 = pneg %p62
        %p390 = pneg %p59
        %s391 = sand.u32 %s29, 1
        %s392 = scalar_lea.sflag [#allocation10], %s391
        %s393 = sand.u32 %s77, 1
        %s394 = smul.addr %s393, 8
        %s395 = scalar_lea.vmem [#allocation9], %s394
        %p396 = pneg %p90
        %p397 = pneg %p87
        %p398 = pneg %p111
        %p399 = pneg %p108
        %p400 = pneg %p132
        %p401 = pneg %p129
        %p402 = pneg %p153
        %p403 = pneg %p150
        %p404 = pneg %p174
        %p405 = pneg %p171
        %p406 = pneg %p195
        %p407 = pneg %p192
        %p408 = pneg %p216
        %p409 = pneg %p213
        %p410 = pneg %p242
        %p411 = pneg %p239
        %s412 = sand.u32 %s229, 1
        %s413 = scalar_lea.sflag [#allocation8], %s412
        %s414 = sand.u32 %s229, 1
        %s415 = smul.addr %s414, 8
        %s416 = scalar_lea.vmem [#allocation15], %s415
        %p417 = scmp.eq.s32.totalorder %s34, 0
        // Predicated region
        $region73: #{tpu_custom_call.1} parent=51 // pred_check
          %p418 = pneg %p417
        $region74: #{tpu_custom_call.1} parent=51 // pred_check_branch
          %420 = sbr.rel (%p418) target = $region76
        $region75: #{tpu_custom_call.1} parent=51 // pred_region
          %v421 = vld [vmem:[%s358] sm:$0xff]
          %v422 = vld [vmem:[#allocation11] sm:$0xff]
          %v423 = vld [vmem:[#allocation11 + $0x8] sm:$0xff]
          %v424 = vld [vmem:[#allocation11 + $0x10] sm:$0xff]
          %v425 = vld [vmem:[#allocation11 + $0x18] sm:$0xff]
          %v426 = vld [vmem:[%s3] sm:$0x1]
          %v428 = vlaneseq
          %v429 = vshrl.u32 %v428, 7
          %v430 = vsub.s32 0, %v429
          %v431 = vrot.slane %v426, %v430
          %vm433 = vcmask 261120
          %v435 = vsel %vm433, %v421, 0
          %437 = vmatprep.subr.mxu0 0.0
          %438 = vmatpush1.msra.mxu0 0.0
          %439 = vmatprep.subr.mxu0 0.0
          %440 = vmatpush1.msra.mxu0 0.0
          %441 = vmatprep.subr.mxu0 0.0
          %442 = vmatpush1.msra.mxu0 0.0
          %443 = vmatprep.subr.mxu0 0.0
          %444 = vmatpush1.msra.mxu0 0.0
          %445 = vmatprep.subr.mxu0 0.0
          %446 = vmatpush1.msra.mxu0 0.0
          %447 = vmatprep.subr.mxu0 0.0
          %448 = vmatpush1.msra.mxu0 0.0
          %449 = vmatprep.subr.mxu0 0.0
          %450 = vmatpush1.msra.mxu0 0.0
          %451 = vmatprep.subr.mxu0 0.0
          %452 = vmatpush1.msra.mxu0 0.0
          %453 = vmatprep.subr.mxu0 0.0
          %454 = vmatpush1.msra.mxu0 0.0
          %455 = vmatprep.subr.mxu0 0.0
          %456 = vmatpush1.msra.mxu0 0.0
          %457 = vmatprep.subr.mxu0 0.0
          %458 = vmatpush1.msra.mxu0 0.0
          %459 = vmatprep.subr.mxu0 0.0
          %460 = vmatpush1.msra.mxu0 0.0
          %461 = vmatprep.subr.mxu0 0.0
          %462 = vmatpush1.msra.mxu0 %v425
          %463 = vmatprep.subr.mxu0 0.0
          %464 = vmatpush1.msra.mxu0 %v424
          %465 = vmatprep.subr.mxu0 0.0
          %466 = vmatpush1.msra.mxu0 %v423
          %467 = vmatprep.subr.mxu0 0.0
          %468 = vmatpush1.msra.mxu0 %v422
          %469 = vmatprep.subr.mxu0 0.0
          %470 = vmatpush2.msra.mxu0 0.0
          %471 = vmatprep.subr.mxu0 0.0
          %472 = vmatpush2.msra.mxu0 0.0
          %473 = vmatprep.subr.mxu0 0.0
          %474 = vmatpush2.msra.mxu0 0.0
          %475 = vmatprep.subr.mxu0 0.0
          %476 = vmatpush2.msra.mxu0 0.0
          %477 = vmatprep.subr.mxu0 0.0
          %478 = vmatpush2.msra.mxu0 0.0
          %479 = vmatprep.subr.mxu0 0.0
          %480 = vmatpush2.msra.mxu0 0.0
          %481 = vmatprep.subr.mxu0 0.0
          %482 = vmatpush2.msra.mxu0 0.0
          %483 = vmatprep.subr.mxu0 0.0
          %484 = vmatpush2.msra.mxu0 0.0
          %485 = vmatprep.subr.mxu0 0.0
          %486 = vmatpush2.msra.mxu0 0.0
          %487 = vmatprep.subr.mxu0 0.0
          %488 = vmatpush2.msra.mxu0 0.0
          %489 = vmatprep.subr.mxu0 0.0
          %490 = vmatpush2.msra.mxu0 0.0
          %491 = vmatprep.subr.mxu0 0.0
          %492 = vmatpush2.msra.mxu0 0.0
          %493 = vmatprep.subr.mxu0 0.0
          %494 = vmatpush2.msra.mxu0 0.0
          %495 = vmatprep.subr.mxu0 0.0
          %496 = vmatpush2.msra.mxu0 0.0
          %497 = vmatprep.subr.mxu0 0.0
          %498 = vmatpush2.msra.mxu0 0.0
          %499 = vmatprep.subr.mxu0 0.0
          %500 = vmatpush2.msra.mxu0 0.0
          %501 = vmatprep.mubr.f32.mxu0 0.0
          %502 = vmatmul.mubr.f32.gmra.mxu0 %v435
          %v503 = vpop.f32.mrf.mxu0
          %v504 = vadd.f32 %v431, %v503
          %v505 = vpop.f32.mrf.mxu0
          %506 = vdwg.mxu0
          %508 = vrot.lane.b32.xlu0 %v504, 120
          %v509 = vpop.permute.xlu0 %508
          %511 = vrot.lane.b32.xlu0 %v504, 112
          %v512 = vpop.permute.xlu0 %511
          %514 = vrot.lane.b32.xlu0 %v504, 104
          %v515 = vpop.permute.xlu0 %514
          %v517 = vcombine.low %v504, %v512
          %v518 = vcombine.high %v504, %v512
          %v520 = vunpack.c.l.s4 1983009808
          %v521 = vunpack.c.0.s8 %v520
          %v522 = vlaneseq
          %v523 = vshrl.u32 %v522, 7
          %v524 = vsub.s32 %v521, %v523
          %v525 = vrot.slane %v517, %v524
          %v527 = vunpack.c.l.s4 1983009808
          %v528 = vunpack.c.0.s8 %v527
          %v529 = vlaneseq
          %v530 = vshrl.u32 %v529, 7
          %v531 = vsub.s32 %v528, %v530
          %v532 = vrot.slane %v518, %v531
          %v533 = vcombine.low %v509, %v515
          %v534 = vcombine.high %v509, %v515
          %v536 = vunpack.c.l.s4 1983009808
          %v537 = vunpack.c.0.s8 %v536
          %v538 = vlaneseq
          %v539 = vshrl.u32 %v538, 7
          %v540 = vsub.s32 %v537, %v539
          %v541 = vrot.slane %v533, %v540
          %v543 = vunpack.c.l.s4 1983009808
          %v544 = vunpack.c.0.s8 %v543
          %v545 = vlaneseq
          %v546 = vshrl.u32 %v545, 7
          %v547 = vsub.s32 %v544, %v546
          %v548 = vrot.slane %v534, %v547
          %v549 = vcombine.low %v525, %v541
          %v550 = vcombine.high %v525, %v541
          %v552 = vunpack.c.l.s4 1934713408
          %v553 = vunpack.c.0.s8 %v552
          %v554 = vlaneseq
          %v555 = vshrl.u32 %v554, 7
          %v556 = vsub.s32 %v553, %v555
          %v557 = vrot.slane %v549, %v556
          %v559 = vunpack.c.l.s4 1934713408
          %v560 = vunpack.c.0.s8 %v559
          %v561 = vlaneseq
          %v562 = vshrl.u32 %v561, 7
          %v563 = vsub.s32 %v560, %v562
          %v564 = vrot.slane %v550, %v563
          %v565 = vcombine.low %v532, %v548
          %v566 = vcombine.high %v532, %v548
          %v568 = vunpack.c.l.s4 1934713408
          %v569 = vunpack.c.0.s8 %v568
          %v570 = vlaneseq
          %v571 = vshrl.u32 %v570, 7
          %v572 = vsub.s32 %v569, %v571
          %v573 = vrot.slane %v565, %v572
          %v575 = vunpack.c.l.s4 1934713408
          %v576 = vunpack.c.0.s8 %v575
          %v577 = vlaneseq
          %v578 = vshrl.u32 %v577, 7
          %v579 = vsub.s32 %v576, %v578
          %v580 = vrot.slane %v566, %v579
          %v581 = vcombine.high %v557, 0.0
          %v582 = vcombine.high %v564, 0.0
          %v583 = vcombine.high %v573, 0.0
          %v584 = vcombine.high %v580, 0.0
          %v585 = vcombine.low %v557, %v564
          %v587 = vunpack.c.l.s4 1983009808
          %v588 = vunpack.c.0.s8 %v587
          %v589 = vlaneseq
          %v590 = vshrl.u32 %v589, 7
          %v591 = vsub.s32 %v588, %v590
          %v592 = vrot.slane %v585, %v591
          %v593 = vcombine.low %v581, %v582
          %v595 = vunpack.c.l.s4 1983009808
          %v596 = vunpack.c.0.s8 %v595
          %v597 = vlaneseq
          %v598 = vshrl.u32 %v597, 7
          %v599 = vsub.s32 %v596, %v598
          %v600 = vrot.slane %v593, %v599
          %v601 = vcombine.low %v573, %v580
          %v603 = vunpack.c.l.s4 1983009808
          %v604 = vunpack.c.0.s8 %v603
          %v605 = vlaneseq
          %v606 = vshrl.u32 %v605, 7
          %v607 = vsub.s32 %v604, %v606
          %v608 = vrot.slane %v601, %v607
          %v609 = vcombine.low %v583, %v584
          %v611 = vunpack.c.l.s4 1983009808
          %v612 = vunpack.c.0.s8 %v611
          %v613 = vlaneseq
          %v614 = vshrl.u32 %v613, 7
          %v615 = vsub.s32 %v612, %v614
          %v616 = vrot.slane %v609, %v615
          %v617 = vcombine.low %v592, %v600
          %v618 = vcombine.high %v592, %v600
          %v620 = vunpack.c.l.s4 1934713408
          %v621 = vunpack.c.0.s8 %v620
          %v622 = vlaneseq
          %v623 = vshrl.u32 %v622, 7
          %v624 = vsub.s32 %v621, %v623
          %v625 = vrot.slane %v617, %v624
          %v627 = vunpack.c.l.s4 1934713408
          %v628 = vunpack.c.0.s8 %v627
          %v629 = vlaneseq
          %v630 = vshrl.u32 %v629, 7
          %v631 = vsub.s32 %v628, %v630
          %v632 = vrot.slane %v618, %v631
          %v633 = vcombine.low %v608, %v616
          %v634 = vcombine.high %v608, %v616
          %v636 = vunpack.c.l.s4 1934713408
          %v637 = vunpack.c.0.s8 %v636
          %v638 = vlaneseq
          %v639 = vshrl.u32 %v638, 7
          %v640 = vsub.s32 %v637, %v639
          %v641 = vrot.slane %v633, %v640
          %v643 = vunpack.c.l.s4 1934713408
          %v644 = vunpack.c.0.s8 %v643
          %v645 = vlaneseq
          %v646 = vshrl.u32 %v645, 7
          %v647 = vsub.s32 %v644, %v646
          %v648 = vrot.slane %v634, %v647
          %v649 = vcombine.low %v625, %v641
          %v650 = vcombine.high %v625, %v641
          %v651 = vcombine.low %v632, %v648
          %v652 = vcombine.high %v632, %v648
          %vm653 = vcmask 64512
          %654 = vst.msk [vmem:[#allocation2] sm:$0xff] %vm653, %v649
          %655 = vst.msk [vmem:[#allocation2 + $0x8] sm:$0xff] %vm653, %v650
          %656 = vst.msk [vmem:[#allocation2 + $0x10] sm:$0xff] %vm653, %v651
          %657 = vst.msk [vmem:[#allocation2 + $0x18] sm:$0xff] %vm653, %v652
          %vm658 = vcmask 7168
          %659 = vst.msk [vmem:[#allocation3] sm:$0xff] %vm658, -inf
          %660 = vst.msk [vmem:[#allocation3 + $0x8] sm:$0xff] %vm658, -inf
          %661 = vst.msk [vmem:[#allocation3 + $0x10] sm:$0xff] %vm658, -inf
          %662 = vst.msk [vmem:[#allocation3 + $0x18] sm:$0xff] %vm658, -inf
          %663 = vst.msk [vmem:[#allocation4] sm:$0xff] %vm658, 0.0
          %664 = vst.msk [vmem:[#allocation4 + $0x8] sm:$0xff] %vm658, 0.0
          %665 = vst.msk [vmem:[#allocation4 + $0x10] sm:$0xff] %vm658, 0.0
          %666 = vst.msk [vmem:[#allocation4 + $0x18] sm:$0xff] %vm658, 0.0
          %667 = vst.msk [vmem:[#allocation5] sm:$0xff] %vm653, 0.0
          %668 = vst.msk [vmem:[#allocation5 + $0x8] sm:$0xff] %vm653, 0.0
          %669 = vst.msk [vmem:[#allocation5 + $0x10] sm:$0xff] %vm653, 0.0
          %670 = vst.msk [vmem:[#allocation5 + $0x18] sm:$0xff] %vm653, 0.0
        $region76: #{tpu_custom_call.1} parent=51 // pred_fallthru
          _
        %v671 = vld [vmem:[%s367] sm:$0xff]
        %v672 = vld [vmem:[#allocation12] sm:$0xff]
        %v673 = vld [vmem:[#allocation12 + $0x8] sm:$0xff]
        %v674 = vld [vmem:[#allocation12 + $0x10] sm:$0xff]
        %v675 = vld [vmem:[#allocation12 + $0x18] sm:$0xff]
        %vm676 = vcmask 261120
        %v678 = vsel %vm676, %v671, 0
        %680 = vmatprep.subr.mxu0 0.0
        %681 = vmatpush1.msra.mxu0 0.0
        %682 = vmatprep.subr.mxu0 0.0
        %683 = vmatpush1.msra.mxu0 0.0
        %684 = vmatprep.subr.mxu0 0.0
        %685 = vmatpush1.msra.mxu0 0.0
        %686 = vmatprep.subr.mxu0 0.0
        %687 = vmatpush1.msra.mxu0 0.0
        %688 = vmatprep.subr.mxu0 0.0
        %689 = vmatpush1.msra.mxu0 0.0
        %690 = vmatprep.subr.mxu0 0.0
        %691 = vmatpush1.msra.mxu0 0.0
        %692 = vmatprep.subr.mxu0 0.0
        %693 = vmatpush1.msra.mxu0 0.0
        %694 = vmatprep.subr.mxu0 0.0
        %695 = vmatpush1.msra.mxu0 0.0
        %696 = vmatprep.subr.mxu0 0.0
        %697 = vmatpush1.msra.mxu0 0.0
        %698 = vmatprep.subr.mxu0 0.0
        %699 = vmatpush1.msra.mxu0 0.0
        %700 = vmatprep.subr.mxu0 0.0
        %701 = vmatpush1.msra.mxu0 0.0
        %702 = vmatprep.subr.mxu0 0.0
        %703 = vmatpush1.msra.mxu0 0.0
        %704 = vmatprep.subr.mxu0 0.0
        %705 = vmatpush1.msra.mxu0 %v675
        %706 = vmatprep.subr.mxu0 0.0
        %707 = vmatpush1.msra.mxu0 %v674
        %708 = vmatprep.subr.mxu0 0.0
        %709 = vmatpush1.msra.mxu0 %v673
        %710 = vmatprep.subr.mxu0 0.0
        %711 = vmatpush1.msra.mxu0 %v672
        %712 = vmatprep.subr.mxu0 0.0
        %713 = vmatpush2.msra.mxu0 0.0
        %714 = vmatprep.subr.mxu0 0.0
        %715 = vmatpush2.msra.mxu0 0.0
        %716 = vmatprep.subr.mxu0 0.0
        %717 = vmatpush2.msra.mxu0 0.0
        %718 = vmatprep.subr.mxu0 0.0
        %719 = vmatpush2.msra.mxu0 0.0
        %720 = vmatprep.subr.mxu0 0.0
        %721 = vmatpush2.msra.mxu0 0.0
        %722 = vmatprep.subr.mxu0 0.0
        %723 = vmatpush2.msra.mxu0 0.0
        %724 = vmatprep.subr.mxu0 0.0
        %725 = vmatpush2.msra.mxu0 0.0
        %726 = vmatprep.subr.mxu0 0.0
        %727 = vmatpush2.msra.mxu0 0.0
        %728 = vmatprep.subr.mxu0 0.0
        %729 = vmatpush2.msra.mxu0 0.0
        %730 = vmatprep.subr.mxu0 0.0
        %731 = vmatpush2.msra.mxu0 0.0
        %732 = vmatprep.subr.mxu0 0.0
        %733 = vmatpush2.msra.mxu0 0.0
        %734 = vmatprep.subr.mxu0 0.0
        %735 = vmatpush2.msra.mxu0 0.0
        %736 = vmatprep.subr.mxu0 0.0
        %737 = vmatpush2.msra.mxu0 0.0
        %738 = vmatprep.subr.mxu0 0.0
        %739 = vmatpush2.msra.mxu0 0.0
        %740 = vmatprep.subr.mxu0 0.0
        %741 = vmatpush2.msra.mxu0 0.0
        %742 = vmatprep.subr.mxu0 0.0
        %743 = vmatpush2.msra.mxu0 0.0
        %744 = vmatprep.mubr.f32.mxu0 0.0
        %745 = vmatmul.mubr.f32.gmra.mxu0 %v678
        %v746 = vpop.f32.mrf.mxu0
        %v747 = vadd.f32 0.0, %v746
        %v748 = vpop.f32.mrf.mxu0
        %749 = vdwg.mxu0
        %751 = vrot.lane.b32.xlu0 %v747, 120
        %v752 = vpop.permute.xlu0 %751
        %754 = vrot.lane.b32.xlu0 %v747, 112
        %v755 = vpop.permute.xlu0 %754
        %757 = vrot.lane.b32.xlu0 %v747, 104
        %v758 = vpop.permute.xlu0 %757
        %v760 = vcombine.low %v747, %v755
        %v761 = vcombine.high %v747, %v755
        %v763 = vunpack.c.l.s4 1983009808
        %v764 = vunpack.c.0.s8 %v763
        %v765 = vlaneseq
        %v766 = vshrl.u32 %v765, 7
        %v767 = vsub.s32 %v764, %v766
        %v768 = vrot.slane %v760, %v767
        %v770 = vunpack.c.l.s4 1983009808
        %v771 = vunpack.c.0.s8 %v770
        %v772 = vlaneseq
        %v773 = vshrl.u32 %v772, 7
        %v774 = vsub.s32 %v771, %v773
        %v775 = vrot.slane %v761, %v774
        %v776 = vcombine.low %v752, %v758
        %v777 = vcombine.high %v752, %v758
        %v779 = vunpack.c.l.s4 1983009808
        %v780 = vunpack.c.0.s8 %v779
        %v781 = vlaneseq
        %v782 = vshrl.u32 %v781, 7
        %v783 = vsub.s32 %v780, %v782
        %v784 = vrot.slane %v776, %v783
        %v786 = vunpack.c.l.s4 1983009808
        %v787 = vunpack.c.0.s8 %v786
        %v788 = vlaneseq
        %v789 = vshrl.u32 %v788, 7
        %v790 = vsub.s32 %v787, %v789
        %v791 = vrot.slane %v777, %v790
        %v792 = vcombine.low %v768, %v784
        %v793 = vcombine.high %v768, %v784
        %v795 = vunpack.c.l.s4 1934713408
        %v796 = vunpack.c.0.s8 %v795
        %v797 = vlaneseq
        %v798 = vshrl.u32 %v797, 7
        %v799 = vsub.s32 %v796, %v798
        %v800 = vrot.slane %v792, %v799
        %v802 = vunpack.c.l.s4 1934713408
        %v803 = vunpack.c.0.s8 %v802
        %v804 = vlaneseq
        %v805 = vshrl.u32 %v804, 7
        %v806 = vsub.s32 %v803, %v805
        %v807 = vrot.slane %v793, %v806
        %v808 = vcombine.low %v775, %v791
        %v809 = vcombine.high %v775, %v791
        %v811 = vunpack.c.l.s4 1934713408
        %v812 = vunpack.c.0.s8 %v811
        %v813 = vlaneseq
        %v814 = vshrl.u32 %v813, 7
        %v815 = vsub.s32 %v812, %v814
        %v816 = vrot.slane %v808, %v815
        %v818 = vunpack.c.l.s4 1934713408
        %v819 = vunpack.c.0.s8 %v818
        %v820 = vlaneseq
        %v821 = vshrl.u32 %v820, 7
        %v822 = vsub.s32 %v819, %v821
        %v823 = vrot.slane %v809, %v822
        %v824 = vcombine.high %v800, 0.0
        %v825 = vcombine.high %v807, 0.0
        %v826 = vcombine.high %v816, 0.0
        %v827 = vcombine.high %v823, 0.0
        %v828 = vcombine.low %v800, %v807
        %v830 = vunpack.c.l.s4 1983009808
        %v831 = vunpack.c.0.s8 %v830
        %v832 = vlaneseq
        %v833 = vshrl.u32 %v832, 7
        %v834 = vsub.s32 %v831, %v833
        %v835 = vrot.slane %v828, %v834
        %v836 = vcombine.low %v824, %v825
        %v838 = vunpack.c.l.s4 1983009808
        %v839 = vunpack.c.0.s8 %v838
        %v840 = vlaneseq
        %v841 = vshrl.u32 %v840, 7
        %v842 = vsub.s32 %v839, %v841
        %v843 = vrot.slane %v836, %v842
        %v844 = vcombine.low %v816, %v823
        %v846 = vunpack.c.l.s4 1983009808
        %v847 = vunpack.c.0.s8 %v846
        %v848 = vlaneseq
        %v849 = vshrl.u32 %v848, 7
        %v850 = vsub.s32 %v847, %v849
        %v851 = vrot.slane %v844, %v850
        %v852 = vcombine.low %v826, %v827
        %v854 = vunpack.c.l.s4 1983009808
        %v855 = vunpack.c.0.s8 %v854
        %v856 = vlaneseq
        %v857 = vshrl.u32 %v856, 7
        %v858 = vsub.s32 %v855, %v857
        %v859 = vrot.slane %v852, %v858
        %v860 = vcombine.low %v835, %v843
        %v861 = vcombine.high %v835, %v843
        %v863 = vunpack.c.l.s4 1934713408
        %v864 = vunpack.c.0.s8 %v863
        %v865 = vlaneseq
        %v866 = vshrl.u32 %v865, 7
        %v867 = vsub.s32 %v864, %v866
        %v868 = vrot.slane %v860, %v867
        %v870 = vunpack.c.l.s4 1934713408
        %v871 = vunpack.c.0.s8 %v870
        %v872 = vlaneseq
        %v873 = vshrl.u32 %v872, 7
        %v874 = vsub.s32 %v871, %v873
        %v875 = vrot.slane %v861, %v874
        %v876 = vcombine.low %v851, %v859
        %v877 = vcombine.high %v851, %v859
        %v879 = vunpack.c.l.s4 1934713408
        %v880 = vunpack.c.0.s8 %v879
        %v881 = vlaneseq
        %v882 = vshrl.u32 %v881, 7
        %v883 = vsub.s32 %v880, %v882
        %v884 = vrot.slane %v876, %v883
        %v886 = vunpack.c.l.s4 1934713408
        %v887 = vunpack.c.0.s8 %v886
        %v888 = vlaneseq
        %v889 = vshrl.u32 %v888, 7
        %v890 = vsub.s32 %v887, %v889
        %v891 = vrot.slane %v877, %v890
        %v892 = vcombine.low %v868, %v884
        %v893 = vcombine.high %v868, %v884
        %v894 = vcombine.low %v875, %v891
        %v895 = vcombine.high %v875, %v891
        %v896 = vld [vmem:[%s5] sm:$0x1]
        %v898 = vlaneseq
        %v899 = vshrl.u32 %v898, 7
        %v900 = vsub.s32 0, %v899
        %v901 = vrot.slane %v896, %v900
        %902 = vrot.lane.b32.xlu0 %v901, 32
        %v903 = vpop.permute.xlu0 %902
        %v905 = vadd.f32 %v747, %v903
        %907 = vrot.lane.b32.xlu0 %v905, 120
        %v908 = vpop.permute.xlu0 %907
        %909 = vrot.lane.b32.xlu0 %v905, 112
        %v910 = vpop.permute.xlu0 %909
        %911 = vrot.lane.b32.xlu0 %v905, 104
        %v912 = vpop.permute.xlu0 %911
        %913 = vrot.lane.b32.xlu0 %v905, 96
        %v914 = vpop.permute.xlu0 %913
        %915 = vrot.lane.b32.xlu0 %v908, 96
        %v916 = vpop.permute.xlu0 %915
        %917 = vrot.lane.b32.xlu0 %v910, 96
        %v918 = vpop.permute.xlu0 %917
        %919 = vrot.lane.b32.xlu0 %v912, 96
        %v920 = vpop.permute.xlu0 %919
        %v925 = vcombine.low %v914, %v918
        %v926 = vcombine.high %v914, %v918
        %v928 = vunpack.c.l.s4 1983009808
        %v929 = vunpack.c.0.s8 %v928
        %v930 = vlaneseq
        %v931 = vshrl.u32 %v930, 7
        %v932 = vsub.s32 %v929, %v931
        %v933 = vrot.slane %v925, %v932
        %v935 = vunpack.c.l.s4 1983009808
        %v936 = vunpack.c.0.s8 %v935
        %v937 = vlaneseq
        %v938 = vshrl.u32 %v937, 7
        %v939 = vsub.s32 %v936, %v938
        %v940 = vrot.slane %v926, %v939
        %v941 = vcombine.low %v916, %v920
        %v942 = vcombine.high %v916, %v920
        %v944 = vunpack.c.l.s4 1983009808
        %v945 = vunpack.c.0.s8 %v944
        %v946 = vlaneseq
        %v947 = vshrl.u32 %v946, 7
        %v948 = vsub.s32 %v945, %v947
        %v949 = vrot.slane %v941, %v948
        %v951 = vunpack.c.l.s4 1983009808
        %v952 = vunpack.c.0.s8 %v951
        %v953 = vlaneseq
        %v954 = vshrl.u32 %v953, 7
        %v955 = vsub.s32 %v952, %v954
        %v956 = vrot.slane %v942, %v955
        %v957 = vcombine.low %v933, %v949
        %v958 = vcombine.high %v933, %v949
        %v960 = vunpack.c.l.s4 1934713408
        %v961 = vunpack.c.0.s8 %v960
        %v962 = vlaneseq
        %v963 = vshrl.u32 %v962, 7
        %v964 = vsub.s32 %v961, %v963
        %v965 = vrot.slane %v957, %v964
        %v967 = vunpack.c.l.s4 1934713408
        %v968 = vunpack.c.0.s8 %v967
        %v969 = vlaneseq
        %v970 = vshrl.u32 %v969, 7
        %v971 = vsub.s32 %v968, %v970
        %v972 = vrot.slane %v958, %v971
        %v973 = vcombine.low %v940, %v956
        %v974 = vcombine.high %v940, %v956
        %v976 = vunpack.c.l.s4 1934713408
        %v977 = vunpack.c.0.s8 %v976
        %v978 = vlaneseq
        %v979 = vshrl.u32 %v978, 7
        %v980 = vsub.s32 %v977, %v979
        %v981 = vrot.slane %v973, %v980
        %v983 = vunpack.c.l.s4 1934713408
        %v984 = vunpack.c.0.s8 %v983
        %v985 = vlaneseq
        %v986 = vshrl.u32 %v985, 7
        %v987 = vsub.s32 %v984, %v986
        %v988 = vrot.slane %v974, %v987
        %v989 = vcombine.high %v965, 0.0
        %v990 = vcombine.high %v972, 0.0
        %v991 = vcombine.high %v981, 0.0
        %v992 = vcombine.high %v988, 0.0
        %v993 = vcombine.low %v965, %v972
        %v995 = vunpack.c.l.s4 1983009808
        %v996 = vunpack.c.0.s8 %v995
        %v997 = vlaneseq
        %v998 = vshrl.u32 %v997, 7
        %v999 = vsub.s32 %v996, %v998
        %v1000 = vrot.slane %v993, %v999
        %v1001 = vcombine.low %v989, %v990
        %v1003 = vunpack.c.l.s4 1983009808
        %v1004 = vunpack.c.0.s8 %v1003
        %v1005 = vlaneseq
        %v1006 = vshrl.u32 %v1005, 7
        %v1007 = vsub.s32 %v1004, %v1006
        %v1008 = vrot.slane %v1001, %v1007
        %v1009 = vcombine.low %v981, %v988
        %v1011 = vunpack.c.l.s4 1983009808
        %v1012 = vunpack.c.0.s8 %v1011
        %v1013 = vlaneseq
        %v1014 = vshrl.u32 %v1013, 7
        %v1015 = vsub.s32 %v1012, %v1014
        %v1016 = vrot.slane %v1009, %v1015
        %v1017 = vcombine.low %v991, %v992
        %v1019 = vunpack.c.l.s4 1983009808
        %v1020 = vunpack.c.0.s8 %v1019
        %v1021 = vlaneseq
        %v1022 = vshrl.u32 %v1021, 7
        %v1023 = vsub.s32 %v1020, %v1022
        %v1024 = vrot.slane %v1017, %v1023
        %v1025 = vcombine.low %v1000, %v1008
        %v1026 = vcombine.high %v1000, %v1008
        %v1028 = vunpack.c.l.s4 1934713408
        %v1029 = vunpack.c.0.s8 %v1028
        %v1030 = vlaneseq
        %v1031 = vshrl.u32 %v1030, 7
        %v1032 = vsub.s32 %v1029, %v1031
        %v1033 = vrot.slane %v1025, %v1032
        %v1035 = vunpack.c.l.s4 1934713408
        %v1036 = vunpack.c.0.s8 %v1035
        %v1037 = vlaneseq
        %v1038 = vshrl.u32 %v1037, 7
        %v1039 = vsub.s32 %v1036, %v1038
        %v1040 = vrot.slane %v1026, %v1039
        %v1041 = vcombine.low %v1016, %v1024
        %v1042 = vcombine.high %v1016, %v1024
        %v1044 = vunpack.c.l.s4 1934713408
        %v1045 = vunpack.c.0.s8 %v1044
        %v1046 = vlaneseq
        %v1047 = vshrl.u32 %v1046, 7
        %v1048 = vsub.s32 %v1045, %v1047
        %v1049 = vrot.slane %v1041, %v1048
        %v1051 = vunpack.c.l.s4 1934713408
        %v1052 = vunpack.c.0.s8 %v1051
        %v1053 = vlaneseq
        %v1054 = vshrl.u32 %v1053, 7
        %v1055 = vsub.s32 %v1052, %v1054
        %v1056 = vrot.slane %v1042, %v1055
        %v1057 = vcombine.low %v1033, %v1049
        %v1058 = vcombine.high %v1033, %v1049
        %v1059 = vcombine.low %v1040, %v1056
        %v1060 = vcombine.high %v1040, %v1056
        %v1061 = vld [vmem:[#allocation2] sm:$0xff]
        %v1062 = vld [vmem:[#allocation2 + $0x8] sm:$0xff]
        %v1063 = vld [vmem:[#allocation2 + $0x10] sm:$0xff]
        %v1064 = vld [vmem:[#allocation2 + $0x18] sm:$0xff]
        %vm1065 = vcmask 64512
        %v1067 = vsel %vm1065, %v1061, 0
        %v1070 = vsel %vm1065, %v892, 0
        %1072 = vmatprep.subr.mxu0 0.0
        %1073 = vmatpush1.xpose.msra.mxu0 0.0
        %1074 = vmatprep.subr.mxu0 0.0
        %1075 = vmatpush1.xpose.msra.mxu0 0.0
        %1076 = vmatprep.subr.mxu0 0.0
        %1077 = vmatpush1.xpose.msra.mxu0 0.0
        %1078 = vmatprep.subr.mxu0 0.0
        %1079 = vmatpush1.xpose.msra.mxu0 0.0
        %1080 = vmatprep.subr.mxu0 0.0
        %1081 = vmatpush1.xpose.msra.mxu0 0.0
        %1082 = vmatprep.subr.mxu0 0.0
        %1083 = vmatpush1.xpose.msra.mxu0 0.0
        %1084 = vmatprep.subr.mxu0 0.0
        %1085 = vmatpush1.xpose.msra.mxu0 0.0
        %1086 = vmatprep.subr.mxu0 0.0
        %1087 = vmatpush1.xpose.msra.mxu0 0.0
        %1088 = vmatprep.subr.mxu0 0.0
        %1089 = vmatpush1.xpose.msra.mxu0 0.0
        %1090 = vmatprep.subr.mxu0 0.0
        %1091 = vmatpush1.xpose.msra.mxu0 0.0
        %1092 = vmatprep.subr.mxu0 0.0
        %1093 = vmatpush1.xpose.msra.mxu0 0.0
        %1094 = vmatprep.subr.mxu0 0.0
        %1095 = vmatpush1.xpose.msra.mxu0 0.0
        %1096 = vmatprep.subr.mxu0 0.0
        %1097 = vmatpush1.xpose.msra.mxu0 0.0
        %1098 = vmatprep.subr.mxu0 0.0
        %1099 = vmatpush1.xpose.msra.mxu0 0.0
        %1100 = vmatprep.subr.mxu0 0.0
        %1101 = vmatpush1.xpose.msra.mxu0 0.0
        %1102 = vmatprep.subr.mxu0 0.0
        %1103 = vmatpush1.xpose.msra.mxu0 %v1070
        %1104 = vmatprep.subr.mxu0 0.0
        %1105 = vmatpush2.xpose.msra.mxu0 0.0
        %1106 = vmatprep.subr.mxu0 0.0
        %1107 = vmatpush2.xpose.msra.mxu0 0.0
        %1108 = vmatprep.subr.mxu0 0.0
        %1109 = vmatpush2.xpose.msra.mxu0 0.0
        %1110 = vmatprep.subr.mxu0 0.0
        %1111 = vmatpush2.xpose.msra.mxu0 0.0
        %1112 = vmatprep.subr.mxu0 0.0
        %1113 = vmatpush2.xpose.msra.mxu0 0.0
        %1114 = vmatprep.subr.mxu0 0.0
        %1115 = vmatpush2.xpose.msra.mxu0 0.0
        %1116 = vmatprep.subr.mxu0 0.0
        %1117 = vmatpush2.xpose.msra.mxu0 0.0
        %1118 = vmatprep.subr.mxu0 0.0
        %1119 = vmatpush2.xpose.msra.mxu0 0.0
        %1120 = vmatprep.subr.mxu0 0.0
        %1121 = vmatpush2.xpose.msra.mxu0 0.0
        %1122 = vmatprep.subr.mxu0 0.0
        %1123 = vmatpush2.xpose.msra.mxu0 0.0
        %1124 = vmatprep.subr.mxu0 0.0
        %1125 = vmatpush2.xpose.msra.mxu0 0.0
        %1126 = vmatprep.subr.mxu0 0.0
        %1127 = vmatpush2.xpose.msra.mxu0 0.0
        %1128 = vmatprep.subr.mxu0 0.0
        %1129 = vmatpush2.xpose.msra.mxu0 0.0
        %1130 = vmatprep.subr.mxu0 0.0
        %1131 = vmatpush2.xpose.msra.mxu0 0.0
        %1132 = vmatprep.subr.mxu0 0.0
        %1133 = vmatpush2.xpose.msra.mxu0 0.0
        %1134 = vmatprep.subr.mxu0 0.0
        %1135 = vmatpush2.xpose.msra.mxu0 0.0
        %1136 = vmatprep.mubr.f32.mxu0 0.0
        %1137 = vmatmul.mubr.f32.gmra.mxu0 %v1067
        %v1138 = vpop.f32.mrf.mxu0
        %v1139 = vadd.f32 0.0, %v1138
        %v1140 = vpop.f32.mrf.mxu0
        %1141 = vdwg.mxu0
        %v1143 = vsel %vm1065, %v1062, 0
        %v1146 = vsel %vm1065, %v893, 0
        %1148 = vmatprep.subr.mxu0 0.0
        %1149 = vmatpush1.xpose.msra.mxu0 0.0
        %1150 = vmatprep.subr.mxu0 0.0
        %1151 = vmatpush1.xpose.msra.mxu0 0.0
        %1152 = vmatprep.subr.mxu0 0.0
        %1153 = vmatpush1.xpose.msra.mxu0 0.0
        %1154 = vmatprep.subr.mxu0 0.0
        %1155 = vmatpush1.xpose.msra.mxu0 0.0
        %1156 = vmatprep.subr.mxu0 0.0
        %1157 = vmatpush1.xpose.msra.mxu0 0.0
        %1158 = vmatprep.subr.mxu0 0.0
        %1159 = vmatpush1.xpose.msra.mxu0 0.0
        %1160 = vmatprep.subr.mxu0 0.0
        %1161 = vmatpush1.xpose.msra.mxu0 0.0
        %1162 = vmatprep.subr.mxu0 0.0
        %1163 = vmatpush1.xpose.msra.mxu0 0.0
        %1164 = vmatprep.subr.mxu0 0.0
        %1165 = vmatpush1.xpose.msra.mxu0 0.0
        %1166 = vmatprep.subr.mxu0 0.0
        %1167 = vmatpush1.xpose.msra.mxu0 0.0
        %1168 = vmatprep.subr.mxu0 0.0
        %1169 = vmatpush1.xpose.msra.mxu0 0.0
        %1170 = vmatprep.subr.mxu0 0.0
        %1171 = vmatpush1.xpose.msra.mxu0 0.0
        %1172 = vmatprep.subr.mxu0 0.0
        %1173 = vmatpush1.xpose.msra.mxu0 0.0
        %1174 = vmatprep.subr.mxu0 0.0
        %1175 = vmatpush1.xpose.msra.mxu0 0.0
        %1176 = vmatprep.subr.mxu0 0.0
        %1177 = vmatpush1.xpose.msra.mxu0 0.0
        %1178 = vmatprep.subr.mxu0 0.0
        %1179 = vmatpush1.xpose.msra.mxu0 %v1146
        %1180 = vmatprep.subr.mxu0 0.0
        %1181 = vmatpush2.xpose.msra.mxu0 0.0
        %1182 = vmatprep.subr.mxu0 0.0
        %1183 = vmatpush2.xpose.msra.mxu0 0.0
        %1184 = vmatprep.subr.mxu0 0.0
        %1185 = vmatpush2.xpose.msra.mxu0 0.0
        %1186 = vmatprep.subr.mxu0 0.0
        %1187 = vmatpush2.xpose.msra.mxu0 0.0
        %1188 = vmatprep.subr.mxu0 0.0
        %1189 = vmatpush2.xpose.msra.mxu0 0.0
        %1190 = vmatprep.subr.mxu0 0.0
        %1191 = vmatpush2.xpose.msra.mxu0 0.0
        %1192 = vmatprep.subr.mxu0 0.0
        %1193 = vmatpush2.xpose.msra.mxu0 0.0
        %1194 = vmatprep.subr.mxu0 0.0
        %1195 = vmatpush2.xpose.msra.mxu0 0.0
        %1196 = vmatprep.subr.mxu0 0.0
        %1197 = vmatpush2.xpose.msra.mxu0 0.0
        %1198 = vmatprep.subr.mxu0 0.0
        %1199 = vmatpush2.xpose.msra.mxu0 0.0
        %1200 = vmatprep.subr.mxu0 0.0
        %1201 = vmatpush2.xpose.msra.mxu0 0.0
        %1202 = vmatprep.subr.mxu0 0.0
        %1203 = vmatpush2.xpose.msra.mxu0 0.0
        %1204 = vmatprep.subr.mxu0 0.0
        %1205 = vmatpush2.xpose.msra.mxu0 0.0
        %1206 = vmatprep.subr.mxu0 0.0
        %1207 = vmatpush2.xpose.msra.mxu0 0.0
        %1208 = vmatprep.subr.mxu0 0.0
        %1209 = vmatpush2.xpose.msra.mxu0 0.0
        %1210 = vmatprep.subr.mxu0 0.0
        %1211 = vmatpush2.xpose.msra.mxu0 0.0
        %1212 = vmatprep.mubr.f32.mxu0 0.0
        %1213 = vmatmul.mubr.f32.gmra.mxu0 %v1143
        %v1214 = vpop.f32.mrf.mxu0
        %v1215 = vadd.f32 0.0, %v1214
        %v1216 = vpop.f32.mrf.mxu0
        %1217 = vdwg.mxu0
        %v1219 = vsel %vm1065, %v1063, 0
        %v1222 = vsel %vm1065, %v894, 0
        %1224 = vmatprep.subr.mxu0 0.0
        %1225 = vmatpush1.xpose.msra.mxu0 0.0
        %1226 = vmatprep.subr.mxu0 0.0
        %1227 = vmatpush1.xpose.msra.mxu0 0.0
        %1228 = vmatprep.subr.mxu0 0.0
        %1229 = vmatpush1.xpose.msra.mxu0 0.0
        %1230 = vmatprep.subr.mxu0 0.0
        %1231 = vmatpush1.xpose.msra.mxu0 0.0
        %1232 = vmatprep.subr.mxu0 0.0
        %1233 = vmatpush1.xpose.msra.mxu0 0.0
        %1234 = vmatprep.subr.mxu0 0.0
        %1235 = vmatpush1.xpose.msra.mxu0 0.0
        %1236 = vmatprep.subr.mxu0 0.0
        %1237 = vmatpush1.xpose.msra.mxu0 0.0
        %1238 = vmatprep.subr.mxu0 0.0
        %1239 = vmatpush1.xpose.msra.mxu0 0.0
        %1240 = vmatprep.subr.mxu0 0.0
        %1241 = vmatpush1.xpose.msra.mxu0 0.0
        %1242 = vmatprep.subr.mxu0 0.0
        %1243 = vmatpush1.xpose.msra.mxu0 0.0
        %1244 = vmatprep.subr.mxu0 0.0
        %1245 = vmatpush1.xpose.msra.mxu0 0.0
        %1246 = vmatprep.subr.mxu0 0.0
        %1247 = vmatpush1.xpose.msra.mxu0 0.0
        %1248 = vmatprep.subr.mxu0 0.0
        %1249 = vmatpush1.xpose.msra.mxu0 0.0
        %1250 = vmatprep.subr.mxu0 0.0
        %1251 = vmatpush1.xpose.msra.mxu0 0.0
        %1252 = vmatprep.subr.mxu0 0.0
        %1253 = vmatpush1.xpose.msra.mxu0 0.0
        %1254 = vmatprep.subr.mxu0 0.0
        %1255 = vmatpush1.xpose.msra.mxu0 %v1222
        %1256 = vmatprep.subr.mxu0 0.0
        %1257 = vmatpush2.xpose.msra.mxu0 0.0
        %1258 = vmatprep.subr.mxu0 0.0
        %1259 = vmatpush2.xpose.msra.mxu0 0.0
        %1260 = vmatprep.subr.mxu0 0.0
        %1261 = vmatpush2.xpose.msra.mxu0 0.0
        %1262 = vmatprep.subr.mxu0 0.0
        %1263 = vmatpush2.xpose.msra.mxu0 0.0
        %1264 = vmatprep.subr.mxu0 0.0
        %1265 = vmatpush2.xpose.msra.mxu0 0.0
        %1266 = vmatprep.subr.mxu0 0.0
        %1267 = vmatpush2.xpose.msra.mxu0 0.0
        %1268 = vmatprep.subr.mxu0 0.0
        %1269 = vmatpush2.xpose.msra.mxu0 0.0
        %1270 = vmatprep.subr.mxu0 0.0
        %1271 = vmatpush2.xpose.msra.mxu0 0.0
        %1272 = vmatprep.subr.mxu0 0.0
        %1273 = vmatpush2.xpose.msra.mxu0 0.0
        %1274 = vmatprep.subr.mxu0 0.0
        %1275 = vmatpush2.xpose.msra.mxu0 0.0
        %1276 = vmatprep.subr.mxu0 0.0
        %1277 = vmatpush2.xpose.msra.mxu0 0.0
        %1278 = vmatprep.subr.mxu0 0.0
        %1279 = vmatpush2.xpose.msra.mxu0 0.0
        %1280 = vmatprep.subr.mxu0 0.0
        %1281 = vmatpush2.xpose.msra.mxu0 0.0
        %1282 = vmatprep.subr.mxu0 0.0
        %1283 = vmatpush2.xpose.msra.mxu0 0.0
        %1284 = vmatprep.subr.mxu0 0.0
        %1285 = vmatpush2.xpose.msra.mxu0 0.0
        %1286 = vmatprep.subr.mxu0 0.0
        %1287 = vmatpush2.xpose.msra.mxu0 0.0
        %1288 = vmatprep.mubr.f32.mxu0 0.0
        %1289 = vmatmul.mubr.f32.gmra.mxu0 %v1219
        %v1290 = vpop.f32.mrf.mxu0
        %v1291 = vadd.f32 0.0, %v1290
        %v1292 = vpop.f32.mrf.mxu0
        %1293 = vdwg.mxu0
        %v1295 = vsel %vm1065, %v1064, 0
        %v1298 = vsel %vm1065, %v895, 0
        %1300 = vmatprep.subr.mxu0 0.0
        %1301 = vmatpush1.xpose.msra.mxu0 0.0
        %1302 = vmatprep.subr.mxu0 0.0
        %1303 = vmatpush1.xpose.msra.mxu0 0.0
        %1304 = vmatprep.subr.mxu0 0.0
        %1305 = vmatpush1.xpose.msra.mxu0 0.0
        %1306 = vmatprep.subr.mxu0 0.0
        %1307 = vmatpush1.xpose.msra.mxu0 0.0
        %1308 = vmatprep.subr.mxu0 0.0
        %1309 = vmatpush1.xpose.msra.mxu0 0.0
        %1310 = vmatprep.subr.mxu0 0.0
        %1311 = vmatpush1.xpose.msra.mxu0 0.0
        %1312 = vmatprep.subr.mxu0 0.0
        %1313 = vmatpush1.xpose.msra.mxu0 0.0
        %1314 = vmatprep.subr.mxu0 0.0
        %1315 = vmatpush1.xpose.msra.mxu0 0.0
        %1316 = vmatprep.subr.mxu0 0.0
        %1317 = vmatpush1.xpose.msra.mxu0 0.0
        %1318 = vmatprep.subr.mxu0 0.0
        %1319 = vmatpush1.xpose.msra.mxu0 0.0
        %1320 = vmatprep.subr.mxu0 0.0
        %1321 = vmatpush1.xpose.msra.mxu0 0.0
        %1322 = vmatprep.subr.mxu0 0.0
        %1323 = vmatpush1.xpose.msra.mxu0 0.0
        %1324 = vmatprep.subr.mxu0 0.0
        %1325 = vmatpush1.xpose.msra.mxu0 0.0
        %1326 = vmatprep.subr.mxu0 0.0
        %1327 = vmatpush1.xpose.msra.mxu0 0.0
        %1328 = vmatprep.subr.mxu0 0.0
        %1329 = vmatpush1.xpose.msra.mxu0 0.0
        %1330 = vmatprep.subr.mxu0 0.0
        %1331 = vmatpush1.xpose.msra.mxu0 %v1298
        %1332 = vmatprep.subr.mxu0 0.0
        %1333 = vmatpush2.xpose.msra.mxu0 0.0
        %1334 = vmatprep.subr.mxu0 0.0
        %1335 = vmatpush2.xpose.msra.mxu0 0.0
        %1336 = vmatprep.subr.mxu0 0.0
        %1337 = vmatpush2.xpose.msra.mxu0 0.0
        %1338 = vmatprep.subr.mxu0 0.0
        %1339 = vmatpush2.xpose.msra.mxu0 0.0
        %1340 = vmatprep.subr.mxu0 0.0
        %1341 = vmatpush2.xpose.msra.mxu0 0.0
        %1342 = vmatprep.subr.mxu0 0.0
        %1343 = vmatpush2.xpose.msra.mxu0 0.0
        %1344 = vmatprep.subr.mxu0 0.0
        %1345 = vmatpush2.xpose.msra.mxu0 0.0
        %1346 = vmatprep.subr.mxu0 0.0
        %1347 = vmatpush2.xpose.msra.mxu0 0.0
        %1348 = vmatprep.subr.mxu0 0.0
        %1349 = vmatpush2.xpose.msra.mxu0 0.0
        %1350 = vmatprep.subr.mxu0 0.0
        %1351 = vmatpush2.xpose.msra.mxu0 0.0
        %1352 = vmatprep.subr.mxu0 0.0
        %1353 = vmatpush2.xpose.msra.mxu0 0.0
        %1354 = vmatprep.subr.mxu0 0.0
        %1355 = vmatpush2.xpose.msra.mxu0 0.0
        %1356 = vmatprep.subr.mxu0 0.0
        %1357 = vmatpush2.xpose.msra.mxu0 0.0
        %1358 = vmatprep.subr.mxu0 0.0
        %1359 = vmatpush2.xpose.msra.mxu0 0.0
        %1360 = vmatprep.subr.mxu0 0.0
        %1361 = vmatpush2.xpose.msra.mxu0 0.0
        %1362 = vmatprep.subr.mxu0 0.0
        %1363 = vmatpush2.xpose.msra.mxu0 0.0
        %1364 = vmatprep.mubr.f32.mxu0 0.0
        %1365 = vmatmul.mubr.f32.gmra.mxu0 %v1295
        %v1366 = vpop.f32.mrf.mxu0
        %v1367 = vadd.f32 0.0, %v1366
        %v1368 = vpop.f32.mrf.mxu0
        %1369 = vdwg.mxu0
        %v1370 = vld [vmem:[#allocation3] sm:$0xff]
        %v1371 = vld [vmem:[#allocation3 + $0x8] sm:$0xff]
        %v1372 = vld [vmem:[#allocation3 + $0x10] sm:$0xff]
        %v1373 = vld [vmem:[#allocation3 + $0x18] sm:$0xff]
        %v1374 = vsel %vm1065, %v1139, -inf
        %1375 = vmax.xlane.f32.xlu0 %v1374
        %v1376 = vpop.xlane.xlu0 %1375
        %v1377 = vsel %vm1065, %v1215, -inf
        %1378 = vmax.xlane.f32.xlu0 %v1377
        %v1379 = vpop.xlane.xlu0 %1378
        %v1380 = vsel %vm1065, %v1291, -inf
        %1381 = vmax.xlane.f32.xlu0 %v1380
        %v1382 = vpop.xlane.xlu0 %1381
        %v1383 = vsel %vm1065, %v1367, -inf
        %1384 = vmax.xlane.f32.xlu0 %v1383
        %v1385 = vpop.xlane.xlu0 %1384
        %v1386 = vmax.f32 %v1370, %v1376
        %v1387 = vmax.f32 %v1371, %v1379
        %v1388 = vmax.f32 %v1372, %v1382
        %v1389 = vmax.f32 %v1373, %v1385
        %v1390 = vsub.f32 %v1370, %v1386
        %v1391 = vsub.f32 %v1371, %v1387
        %v1392 = vsub.f32 %v1372, %v1388
        %v1393 = vsub.f32 %v1373, %v1389
        %v1394 = vmul.f32 %v1390, 1.442695
        %v1395 = vpow.pop %v1394
        %v1396 = vmul.f32 %v1391, 1.442695
        %v1397 = vpow.pop %v1396
        %v1398 = vmul.f32 %v1392, 1.442695
        %v1399 = vpow.pop %v1398
        %v1400 = vmul.f32 %v1393, 1.442695
        %v1401 = vpow.pop %v1400
        %1403 = vset.pattern.permute.xlu0 0
        %1404 = vperm.xlu0 %1403, %v1386
        %v1405 = vpop.permute.xlu0 %1404
        %1408 = vset.pattern.permute.xlu0 0
        %1409 = vperm.xlu0 %1408, %v1387
        %v1410 = vpop.permute.xlu0 %1409
        %1413 = vset.pattern.permute.xlu0 0
        %1414 = vperm.xlu0 %1413, %v1388
        %v1415 = vpop.permute.xlu0 %1414
        %1418 = vset.pattern.permute.xlu0 0
        %1419 = vperm.xlu0 %1418, %v1389
        %v1420 = vpop.permute.xlu0 %1419
        %v1422 = vsub.f32 %v1139, %v1405
        %v1423 = vsub.f32 %v1215, %v1410
        %v1424 = vsub.f32 %v1291, %v1415
        %v1425 = vsub.f32 %v1367, %v1420
        %v1426 = vmul.f32 %v1422, 1.442695
        %v1427 = vpow.pop %v1426
        %v1428 = vmul.f32 %v1423, 1.442695
        %v1429 = vpow.pop %v1428
        %v1430 = vmul.f32 %v1424, 1.442695
        %v1431 = vpow.pop %v1430
        %v1432 = vmul.f32 %v1425, 1.442695
        %v1433 = vpow.pop %v1432
        %v1434 = vld [vmem:[#allocation4] sm:$0xff]
        %v1435 = vld [vmem:[#allocation4 + $0x8] sm:$0xff]
        %v1436 = vld [vmem:[#allocation4 + $0x10] sm:$0xff]
        %v1437 = vld [vmem:[#allocation4 + $0x18] sm:$0xff]
        %v1438 = vmul.f32 %v1395, %v1434
        %v1439 = vmul.f32 %v1397, %v1435
        %v1440 = vmul.f32 %v1399, %v1436
        %v1441 = vmul.f32 %v1401, %v1437
        %v1442 = vsel %vm1065, %v1427, 0.0
        %1443 = vadd.xlane.f32.xlu0 %v1442
        %v1444 = vpop.xlane.xlu0 %1443
        %v1445 = vsel %vm1065, %v1429, 0.0
        %1446 = vadd.xlane.f32.xlu0 %v1445
        %v1447 = vpop.xlane.xlu0 %1446
        %v1448 = vsel %vm1065, %v1431, 0.0
        %1449 = vadd.xlane.f32.xlu0 %v1448
        %v1450 = vpop.xlane.xlu0 %1449
        %v1451 = vsel %vm1065, %v1433, 0.0
        %1452 = vadd.xlane.f32.xlu0 %v1451
        %v1453 = vpop.xlane.xlu0 %1452
        %v1454 = vadd.f32 %v1438, %v1444
        %v1455 = vadd.f32 %v1439, %v1447
        %v1456 = vadd.f32 %v1440, %v1450
        %v1457 = vadd.f32 %v1441, %v1453
        %vm1458 = vcmask 7168
        %1459 = vst.msk [vmem:[#allocation4] sm:$0xff] %vm1458, %v1454
        %1460 = vst.msk [vmem:[#allocation4 + $0x8] sm:$0xff] %vm1458, %v1455
        %1461 = vst.msk [vmem:[#allocation4 + $0x10] sm:$0xff] %vm1458, %v1456
        %1462 = vst.msk [vmem:[#allocation4 + $0x18] sm:$0xff] %vm1458, %v1457
        %v1463 = vld [vmem:[#allocation5] sm:$0xff]
        %v1464 = vld [vmem:[#allocation5 + $0x8] sm:$0xff]
        %v1465 = vld [vmem:[#allocation5 + $0x10] sm:$0xff]
        %v1466 = vld [vmem:[#allocation5 + $0x18] sm:$0xff]
        %1468 = vset.pattern.permute.xlu0 0
        %1469 = vperm.xlu0 %1468, %v1395
        %v1470 = vpop.permute.xlu0 %1469
        %1473 = vset.pattern.permute.xlu0 0
        %1474 = vperm.xlu0 %1473, %v1397
        %v1475 = vpop.permute.xlu0 %1474
        %1478 = vset.pattern.permute.xlu0 0
        %1479 = vperm.xlu0 %1478, %v1399
        %v1480 = vpop.permute.xlu0 %1479
        %1483 = vset.pattern.permute.xlu0 0
        %1484 = vperm.xlu0 %1483, %v1401
        %v1485 = vpop.permute.xlu0 %1484
        %v1487 = vmul.f32 %v1470, %v1463
        %v1488 = vmul.f32 %v1475, %v1464
        %v1489 = vmul.f32 %v1480, %v1465
        %v1490 = vmul.f32 %v1485, %v1466
        %v1492 = vsel %vm1065, %v1427, 0
        %1494 = vmatprep.subr.mxu0 0.0
        %1495 = vmatpush1.msra.mxu0 0.0
        %1496 = vmatprep.subr.mxu0 0.0
        %1497 = vmatpush1.msra.mxu0 0.0
        %1498 = vmatprep.subr.mxu0 0.0
        %1499 = vmatpush1.msra.mxu0 0.0
        %1500 = vmatprep.subr.mxu0 0.0
        %1501 = vmatpush1.msra.mxu0 0.0
        %1502 = vmatprep.subr.mxu0 0.0
        %1503 = vmatpush1.msra.mxu0 0.0
        %1504 = vmatprep.subr.mxu0 0.0
        %1505 = vmatpush1.msra.mxu0 0.0
        %1506 = vmatprep.subr.mxu0 0.0
        %1507 = vmatpush1.msra.mxu0 0.0
        %1508 = vmatprep.subr.mxu0 0.0
        %1509 = vmatpush1.msra.mxu0 0.0
        %1510 = vmatprep.subr.mxu0 0.0
        %1511 = vmatpush1.msra.mxu0 0.0
        %1512 = vmatprep.subr.mxu0 0.0
        %1513 = vmatpush1.msra.mxu0 0.0
        %1514 = vmatprep.subr.mxu0 0.0
        %1515 = vmatpush1.msra.mxu0 0.0
        %1516 = vmatprep.subr.mxu0 0.0
        %1517 = vmatpush1.msra.mxu0 0.0
        %1518 = vmatprep.subr.mxu0 0.0
        %1519 = vmatpush1.msra.mxu0 0.0
        %1520 = vmatprep.subr.mxu0 0.0
        %1521 = vmatpush1.msra.mxu0 0.0
        %1522 = vmatprep.subr.mxu0 0.0
        %1523 = vmatpush1.msra.mxu0 0.0
        %1524 = vmatprep.subr.mxu0 0.0
        %1525 = vmatpush1.msra.mxu0 %v1057
        %1526 = vmatprep.subr.mxu0 0.0
        %1527 = vmatpush2.msra.mxu0 0.0
        %1528 = vmatprep.subr.mxu0 0.0
        %1529 = vmatpush2.msra.mxu0 0.0
        %1530 = vmatprep.subr.mxu0 0.0
        %1531 = vmatpush2.msra.mxu0 0.0
        %1532 = vmatprep.subr.mxu0 0.0
        %1533 = vmatpush2.msra.mxu0 0.0
        %1534 = vmatprep.subr.mxu0 0.0
        %1535 = vmatpush2.msra.mxu0 0.0
        %1536 = vmatprep.subr.mxu0 0.0
        %1537 = vmatpush2.msra.mxu0 0.0
        %1538 = vmatprep.subr.mxu0 0.0
        %1539 = vmatpush2.msra.mxu0 0.0
        %1540 = vmatprep.subr.mxu0 0.0
        %1541 = vmatpush2.msra.mxu0 0.0
        %1542 = vmatprep.subr.mxu0 0.0
        %1543 = vmatpush2.msra.mxu0 0.0
        %1544 = vmatprep.subr.mxu0 0.0
        %1545 = vmatpush2.msra.mxu0 0.0
        %1546 = vmatprep.subr.mxu0 0.0
        %1547 = vmatpush2.msra.mxu0 0.0
        %1548 = vmatprep.subr.mxu0 0.0
        %1549 = vmatpush2.msra.mxu0 0.0
        %1550 = vmatprep.subr.mxu0 0.0
        %1551 = vmatpush2.msra.mxu0 0.0
        %1552 = vmatprep.subr.mxu0 0.0
        %1553 = vmatpush2.msra.mxu0 0.0
        %1554 = vmatprep.subr.mxu0 0.0
        %1555 = vmatpush2.msra.mxu0 0.0
        %1556 = vmatprep.subr.mxu0 0.0
        %1557 = vmatpush2.msra.mxu0 0.0
        %1558 = vmatprep.mubr.f32.mxu0 0.0
        %1559 = vmatmul.mubr.f32.gmra.mxu0 %v1492
        %v1560 = vpop.f32.mrf.mxu0
        %v1561 = vadd.f32 0.0, %v1560
        %v1562 = vpop.f32.mrf.mxu0
        %1563 = vdwg.mxu0
        %v1565 = vsel %vm1065, %v1429, 0
        %1567 = vmatprep.subr.mxu0 0.0
        %1568 = vmatpush1.msra.mxu0 0.0
        %1569 = vmatprep.subr.mxu0 0.0
        %1570 = vmatpush1.msra.mxu0 0.0
        %1571 = vmatprep.subr.mxu0 0.0
        %1572 = vmatpush1.msra.mxu0 0.0
        %1573 = vmatprep.subr.mxu0 0.0
        %1574 = vmatpush1.msra.mxu0 0.0
        %1575 = vmatprep.subr.mxu0 0.0
        %1576 = vmatpush1.msra.mxu0 0.0
        %1577 = vmatprep.subr.mxu0 0.0
        %1578 = vmatpush1.msra.mxu0 0.0
        %1579 = vmatprep.subr.mxu0 0.0
        %1580 = vmatpush1.msra.mxu0 0.0
        %1581 = vmatprep.subr.mxu0 0.0
        %1582 = vmatpush1.msra.mxu0 0.0
        %1583 = vmatprep.subr.mxu0 0.0
        %1584 = vmatpush1.msra.mxu0 0.0
        %1585 = vmatprep.subr.mxu0 0.0
        %1586 = vmatpush1.msra.mxu0 0.0
        %1587 = vmatprep.subr.mxu0 0.0
        %1588 = vmatpush1.msra.mxu0 0.0
        %1589 = vmatprep.subr.mxu0 0.0
        %1590 = vmatpush1.msra.mxu0 0.0
        %1591 = vmatprep.subr.mxu0 0.0
        %1592 = vmatpush1.msra.mxu0 0.0
        %1593 = vmatprep.subr.mxu0 0.0
        %1594 = vmatpush1.msra.mxu0 0.0
        %1595 = vmatprep.subr.mxu0 0.0
        %1596 = vmatpush1.msra.mxu0 0.0
        %1597 = vmatprep.subr.mxu0 0.0
        %1598 = vmatpush1.msra.mxu0 %v1058
        %1599 = vmatprep.subr.mxu0 0.0
        %1600 = vmatpush2.msra.mxu0 0.0
        %1601 = vmatprep.subr.mxu0 0.0
        %1602 = vmatpush2.msra.mxu0 0.0
        %1603 = vmatprep.subr.mxu0 0.0
        %1604 = vmatpush2.msra.mxu0 0.0
        %1605 = vmatprep.subr.mxu0 0.0
        %1606 = vmatpush2.msra.mxu0 0.0
        %1607 = vmatprep.subr.mxu0 0.0
        %1608 = vmatpush2.msra.mxu0 0.0
        %1609 = vmatprep.subr.mxu0 0.0
        %1610 = vmatpush2.msra.mxu0 0.0
        %1611 = vmatprep.subr.mxu0 0.0
        %1612 = vmatpush2.msra.mxu0 0.0
        %1613 = vmatprep.subr.mxu0 0.0
        %1614 = vmatpush2.msra.mxu0 0.0
        %1615 = vmatprep.subr.mxu0 0.0
        %1616 = vmatpush2.msra.mxu0 0.0
        %1617 = vmatprep.subr.mxu0 0.0
        %1618 = vmatpush2.msra.mxu0 0.0
        %1619 = vmatprep.subr.mxu0 0.0
        %1620 = vmatpush2.msra.mxu0 0.0
        %1621 = vmatprep.subr.mxu0 0.0
        %1622 = vmatpush2.msra.mxu0 0.0
        %1623 = vmatprep.subr.mxu0 0.0
        %1624 = vmatpush2.msra.mxu0 0.0
        %1625 = vmatprep.subr.mxu0 0.0
        %1626 = vmatpush2.msra.mxu0 0.0
        %1627 = vmatprep.subr.mxu0 0.0
        %1628 = vmatpush2.msra.mxu0 0.0
        %1629 = vmatprep.subr.mxu0 0.0
        %1630 = vmatpush2.msra.mxu0 0.0
        %1631 = vmatprep.mubr.f32.mxu0 0.0
        %1632 = vmatmul.mubr.f32.gmra.mxu0 %v1565
        %v1633 = vpop.f32.mrf.mxu0
        %v1634 = vadd.f32 0.0, %v1633
        %v1635 = vpop.f32.mrf.mxu0
        %1636 = vdwg.mxu0
        %v1638 = vsel %vm1065, %v1431, 0
        %1640 = vmatprep.subr.mxu0 0.0
        %1641 = vmatpush1.msra.mxu0 0.0
        %1642 = vmatprep.subr.mxu0 0.0
        %1643 = vmatpush1.msra.mxu0 0.0
        %1644 = vmatprep.subr.mxu0 0.0
        %1645 = vmatpush1.msra.mxu0 0.0
        %1646 = vmatprep.subr.mxu0 0.0
        %1647 = vmatpush1.msra.mxu0 0.0
        %1648 = vmatprep.subr.mxu0 0.0
        %1649 = vmatpush1.msra.mxu0 0.0
        %1650 = vmatprep.subr.mxu0 0.0
        %1651 = vmatpush1.msra.mxu0 0.0
        %1652 = vmatprep.subr.mxu0 0.0
        %1653 = vmatpush1.msra.mxu0 0.0
        %1654 = vmatprep.subr.mxu0 0.0
        %1655 = vmatpush1.msra.mxu0 0.0
        %1656 = vmatprep.subr.mxu0 0.0
        %1657 = vmatpush1.msra.mxu0 0.0
        %1658 = vmatprep.subr.mxu0 0.0
        %1659 = vmatpush1.msra.mxu0 0.0
        %1660 = vmatprep.subr.mxu0 0.0
        %1661 = vmatpush1.msra.mxu0 0.0
        %1662 = vmatprep.subr.mxu0 0.0
        %1663 = vmatpush1.msra.mxu0 0.0
        %1664 = vmatprep.subr.mxu0 0.0
        %1665 = vmatpush1.msra.mxu0 0.0
        %1666 = vmatprep.subr.mxu0 0.0
        %1667 = vmatpush1.msra.mxu0 0.0
        %1668 = vmatprep.subr.mxu0 0.0
        %1669 = vmatpush1.msra.mxu0 0.0
        %1670 = vmatprep.subr.mxu0 0.0
        %1671 = vmatpush1.msra.mxu0 %v1059
        %1672 = vmatprep.subr.mxu0 0.0
        %1673 = vmatpush2.msra.mxu0 0.0
        %1674 = vmatprep.subr.mxu0 0.0
        %1675 = vmatpush2.msra.mxu0 0.0
        %1676 = vmatprep.subr.mxu0 0.0
        %1677 = vmatpush2.msra.mxu0 0.0
        %1678 = vmatprep.subr.mxu0 0.0
        %1679 = vmatpush2.msra.mxu0 0.0
        %1680 = vmatprep.subr.mxu0 0.0
        %1681 = vmatpush2.msra.mxu0 0.0
        %1682 = vmatprep.subr.mxu0 0.0
        %1683 = vmatpush2.msra.mxu0 0.0
        %1684 = vmatprep.subr.mxu0 0.0
        %1685 = vmatpush2.msra.mxu0 0.0
        %1686 = vmatprep.subr.mxu0 0.0
        %1687 = vmatpush2.msra.mxu0 0.0
        %1688 = vmatprep.subr.mxu0 0.0
        %1689 = vmatpush2.msra.mxu0 0.0
        %1690 = vmatprep.subr.mxu0 0.0
        %1691 = vmatpush2.msra.mxu0 0.0
        %1692 = vmatprep.subr.mxu0 0.0
        %1693 = vmatpush2.msra.mxu0 0.0
        %1694 = vmatprep.subr.mxu0 0.0
        %1695 = vmatpush2.msra.mxu0 0.0
        %1696 = vmatprep.subr.mxu0 0.0
        %1697 = vmatpush2.msra.mxu0 0.0
        %1698 = vmatprep.subr.mxu0 0.0
        %1699 = vmatpush2.msra.mxu0 0.0
        %1700 = vmatprep.subr.mxu0 0.0
        %1701 = vmatpush2.msra.mxu0 0.0
        %1702 = vmatprep.subr.mxu0 0.0
        %1703 = vmatpush2.msra.mxu0 0.0
        %1704 = vmatprep.mubr.f32.mxu0 0.0
        %1705 = vmatmul.mubr.f32.gmra.mxu0 %v1638
        %v1706 = vpop.f32.mrf.mxu0
        %v1707 = vadd.f32 0.0, %v1706
        %v1708 = vpop.f32.mrf.mxu0
        %1709 = vdwg.mxu0
        %v1711 = vsel %vm1065, %v1433, 0
        %1713 = vmatprep.subr.mxu0 0.0
        %1714 = vmatpush1.msra.mxu0 0.0
        %1715 = vmatprep.subr.mxu0 0.0
        %1716 = vmatpush1.msra.mxu0 0.0
        %1717 = vmatprep.subr.mxu0 0.0
        %1718 = vmatpush1.msra.mxu0 0.0
        %1719 = vmatprep.subr.mxu0 0.0
        %1720 = vmatpush1.msra.mxu0 0.0
        %1721 = vmatprep.subr.mxu0 0.0
        %1722 = vmatpush1.msra.mxu0 0.0
        %1723 = vmatprep.subr.mxu0 0.0
        %1724 = vmatpush1.msra.mxu0 0.0
        %1725 = vmatprep.subr.mxu0 0.0
        %1726 = vmatpush1.msra.mxu0 0.0
        %1727 = vmatprep.subr.mxu0 0.0
        %1728 = vmatpush1.msra.mxu0 0.0
        %1729 = vmatprep.subr.mxu0 0.0
        %1730 = vmatpush1.msra.mxu0 0.0
        %1731 = vmatprep.subr.mxu0 0.0
        %1732 = vmatpush1.msra.mxu0 0.0
        %1733 = vmatprep.subr.mxu0 0.0
        %1734 = vmatpush1.msra.mxu0 0.0
        %1735 = vmatprep.subr.mxu0 0.0
        %1736 = vmatpush1.msra.mxu0 0.0
        %1737 = vmatprep.subr.mxu0 0.0
        %1738 = vmatpush1.msra.mxu0 0.0
        %1739 = vmatprep.subr.mxu0 0.0
        %1740 = vmatpush1.msra.mxu0 0.0
        %1741 = vmatprep.subr.mxu0 0.0
        %1742 = vmatpush1.msra.mxu0 0.0
        %1743 = vmatprep.subr.mxu0 0.0
        %1744 = vmatpush1.msra.mxu0 %v1060
        %1745 = vmatprep.subr.mxu0 0.0
        %1746 = vmatpush2.msra.mxu0 0.0
        %1747 = vmatprep.subr.mxu0 0.0
        %1748 = vmatpush2.msra.mxu0 0.0
        %1749 = vmatprep.subr.mxu0 0.0
        %1750 = vmatpush2.msra.mxu0 0.0
        %1751 = vmatprep.subr.mxu0 0.0
        %1752 = vmatpush2.msra.mxu0 0.0
        %1753 = vmatprep.subr.mxu0 0.0
        %1754 = vmatpush2.msra.mxu0 0.0
        %1755 = vmatprep.subr.mxu0 0.0
        %1756 = vmatpush2.msra.mxu0 0.0
        %1757 = vmatprep.subr.mxu0 0.0
        %1758 = vmatpush2.msra.mxu0 0.0
        %1759 = vmatprep.subr.mxu0 0.0
        %1760 = vmatpush2.msra.mxu0 0.0
        %1761 = vmatprep.subr.mxu0 0.0
        %1762 = vmatpush2.msra.mxu0 0.0
        %1763 = vmatprep.subr.mxu0 0.0
        %1764 = vmatpush2.msra.mxu0 0.0
        %1765 = vmatprep.subr.mxu0 0.0
        %1766 = vmatpush2.msra.mxu0 0.0
        %1767 = vmatprep.subr.mxu0 0.0
        %1768 = vmatpush2.msra.mxu0 0.0
        %1769 = vmatprep.subr.mxu0 0.0
        %1770 = vmatpush2.msra.mxu0 0.0
        %1771 = vmatprep.subr.mxu0 0.0
        %1772 = vmatpush2.msra.mxu0 0.0
        %1773 = vmatprep.subr.mxu0 0.0
        %1774 = vmatpush2.msra.mxu0 0.0
        %1775 = vmatprep.subr.mxu0 0.0
        %1776 = vmatpush2.msra.mxu0 0.0
        %1777 = vmatprep.mubr.f32.mxu0 0.0
        %1778 = vmatmul.mubr.f32.gmra.mxu0 %v1711
        %v1779 = vpop.f32.mrf.mxu0
        %v1780 = vadd.f32 0.0, %v1779
        %v1781 = vpop.f32.mrf.mxu0
        %1782 = vdwg.mxu0
        %v1783 = vadd.f32 %v1487, %v1561
        %v1784 = vadd.f32 %v1488, %v1634
        %v1785 = vadd.f32 %v1489, %v1707
        %v1786 = vadd.f32 %v1490, %v1780
        %1787 = vst.msk [vmem:[#allocation5] sm:$0xff] %vm1065, %v1783
        %1788 = vst.msk [vmem:[#allocation5 + $0x8] sm:$0xff] %vm1065, %v1784
        %1789 = vst.msk [vmem:[#allocation5 + $0x10] sm:$0xff] %vm1065, %v1785
        %1790 = vst.msk [vmem:[#allocation5 + $0x18] sm:$0xff] %vm1065, %v1786
        %1791 = vst.msk [vmem:[#allocation3] sm:$0xff] %vm1458, %v1386
        %1792 = vst.msk [vmem:[#allocation3 + $0x8] sm:$0xff] %vm1458, %v1387
        %1793 = vst.msk [vmem:[#allocation3 + $0x10] sm:$0xff] %vm1458, %v1388
        %1794 = vst.msk [vmem:[#allocation3 + $0x18] sm:$0xff] %vm1458, %v1389
        %p1795 = scmp.eq.s32.totalorder %s34, 1
        // Predicated region
        $region77: #{tpu_custom_call.1} parent=51 // pred_check
          %p1796 = pneg %p1795
        $region78: #{tpu_custom_call.1} parent=51 // pred_check_branch
          %1798 = sbr.rel (%p1796) target = $region80
        $region79: #{tpu_custom_call.1} parent=51 // pred_region
          %v1799 = vld [vmem:[#allocation5] sm:$0xff]
          %v1800 = vld [vmem:[#allocation5 + $0x8] sm:$0xff]
          %v1801 = vld [vmem:[#allocation5 + $0x10] sm:$0xff]
          %v1802 = vld [vmem:[#allocation5 + $0x18] sm:$0xff]
          %v1803 = vld [vmem:[#allocation4] sm:$0xff]
          %v1804 = vld [vmem:[#allocation4 + $0x8] sm:$0xff]
          %v1805 = vld [vmem:[#allocation4 + $0x10] sm:$0xff]
          %v1806 = vld [vmem:[#allocation4 + $0x18] sm:$0xff]
          %v1807 = vrcp.pop %v1803
          %v1808 = vrcp.pop %v1804
          %v1809 = vrcp.pop %v1805
          %v1810 = vrcp.pop %v1806
          %1812 = vset.pattern.permute.xlu0 0
          %1813 = vperm.xlu0 %1812, %v1807
          %v1814 = vpop.permute.xlu0 %1813
          %1817 = vset.pattern.permute.xlu0 0
          %1818 = vperm.xlu0 %1817, %v1808
          %v1819 = vpop.permute.xlu0 %1818
          %1822 = vset.pattern.permute.xlu0 0
          %1823 = vperm.xlu0 %1822, %v1809
          %v1824 = vpop.permute.xlu0 %1823
          %1827 = vset.pattern.permute.xlu0 0
          %1828 = vperm.xlu0 %1827, %v1810
          %v1829 = vpop.permute.xlu0 %1828
          %v1831 = vmul.f32 %v1799, %v1814
          %v1832 = vmul.f32 %v1800, %v1819
          %v1833 = vmul.f32 %v1801, %v1824
          %v1834 = vmul.f32 %v1802, %v1829
          %v1835 = vcombine.low %v1831, %v1833
          %v1836 = vcombine.high %v1831, %v1833
          %v1838 = vunpack.c.l.s4 1983009808
          %v1839 = vunpack.c.0.s8 %v1838
          %v1840 = vlaneseq
          %v1841 = vshrl.u32 %v1840, 7
          %v1842 = vsub.s32 %v1839, %v1841
          %v1843 = vrot.slane %v1835, %v1842
          %v1845 = vunpack.c.l.s4 1983009808
          %v1846 = vunpack.c.0.s8 %v1845
          %v1847 = vlaneseq
          %v1848 = vshrl.u32 %v1847, 7
          %v1849 = vsub.s32 %v1846, %v1848
          %v1850 = vrot.slane %v1836, %v1849
          %v1851 = vcombine.low %v1832, %v1834
          %v1852 = vcombine.high %v1832, %v1834
          %v1854 = vunpack.c.l.s4 1983009808
          %v1855 = vunpack.c.0.s8 %v1854
          %v1856 = vlaneseq
          %v1857 = vshrl.u32 %v1856, 7
          %v1858 = vsub.s32 %v1855, %v1857
          %v1859 = vrot.slane %v1851, %v1858
          %v1861 = vunpack.c.l.s4 1983009808
          %v1862 = vunpack.c.0.s8 %v1861
          %v1863 = vlaneseq
          %v1864 = vshrl.u32 %v1863, 7
          %v1865 = vsub.s32 %v1862, %v1864
          %v1866 = vrot.slane %v1852, %v1865
          %v1867 = vcombine.low %v1843, %v1859
          %v1868 = vcombine.high %v1843, %v1859
          %v1870 = vunpack.c.l.s4 1934713408
          %v1871 = vunpack.c.0.s8 %v1870
          %v1872 = vlaneseq
          %v1873 = vshrl.u32 %v1872, 7
          %v1874 = vsub.s32 %v1871, %v1873
          %v1875 = vrot.slane %v1867, %v1874
          %v1877 = vunpack.c.l.s4 1934713408
          %v1878 = vunpack.c.0.s8 %v1877
          %v1879 = vlaneseq
          %v1880 = vshrl.u32 %v1879, 7
          %v1881 = vsub.s32 %v1878, %v1880
          %v1882 = vrot.slane %v1868, %v1881
          %v1883 = vcombine.low %v1850, %v1866
          %v1884 = vcombine.high %v1850, %v1866
          %v1886 = vunpack.c.l.s4 1934713408
          %v1887 = vunpack.c.0.s8 %v1886
          %v1888 = vlaneseq
          %v1889 = vshrl.u32 %v1888, 7
          %v1890 = vsub.s32 %v1887, %v1889
          %v1891 = vrot.slane %v1883, %v1890
          %v1893 = vunpack.c.l.s4 1934713408
          %v1894 = vunpack.c.0.s8 %v1893
          %v1895 = vlaneseq
          %v1896 = vshrl.u32 %v1895, 7
          %v1897 = vsub.s32 %v1894, %v1896
          %v1898 = vrot.slane %v1884, %v1897
          %v1899 = vcombine.high %v1875, 0.0
          %v1900 = vcombine.high %v1882, 0.0
          %v1901 = vcombine.high %v1891, 0.0
          %v1902 = vcombine.high %v1898, 0.0
          %v1903 = vcombine.low %v1875, %v1882
          %v1905 = vunpack.c.l.s4 1983009808
          %v1906 = vunpack.c.0.s8 %v1905
          %v1907 = vlaneseq
          %v1908 = vshrl.u32 %v1907, 7
          %v1909 = vsub.s32 %v1906, %v1908
          %v1910 = vrot.slane %v1903, %v1909
          %v1911 = vcombine.low %v1899, %v1900
          %v1913 = vunpack.c.l.s4 1983009808
          %v1914 = vunpack.c.0.s8 %v1913
          %v1915 = vlaneseq
          %v1916 = vshrl.u32 %v1915, 7
          %v1917 = vsub.s32 %v1914, %v1916
          %v1918 = vrot.slane %v1911, %v1917
          %v1919 = vcombine.low %v1891, %v1898
          %v1921 = vunpack.c.l.s4 1983009808
          %v1922 = vunpack.c.0.s8 %v1921
          %v1923 = vlaneseq
          %v1924 = vshrl.u32 %v1923, 7
          %v1925 = vsub.s32 %v1922, %v1924
          %v1926 = vrot.slane %v1919, %v1925
          %v1927 = vcombine.low %v1901, %v1902
          %v1929 = vunpack.c.l.s4 1983009808
          %v1930 = vunpack.c.0.s8 %v1929
          %v1931 = vlaneseq
          %v1932 = vshrl.u32 %v1931, 7
          %v1933 = vsub.s32 %v1930, %v1932
          %v1934 = vrot.slane %v1927, %v1933
          %v1935 = vcombine.low %v1910, %v1918
          %v1936 = vcombine.high %v1910, %v1918
          %v1938 = vunpack.c.l.s4 1934713408
          %v1939 = vunpack.c.0.s8 %v1938
          %v1940 = vlaneseq
          %v1941 = vshrl.u32 %v1940, 7
          %v1942 = vsub.s32 %v1939, %v1941
          %v1943 = vrot.slane %v1935, %v1942
          %v1945 = vunpack.c.l.s4 1934713408
          %v1946 = vunpack.c.0.s8 %v1945
          %v1947 = vlaneseq
          %v1948 = vshrl.u32 %v1947, 7
          %v1949 = vsub.s32 %v1946, %v1948
          %v1950 = vrot.slane %v1936, %v1949
          %v1951 = vcombine.low %v1926, %v1934
          %v1952 = vcombine.high %v1926, %v1934
          %v1954 = vunpack.c.l.s4 1934713408
          %v1955 = vunpack.c.0.s8 %v1954
          %v1956 = vlaneseq
          %v1957 = vshrl.u32 %v1956, 7
          %v1958 = vsub.s32 %v1955, %v1957
          %v1959 = vrot.slane %v1951, %v1958
          %v1961 = vunpack.c.l.s4 1934713408
          %v1962 = vunpack.c.0.s8 %v1961
          %v1963 = vlaneseq
          %v1964 = vshrl.u32 %v1963, 7
          %v1965 = vsub.s32 %v1962, %v1964
          %v1966 = vrot.slane %v1952, %v1965
          %v1967 = vcombine.low %v1943, %v1959
          %v1968 = vcombine.high %v1943, %v1959
          %v1969 = vcombine.low %v1950, %v1966
          %v1970 = vcombine.high %v1950, %v1966
          %1972 = vrot.lane.b32.xlu0 %v1968, 8
          %v1973 = vpop.permute.xlu0 %1972
          %1976 = vrot.lane.b32.xlu0 %v1969, 16
          %v1977 = vpop.permute.xlu0 %1976
          %1980 = vrot.lane.b32.xlu0 %v1970, 24
          %v1981 = vpop.permute.xlu0 %1980
          %v1983 = vsel %vm1065, %v1967, %v1973
          %vm1984 = vcmask 130048
          %v1985 = vsel %vm1984, %v1983, %v1977
          %vm1986 = vcmask 195584
          %v1987 = vsel %vm1986, %v1985, %v1981
          %v1988 = vld [vmem:[#allocation14] sm:$0xff]
          %v1989 = vld [vmem:[#allocation14 + $0x8] sm:$0xff]
          %v1990 = vld [vmem:[#allocation14 + $0x10] sm:$0xff]
          %v1991 = vld [vmem:[#allocation14 + $0x18] sm:$0xff]
          %v1992 = vld [vmem:[%s7] sm:$0x1]
          %v1994 = vlaneseq
          %v1995 = vshrl.u32 %v1994, 7
          %v1996 = vsub.s32 0, %v1995
          %v1997 = vrot.slane %v1992, %v1996
          %v2000 = vsel %vm676, %v1987, 0
          %2002 = vmatprep.subr.mxu0 0.0
          %2003 = vmatpush1.msra.mxu0 0.0
          %2004 = vmatprep.subr.mxu0 0.0
          %2005 = vmatpush1.msra.mxu0 0.0
          %2006 = vmatprep.subr.mxu0 0.0
          %2007 = vmatpush1.msra.mxu0 0.0
          %2008 = vmatprep.subr.mxu0 0.0
          %2009 = vmatpush1.msra.mxu0 0.0
          %2010 = vmatprep.subr.mxu0 0.0
          %2011 = vmatpush1.msra.mxu0 0.0
          %2012 = vmatprep.subr.mxu0 0.0
          %2013 = vmatpush1.msra.mxu0 0.0
          %2014 = vmatprep.subr.mxu0 0.0
          %2015 = vmatpush1.msra.mxu0 0.0
          %2016 = vmatprep.subr.mxu0 0.0
          %2017 = vmatpush1.msra.mxu0 0.0
          %2018 = vmatprep.subr.mxu0 0.0
          %2019 = vmatpush1.msra.mxu0 0.0
          %2020 = vmatprep.subr.mxu0 0.0
          %2021 = vmatpush1.msra.mxu0 0.0
          %2022 = vmatprep.subr.mxu0 0.0
          %2023 = vmatpush1.msra.mxu0 0.0
          %2024 = vmatprep.subr.mxu0 0.0
          %2025 = vmatpush1.msra.mxu0 0.0
          %2026 = vmatprep.subr.mxu0 0.0
          %2027 = vmatpush1.msra.mxu0 %v1991
          %2028 = vmatprep.subr.mxu0 0.0
          %2029 = vmatpush1.msra.mxu0 %v1990
          %2030 = vmatprep.subr.mxu0 0.0
          %2031 = vmatpush1.msra.mxu0 %v1989
          %2032 = vmatprep.subr.mxu0 0.0
          %2033 = vmatpush1.msra.mxu0 %v1988
          %2034 = vmatprep.subr.mxu0 0.0
          %2035 = vmatpush2.msra.mxu0 0.0
          %2036 = vmatprep.subr.mxu0 0.0
          %2037 = vmatpush2.msra.mxu0 0.0
          %2038 = vmatprep.subr.mxu0 0.0
          %2039 = vmatpush2.msra.mxu0 0.0
          %2040 = vmatprep.subr.mxu0 0.0
          %2041 = vmatpush2.msra.mxu0 0.0
          %2042 = vmatprep.subr.mxu0 0.0
          %2043 = vmatpush2.msra.mxu0 0.0
          %2044 = vmatprep.subr.mxu0 0.0
          %2045 = vmatpush2.msra.mxu0 0.0
          %2046 = vmatprep.subr.mxu0 0.0
          %2047 = vmatpush2.msra.mxu0 0.0
          %2048 = vmatprep.subr.mxu0 0.0
          %2049 = vmatpush2.msra.mxu0 0.0
          %2050 = vmatprep.subr.mxu0 0.0
          %2051 = vmatpush2.msra.mxu0 0.0
          %2052 = vmatprep.subr.mxu0 0.0
          %2053 = vmatpush2.msra.mxu0 0.0
          %2054 = vmatprep.subr.mxu0 0.0
          %2055 = vmatpush2.msra.mxu0 0.0
          %2056 = vmatprep.subr.mxu0 0.0
          %2057 = vmatpush2.msra.mxu0 0.0
          %2058 = vmatprep.subr.mxu0 0.0
          %2059 = vmatpush2.msra.mxu0 0.0
          %2060 = vmatprep.subr.mxu0 0.0
          %2061 = vmatpush2.msra.mxu0 0.0
          %2062 = vmatprep.subr.mxu0 0.0
          %2063 = vmatpush2.msra.mxu0 0.0
          %2064 = vmatprep.subr.mxu0 0.0
          %2065 = vmatpush2.msra.mxu0 0.0
          %2066 = vmatprep.mubr.f32.mxu0 0.0
          %2067 = vmatmul.mubr.f32.gmra.mxu0 %v2000
          %v2068 = vpop.f32.mrf.mxu0
          %v2069 = vadd.f32 %v1997, %v2068
          %v2070 = vpop.f32.mrf.mxu0
          %2071 = vdwg.mxu0
          %2072 = vst.msk [vmem:[%s416] sm:$0xff] %vm676, %v2069
        $region80: #{tpu_custom_call.1} parent=51 // pred_fallthru
          _
        %s2073 = sand.u32 %s229, 1
        %s2074 = scalar_lea.sflag [#allocation8], %s2073
        %s2075 = sand.u32 %s229, 1
        %s2076 = smul.addr %s2075, 8
        %s2077 = scalar_lea.vmem [#allocation15], %s2076
        // Predicated region
        $region81: #{tpu_custom_call.1} parent=51 // pred_check
          %p2078 = pneg %p239
        $region82: #{tpu_custom_call.1} parent=51 // pred_check_branch
          %2080 = sbr.rel (%p2078) target = $region84
        $region83: #{tpu_custom_call.1} parent=51 // pred_region
          %s2082 = ssub.s32 128, 128
          %2083 = vsyncadd %s2074, %s2082
          %s2084 = smul.addr %s33, 128
          %s2085 = scalar_lea.hbm %s8, %s2084
          %s2087 = sshll.u32 %s2077, 4
          %s2088 = int_to_ptr.vmem [resolvable:$true] %s2087
          %2090 = dma.vmem_to_hbm [thread:$0]  %s2088, 128, %s2085, %s2074
        $region84: #{tpu_custom_call.1} parent=51 // pred_fallthru
          _
      $region52: #{tpu_custom_call.1} parent=5 // pred_fallthru
        _
      %p2091 = scmp.le.s32.totalorder 2, %s24
      // Predicated region
      $region85: #{tpu_custom_call.1} parent=5 // pred_check
        %p2092 = pneg %p2091
      $region86: #{tpu_custom_call.1} parent=5 // pred_check_branch
        %2094 = sbr.rel (%p2092) target = $region88
      $region87: #{tpu_custom_call.1} parent=5 // pred_region
        %s2095 = ssub.s32 %s24, 2
        // Predicated region
        $region89: #{tpu_custom_call.1} parent=87 // pred_check
          %p2096 = pneg %p245
        $region90: #{tpu_custom_call.1} parent=87 // pred_check_branch
          %2098 = sbr.rel (%p2096) target = $region92
        $region91: #{tpu_custom_call.1} parent=87 // pred_region
          %s2099 = sand.u32 %s230, 1
          %s2100 = scalar_lea.sflag [#allocation8], %s2099
          %s2101 = sand.u32 %s230, 1
          %s2102 = smul.addr %s2101, 8
          %s2103 = scalar_lea.vmem [#allocation15], %s2102
          %2104 = dma.done %s2100, 128
        $region92: #{tpu_custom_call.1} parent=87 // pred_fallthru
          _
      $region88: #{tpu_custom_call.1} parent=5 // pred_fallthru
        _
    $region6: #{tpu_custom_call.1} parent=1 // loop_footer
      %s28 = sadd.s32 1, %s24
    $region7: #{tpu_custom_call.1} parent=1 // loop_footer_branch
      %23 = sbr.rel target = $region3
    $region8: #{tpu_custom_call.1} parent=1 // loop_exit
      _
    %2105 = vsyncpa [#allocation7], 1
    %s2106 = scalar_lea.sflag [#allocation7], 1
    %2107 = vsyncpa %s2106, 1
    %2108 = vsyncpa [#allocation10], 1
    %s2109 = scalar_lea.sflag [#allocation10], 1
    %2110 = vsyncpa %s2109, 1
    %2111 = vsyncpa [#allocation13], 1
    %2112 = vsyncpa [#allocation8], 1
    %s2113 = scalar_lea.sflag [#allocation8], 1
    %2114 = vsyncpa %s2113, 1

</llo_original>
